<compile_context>
chip_gen: v5e
topology: v5e:2x2
jax: 0.10.0
libtpu: 0.0.40
codegen_flags: <defaults>
</compile_context>

<pallas_src>
import functools

import jax
import jax.numpy as jnp
from jax.experimental import pallas as pl
from jax.experimental.pallas import tpu as pltpu


_MIN_GRID_STEPS = 4        # keep >=4 (and preferably even) grid steps: v7x has 2 TCs
_TARGET_PIXELS = 4096      # ~4K output pixel-rows per step amortizes ~0.35us/step overhead
_COMPUTE_DTYPE = jnp.bfloat16   # MXU-native on v5e / v6e / v7x; f32 accumulation


# ---------------------------------------------------------------------------
# Mish.
# ---------------------------------------------------------------------------
def _mish_ref(x):
    # Reference form: x * tanh(softplus(x)); logaddexp(x, 0) = overflow-safe softplus.
    return x * jnp.tanh(jnp.logaddexp(x, 0.0))


def _mish_kernel(x):
    # mish(x) = x * tanh(log(1+e^x)) = x - 2x / ((1+e^x)^2 + 1)
    # One EUP exp + one reciprocal instead of exp + log1p + tanh.
    # Clamp at 40: for x > 40 the subtracted term is ~1e-33, so the result is
    # exactly x in f32 either way, and (1+e^40)^2 stays finite.
    u = 1.0 + jnp.exp(jnp.minimum(x, 40.0))
    den = u * u + 1.0
    return x - 2.0 * x * pl.reciprocal(den, approx=False)


# ---------------------------------------------------------------------------
# Kernel: two branch matmuls, right branch at low resolution + in-VMEM upsample.
# ---------------------------------------------------------------------------
def fuse_stage_kernel(l_ref, r_ref, wl_ref, bl_ref, wr_ref, br_ref, o_ref):
    """One tile of `k` pairs of output rows.

    l_ref : (k, 2*W, C)   left pixels; one output row-pair (2*W pixels) per index
    r_ref : (k,   w, C)   right pixels at low resolution (w = W//2); one low-res
                          row per index (it feeds both rows of the output pair)
    wl_ref: (C, C//2)     left  branch folded conv+BN weight (compute dtype, bf16)
    bl_ref: (1, C//2)     left  branch folded bias (f32)
    wr_ref: (C, C//2)     right branch folded conv+BN weight (compute dtype, bf16)
    br_ref: (1, C//2)     right branch folded bias (f32)
    o_ref : (k, 2*W, C)   output: channels [:C//2] = left branch, [C//2:] = right
    """
    k, two_w, c = l_ref.shape
    _, w_lo, _ = r_ref.shape

    w_l = wl_ref[...]
    w_r = wr_ref[...]
    c2 = w_l.shape[1]
    cdt = w_l.dtype

    # --- right branch: conv1x1 + BN + Mish at LOW resolution, then 2x upsample ---
    r2 = r_ref[...].reshape(k * w_lo, c).astype(cdt)
    yr = jnp.dot(r2, w_r, preferred_element_type=jnp.float32) + br_ref[...]
    yr = _mish_kernel(yr).reshape(k, w_lo, c2)
    # (k, w, C2) -> (k, 2, w, 2, C2) -> (k, 2W, C2): nearest-neighbour upsample
    # produced directly in the "pair-of-output-rows" pixel order of l_ref / o_ref.
    r_up = jax.lax.broadcast_in_dim(
        yr, (k, 2, w_lo, 2, c2), (0, 2, 4)
    ).reshape(k, two_w, c2)

    # --- left branch: conv1x1 + BN + Mish at full resolution ---
    l2 = l_ref[...].reshape(k * two_w, c).astype(cdt)
    yl = jnp.dot(l2, w_l, preferred_element_type=jnp.float32) + bl_ref[...]
    yl = _mish_kernel(yl).reshape(k, two_w, c2)

    # Channel concat = two lane-aligned stores (C2 is a multiple of 128 for real
    # neck widths); avoids a VMEM concat copy and any masked partial stores.
    o_ref[:, :, :c2] = yl.astype(o_ref.dtype)
    o_ref[:, :, c2:] = r_up.astype(o_ref.dtype)


# ---------------------------------------------------------------------------
# Generation-aware VMEM budget + tiling.
# ---------------------------------------------------------------------------
@functools.lru_cache(maxsize=1)
def _vmem_budget():
    try:
        cap = int(pltpu.get_tpu_info().vmem_capacity_bytes)
    except Exception:
        cap = 64 * 1024 * 1024          # conservative fallback: v7x per-TC VMEM
    if cap >= 128 * 1024 * 1024:        # v5e / v6e: 128 MiB physical VMEM
        vmem_limit = 96 * 1024 * 1024
    else:                               # v7x: 64 MiB physical VMEM per TC
        vmem_limit = min(48 * 1024 * 1024, (cap * 3) // 4)
    block_budget = vmem_limit // 2      # headroom for temporaries / compiler scratch
    return vmem_limit, block_budget


def _pick_pair_tile(n_pairs, W, C, in_itemsize, out_itemsize, block_budget):
    """Pick k = row-pairs per grid step (divisor of n_pairs)."""
    bytes_per_pair = (2 * W * C) * (in_itemsize + out_itemsize) \
        + (W // 2) * C * in_itemsize
    cap_vmem = max(1, block_budget // (2 * bytes_per_pair))   # x2: double buffering
    cap_pix = max(1, _TARGET_PIXELS // (2 * W))
    cap_steps = max(1, n_pairs // _MIN_GRID_STEPS)
    cap = max(1, min(cap_vmem, cap_pix, cap_steps, n_pairs))

    best, best_even = 1, 0
    for d in range(1, cap + 1):
        if n_pairs % d == 0:
            best = d
            if (n_pairs // d) % 2 == 0:
                best_even = d
    # Prefer an even step count (2-TC friendly) if it doesn't halve the tile.
    if best_even and best_even * 2 >= best:
        return best_even
    return best
    # TODO(synk): when n_pairs has no good divisor (e.g. prime h at odd levels),
    # pad n_pairs / allow a ragged last block instead of degrading towards k=1.


# ---------------------------------------------------------------------------
# Wrappers.
# ---------------------------------------------------------------------------
def fuse_stage_forward_nhwc(left, right, wl, bl, wr, br):
    """NHWC entry point (only free reshapes around the kernel, no transposes).

    left : (N, H, W, C), right : (N, H//2, W//2, C); wl/wr : (C, C//2) in the
    compute dtype; bl/br : (1, C//2) f32.  Returns (N, H, W, C) f32 with
    channels [:C//2] = left branch and [C//2:] = upsampled right branch.
    """
    N, H, W, C = left.shape
    h, w = H // 2, W // 2
    C2 = wl.shape[1]
    assert right.shape == (N, h, w, C)
    assert wl.shape == (C, C2) and wr.shape == (C, C2)
    assert bl.shape == (1, C2) and br.shape == (1, C2)

    n_pairs = N * h                          # one low-res right row per output row-pair
    la = left.reshape(n_pairs, 2 * W, C)     # free views of contiguous NHWC
    ra = right.reshape(n_pairs, w, C)

    out_dtype = jnp.float32
    vmem_limit, block_budget = _vmem_budget()
    k = _pick_pair_tile(n_pairs, W, C,
                        jnp.dtype(left.dtype).itemsize,
                        jnp.dtype(out_dtype).itemsize,
                        block_budget)

    out = pl.pallas_call(
        fuse_stage_kernel,
        out_shape=jax.ShapeDtypeStruct((n_pairs, 2 * W, C), out_dtype),
        grid_spec=pltpu.PrefetchScalarGridSpec(
            num_scalar_prefetch=0,
            grid=(n_pairs // k,),
            in_specs=[
                pl.BlockSpec((k, 2 * W, C), lambda i: (i, 0, 0)),
                pl.BlockSpec((k, w, C), lambda i: (i, 0, 0)),
                pl.BlockSpec((C, C2), lambda i: (0, 0)),
                pl.BlockSpec((1, C2), lambda i: (0, 0)),
                pl.BlockSpec((C, C2), lambda i: (0, 0)),
                pl.BlockSpec((1, C2), lambda i: (0, 0)),
            ],
            out_specs=pl.BlockSpec((k, 2 * W, C), lambda i: (i, 0, 0)),
        ),
        compiler_params=pltpu.CompilerParams(
            dimension_semantics=("parallel",),   # lets v7x shard the pixel grid across TCs
            vmem_limit_bytes=vmem_limit,
        ),
    )(la, ra, wl, bl, wr, br)
    return out.reshape(N, H, W, C)


@jax.jit
def fuse_stage_forward(left_nchw, right_nchw, wl, bl, wr, br):
    """NCHW adapter matching the PyTorch module interface.

    In an end-to-end NHWC pipeline these two transposes disappear; they are
    kept only for drop-in parity with the torch FuseStage layout.
    """
    left = jnp.transpose(left_nchw, (0, 2, 3, 1))
    right = jnp.transpose(right_nchw, (0, 2, 3, 1))
    out = fuse_stage_forward_nhwc(left, right, wl, bl, wr, br)
    return jnp.transpose(out, (0, 3, 1, 2))


# ---------------------------------------------------------------------------
# Parameter preparation (BN folding + compute-dtype cast; no zero padding).
# ---------------------------------------------------------------------------
def fold_bn_into_conv1x1(conv_w, gamma, beta, mean, var, eps=1e-5):
    """conv_w: (C_out, C_in, 1, 1) torch layout -> (C_in, C_out) weight, (1, C_out) bias."""
    scale = gamma / jnp.sqrt(var + eps)
    w = conv_w[:, :, 0, 0] * scale[:, None]      # (C_out, C_in)
    b = beta - mean * scale                      # (C_out,)
    return jnp.asarray(w.T, jnp.float32), jnp.asarray(b[None, :], jnp.float32)


def prepare_branch_params(wl, bl, wr, br, compute_dtype=_COMPUTE_DTYPE):
    """Cast the two branch weights to the MXU compute dtype once; biases stay f32
    (added after the f32-accumulating matmul)."""
    return (wl.astype(compute_dtype), bl.astype(jnp.float32),
            wr.astype(compute_dtype), br.astype(jnp.float32))


# ---------------------------------------------------------------------------
# Plain-JAX f32 reference (identical BN-folded math, torch op ordering).
# ---------------------------------------------------------------------------
def reference_forward(left_nchw, right_nchw, wl, bl, wr, br):
    def conv_bn_mish(x, wt, bb):  # x NCHW, wt (C_in, C_out), bb (1, C_out)
        y = jnp.einsum("nchw,cd->ndhw", x, wt,
                       precision=jax.lax.Precision.HIGHEST)
        y = y + bb[0][None, :, None, None]
        return _mish_ref(y)

    l = conv_bn_mish(left_nchw, wl, bl)
    r = conv_bn_mish(right_nchw, wr, br)
    r = jnp.repeat(jnp.repeat(r, 2, axis=2), 2, axis=3)   # nn.Upsample(2, 'nearest')
    return jnp.concatenate([l, r], axis=1)                # torch.cat(axis=1)


if __name__ == "__main__":
    key = jax.random.PRNGKey(0)
    # FuseStage(256) level of the YOLOv4 neck at a small spatial size.
    N, C, H, W = 2, 256, 32, 32
    h, w = H // 2, W // 2
    C2 = C // 2

    ks = jax.random.split(key, 12)
    left = jax.random.normal(ks[0], (N, C, H, W), jnp.float32)
    right = jax.random.normal(ks[1], (N, C, h, w), jnp.float32)

    # Synthetic ConvModule parameters (conv bias omitted since BN follows).
    wl_conv = 0.1 * jax.random.normal(ks[2], (C2, C, 1, 1), jnp.float32)
    gl = 1.0 + 0.1 * jax.random.normal(ks[3], (C2,), jnp.float32)
    betal = 0.1 * jax.random.normal(ks[4], (C2,), jnp.float32)
    meanl = 0.1 * jax.random.normal(ks[5], (C2,), jnp.float32)
    varl = jnp.abs(jax.random.normal(ks[6], (C2,), jnp.float32)) + 0.5
    wr_conv = 0.1 * jax.random.normal(ks[7], (C2, C, 1, 1), jnp.float32)
    gr = 1.0 + 0.1 * jax.random.normal(ks[8], (C2,), jnp.float32)
    betar = 0.1 * jax.random.normal(ks[9], (C2,), jnp.float32)
    meanr = 0.1 * jax.random.normal(ks[10], (C2,), jnp.float32)
    varr = jnp.abs(jax.random.normal(ks[11], (C2,), jnp.float32)) + 0.5

    wl, bl = fold_bn_into_conv1x1(wl_conv, gl, betal, meanl, varl)
    wr, br = fold_bn_into_conv1x1(wr_conv, gr, betar, meanr, varr)
    wl_c, bl_c, wr_c, br_c = prepare_branch_params(wl, bl, wr, br)

    out = jax.block_until_ready(
        fuse_stage_forward(left, right, wl_c, bl_c, wr_c, br_c))

    expected = reference_forward(left, right, wl, bl, wr, br)
    assert out.shape == (N, C, H, W), out.shape
    # bf16 matmul + cheap-Mish formulation vs f32 reference: relaxed tolerance.
    max_err = float(jnp.max(jnp.abs(out - expected)))
    assert jnp.allclose(out, expected, atol=5e-2, rtol=5e-2), f"max_err={max_err}"

    print("KERNEL_OK")
</pallas_src>

<mosaic_0001>
module attributes {stable_mosaic.version = 11 : i64} {
  func.func @fuse_stage_kernel(%arg0: i32, %arg1: memref<8x64x256xf32, #tpu.memory_space<vmem>>, %arg2: memref<8x16x256xf32, #tpu.memory_space<vmem>>, %arg3: memref<256x128xbf16, #tpu.memory_space<vmem>>, %arg4: memref<1x128xf32, #tpu.memory_space<vmem>>, %arg5: memref<256x128xbf16, #tpu.memory_space<vmem>>, %arg6: memref<1x128xf32, #tpu.memory_space<vmem>>, %arg7: memref<8x64x256xf32, #tpu.memory_space<vmem>>) attributes {dimension_semantics = [#tpu.dimension_semantics<parallel>], iteration_bounds = array<i64: 4>, scalar_prefetch = 0 : i64, scratch_operands = 0 : i64, tpu.core_type = #tpu.core_type<tc>, window_params = [{transform_indices = @transform_0, window_bounds = array<i64: 8, 64, 256>}, {transform_indices = @transform_1, window_bounds = array<i64: 8, 16, 256>}, {pipeline_mode = #tpu.pipeline_mode<synchronous>, transform_indices = @transform_2, window_bounds = array<i64: 256, 128>}, {pipeline_mode = #tpu.pipeline_mode<synchronous>, transform_indices = @transform_3, window_bounds = array<i64: 1, 128>}, {pipeline_mode = #tpu.pipeline_mode<synchronous>, transform_indices = @transform_4, window_bounds = array<i64: 256, 128>}, {pipeline_mode = #tpu.pipeline_mode<synchronous>, transform_indices = @transform_5, window_bounds = array<i64: 1, 128>}, {transform_indices = @transform_6, window_bounds = array<i64: 8, 64, 256>}]} {
    %c0 = arith.constant 0 : index
    %c0_0 = arith.constant 0 : index
    %0 = vector.load %arg3[%c0, %c0_0] : memref<256x128xbf16, #tpu.memory_space<vmem>>, vector<256x128xbf16>
    %c0_1 = arith.constant 0 : index
    %c0_2 = arith.constant 0 : index
    %1 = vector.load %arg5[%c0_1, %c0_2] : memref<256x128xbf16, #tpu.memory_space<vmem>>, vector<256x128xbf16>
    %c0_3 = arith.constant 0 : index
    %c0_4 = arith.constant 0 : index
    %c0_5 = arith.constant 0 : index
    %2 = vector.load %arg2[%c0_3, %c0_4, %c0_5] : memref<8x16x256xf32, #tpu.memory_space<vmem>>, vector<8x16x256xf32>
    %3 = vector.shape_cast %2 : vector<8x16x256xf32> to vector<128x256xf32>
    %4 = arith.truncf %3 : vector<128x256xf32> to vector<128x256xbf16>
    %cst = arith.constant dense<0.000000e+00> : vector<128x128xf32>
    %5 = tpu.matmul %4, %1, %cst {dimension_numbers = #tpu.dot_dimension_numbers<[1], [0], [0], [1], [0, 0, 1, 1], [], []>} : vector<128x256xbf16>, vector<256x128xbf16>, vector<128x128xf32> -> vector<128x128xf32>
    %c0_6 = arith.constant 0 : index
    %c0_7 = arith.constant 0 : index
    %6 = vector.load %arg6[%c0_6, %c0_7] : memref<1x128xf32, #tpu.memory_space<vmem>>, vector<1x128xf32>
    %7 = vector.broadcast %6 : vector<1x128xf32> to vector<128x128xf32>
    %8 = arith.addf %5, %7 : vector<128x128xf32>
    %cst_8 = arith.constant 4.000000e+01 : f32
    %9 = vector.broadcast %cst_8 : f32 to vector<128x128xf32>
    %10 = arith.minimumf %8, %9 : vector<128x128xf32>
    %11 = math.exp %10 : vector<128x128xf32>
    %cst_9 = arith.constant 1.000000e+00 : f32
    %12 = vector.broadcast %cst_9 : f32 to vector<128x128xf32>
    %13 = arith.addf %12, %11 : vector<128x128xf32>
    %14 = arith.mulf %13, %13 : vector<128x128xf32>
    %cst_10 = arith.constant 1.000000e+00 : f32
    %15 = vector.broadcast %cst_10 : f32 to vector<128x128xf32>
    %16 = arith.addf %14, %15 : vector<128x128xf32>
    %cst_11 = arith.constant 2.000000e+00 : f32
    %17 = vector.broadcast %cst_11 : f32 to vector<128x128xf32>
    %18 = arith.mulf %17, %8 : vector<128x128xf32>
    %19 = tpu.reciprocal %16 : vector<128x128xf32> -> vector<128x128xf32>
    %20 = arith.mulf %18, %19 : vector<128x128xf32>
    %21 = arith.subf %8, %20 : vector<128x128xf32>
    %22 = vector.shape_cast %21 : vector<128x128xf32> to vector<8x16x128xf32>
    %23 = vector.shape_cast %22 : vector<8x16x128xf32> to vector<8x1x16x1x128xf32>
    %24 = vector.broadcast %23 : vector<8x1x16x1x128xf32> to vector<8x2x16x2x128xf32>
    %25 = vector.shape_cast %24 : vector<8x2x16x2x128xf32> to vector<8x64x128xf32>
    %c0_12 = arith.constant 0 : index
    %c0_13 = arith.constant 0 : index
    %c0_14 = arith.constant 0 : index
    %26 = vector.load %arg1[%c0_12, %c0_13, %c0_14] : memref<8x64x256xf32, #tpu.memory_space<vmem>>, vector<8x64x256xf32>
    %27 = vector.shape_cast %26 : vector<8x64x256xf32> to vector<512x256xf32>
    %28 = arith.truncf %27 : vector<512x256xf32> to vector<512x256xbf16>
    %cst_15 = arith.constant dense<0.000000e+00> : vector<512x128xf32>
    %29 = tpu.matmul %28, %0, %cst_15 {dimension_numbers = #tpu.dot_dimension_numbers<[1], [0], [0], [1], [0, 0, 1, 1], [], []>} : vector<512x256xbf16>, vector<256x128xbf16>, vector<512x128xf32> -> vector<512x128xf32>
    %c0_16 = arith.constant 0 : index
    %c0_17 = arith.constant 0 : index
    %30 = vector.load %arg4[%c0_16, %c0_17] : memref<1x128xf32, #tpu.memory_space<vmem>>, vector<1x128xf32>
    %31 = vector.broadcast %30 : vector<1x128xf32> to vector<512x128xf32>
    %32 = arith.addf %29, %31 : vector<512x128xf32>
    %cst_18 = arith.constant 4.000000e+01 : f32
    %33 = vector.broadcast %cst_18 : f32 to vector<512x128xf32>
    %34 = arith.minimumf %32, %33 : vector<512x128xf32>
    %35 = math.exp %34 : vector<512x128xf32>
    %cst_19 = arith.constant 1.000000e+00 : f32
    %36 = vector.broadcast %cst_19 : f32 to vector<512x128xf32>
    %37 = arith.addf %36, %35 : vector<512x128xf32>
    %38 = arith.mulf %37, %37 : vector<512x128xf32>
    %cst_20 = arith.constant 1.000000e+00 : f32
    %39 = vector.broadcast %cst_20 : f32 to vector<512x128xf32>
    %40 = arith.addf %38, %39 : vector<512x128xf32>
    %cst_21 = arith.constant 2.000000e+00 : f32
    %41 = vector.broadcast %cst_21 : f32 to vector<512x128xf32>
    %42 = arith.mulf %41, %32 : vector<512x128xf32>
    %43 = tpu.reciprocal %40 : vector<512x128xf32> -> vector<512x128xf32>
    %44 = arith.mulf %42, %43 : vector<512x128xf32>
    %45 = arith.subf %32, %44 : vector<512x128xf32>
    %46 = vector.shape_cast %45 : vector<512x128xf32> to vector<8x64x128xf32>
    %c0_22 = arith.constant 0 : index
    %c0_23 = arith.constant 0 : index
    %c0_24 = arith.constant 0 : index
    %47 = vector.load %arg7[%c0_22, %c0_23, %c0_24] : memref<8x64x256xf32, #tpu.memory_space<vmem>>, vector<8x64x128xf32>
    tpu.vector_store %arg7[%c0_22, %c0_23, %c0_24], %46 {strides = array<i32>} : memref<8x64x256xf32, #tpu.memory_space<vmem>>, vector<8x64x128xf32>,
    %c0_25 = arith.constant 0 : index
    %c0_26 = arith.constant 0 : index
    %c128 = arith.constant 128 : index
    %48 = vector.load %arg7[%c0_25, %c0_26, %c128] : memref<8x64x256xf32, #tpu.memory_space<vmem>>, vector<8x64x128xf32>
    tpu.vector_store %arg7[%c0_25, %c0_26, %c128], %25 {strides = array<i32>} : memref<8x64x256xf32, #tpu.memory_space<vmem>>, vector<8x64x128xf32>,
    return
  }
  func.func @transform_0(%arg0: i32) -> (i32, i32, i32) {
    %c0_i32 = arith.constant 0 : i32
    %c0_i32_0 = arith.constant 0 : i32
    %c0_i32_1 = arith.constant 0 : i32
    return %arg0, %c0_i32, %c0_i32_0 : i32, i32, i32
  }
  func.func @transform_1(%arg0: i32) -> (i32, i32, i32) {
    %c0_i32 = arith.constant 0 : i32
    %c0_i32_0 = arith.constant 0 : i32
    %c0_i32_1 = arith.constant 0 : i32
    return %arg0, %c0_i32, %c0_i32_0 : i32, i32, i32
  }
  func.func @transform_2(%arg0: i32) -> (i32, i32) {
    %c0_i32 = arith.constant 0 : i32
    %c0_i32_0 = arith.constant 0 : i32
    %c0_i32_1 = arith.constant 0 : i32
    return %c0_i32, %c0_i32_0 : i32, i32
  }
  func.func @transform_3(%arg0: i32) -> (i32, i32) {
    %c0_i32 = arith.constant 0 : i32
    %c0_i32_0 = arith.constant 0 : i32
    %c0_i32_1 = arith.constant 0 : i32
    return %c0_i32, %c0_i32_0 : i32, i32
  }
  func.func @transform_4(%arg0: i32) -> (i32, i32) {
    %c0_i32 = arith.constant 0 : i32
    %c0_i32_0 = arith.constant 0 : i32
    %c0_i32_1 = arith.constant 0 : i32
    return %c0_i32, %c0_i32_0 : i32, i32
  }
  func.func @transform_5(%arg0: i32) -> (i32, i32) {
    %c0_i32 = arith.constant 0 : i32
    %c0_i32_0 = arith.constant 0 : i32
    %c0_i32_1 = arith.constant 0 : i32
    return %c0_i32, %c0_i32_0 : i32, i32
  }
  func.func @transform_6(%arg0: i32) -> (i32, i32, i32) {
    %c0_i32 = arith.constant 0 : i32
    %c0_i32_0 = arith.constant 0 : i32
    %c0_i32_1 = arith.constant 0 : i32
    return %arg0, %c0_i32, %c0_i32_0 : i32, i32, i32
  }
}

</mosaic_0001>

<llo_original>
// kernel: fuse_stage_forward.1
$region0: #{fuse_stage_forward.1}
  #allocation0 [shape = 'u32[]', space=smem, size = 0x4, offset = 0x4, fixed_abs, tag = 'smem constant byte address 0x4 - core index']
  #allocation1 [shape = 'u32[72,128]{1,0:T(1,128)}', space=vmem, size = 0x9000, scoped, tag = 'internal scratch']
  %s0 = inlined_call_operand.hbm [shape: f32[32,64,256], index: 0, kind: input, shape index: {}]
  %s1 = inlined_call_operand.hbm [shape: f32[32,16,256], index: 1, kind: input, shape index: {}]
  %s2 = inlined_call_operand.hbm [shape: bf16[256,128], index: 2, kind: input, shape index: {}]
  %s3 = inlined_call_operand.hbm [shape: f32[1,128], index: 3, kind: input, shape index: {}]
  %s4 = inlined_call_operand.hbm [shape: bf16[256,128], index: 4, kind: input, shape index: {}]
  %s5 = inlined_call_operand.hbm [shape: f32[1,128], index: 5, kind: input, shape index: {}]
  %s6 = inlined_call_operand.hbm [shape: f32[32,64,256], index: 6, kind: output, shape index: {}]
  %s7 = sld [smem:[#allocation0]]
  $region81: #{fuse_stage_forward.1} parent=0
    _
  %s9 = ssub.s32 1, %s7
  %s10 = scalar_select 0, %s9, %s7
  $region1: #{fuse_stage_forward.1} parent=0
    #allocation2 [shape = 'u8[1048576]{0}', space=vmem, size = 0x100000, scoped, tag = 'input window, operand 0']
    #allocation3 [shape = 's32[2]{0}', space=sflag, size = 0x8, scoped, tag = 'scoped memory for fuse_stage_forward.1']
    #allocation4 [shape = 's32[2]{0}', space=sflag, size = 0x8, scoped, tag = 'scoped memory for fuse_stage_forward.1']
    #allocation5 [shape = 'u8[262144]{0}', space=vmem, size = 0x40000, scoped, tag = 'input window, operand 1']
    #allocation6 [shape = 's32[2]{0}', space=sflag, size = 0x8, scoped, tag = 'scoped memory for fuse_stage_forward.1']
    #allocation7 [shape = 'u8[65536]{0}', space=vmem, size = 0x10000, scoped, tag = 'input window, operand 2, single buffered']
    #allocation8 [shape = 'u8[512]{0}', space=vmem, size = 0x400, scoped, tag = 'input window, operand 3, single buffered']
    #allocation9 [shape = 's32[1]{0}', space=sflag, size = 0x4, scoped, tag = 'scoped memory for fuse_stage_forward.1']
    #allocation10 [shape = 'u8[65536]{0}', space=vmem, size = 0x10000, scoped, tag = 'input window, operand 4, single buffered']
    #allocation11 [shape = 'u8[512]{0}', space=vmem, size = 0x400, scoped, tag = 'input window, operand 5, single buffered']
    #allocation12 [shape = 's32[1]{0}', space=sflag, size = 0x4, scoped, tag = 'scoped memory for fuse_stage_forward.1']
    #allocation13 [shape = 'u8[1048576]{0}', space=vmem, size = 0x100000, scoped, tag = 'output window, operand 0']
    %11 = vsyncpa [#allocation3], 0
    %s12 = scalar_lea.sflag [#allocation3], 1
    %13 = vsyncpa %s12, 0
    %14 = vsyncpa [#allocation6], 0
    %s15 = scalar_lea.sflag [#allocation6], 1
    %16 = vsyncpa %s15, 0
    %17 = vsyncpa [#allocation9], 0
    %18 = vsyncpa [#allocation12], 0
    %19 = vsyncpa [#allocation4], 0
    %s20 = scalar_lea.sflag [#allocation4], 1
    %21 = vsyncpa %s20, 0
    loop: start=0, step=1, limit=6
    $region2: #{fuse_stage_forward.1} parent=1 // loop_pre_header
      _
    $region3: #{fuse_stage_forward.1} parent=1 // loop_header
      %s23 = sphi 0, %s27
      %p24 = scmp.ge.s32.totalorder %s23, 6
      %s33 = sphi 0, %s35
      %s36 = sphi 0, %s33
      %s37 = sphi 0, %s36
      %s53 = sphi 0, %s37
      %s59 = sphi 0, %s61
      %s62 = sphi 0, %s59
      %s63 = sphi 0, %s62
      %s79 = sphi 0, %s63
      %s83 = sphi 0, %s83
      %s85 = sphi 0, %s83
      %s86 = sphi 0, %s85
      %s100 = sphi 0, %s86
      %s104 = sphi 0, %s104
      %s106 = sphi 0, %s104
      %s107 = sphi 0, %s106
      %s121 = sphi 0, %s107
      %s125 = sphi 0, %s125
      %s127 = sphi 0, %s125
      %s128 = sphi 0, %s127
      %s142 = sphi 0, %s128
      %s146 = sphi 0, %s146
      %s148 = sphi 0, %s146
      %s149 = sphi 0, %s148
      %s163 = sphi 0, %s149
      %s169 = sphi 0, %s171
      %s172 = sphi 0, %s169
      %s173 = sphi 0, %s172
      %s189 = sphi 0, %s173
    $region4: #{fuse_stage_forward.1} parent=1 // loop_header_branch
      %26 = sbr.rel (%p24) target = $region8
    $region5: #{fuse_stage_forward.1} parent=1 // loop_body
      %s28 = ssub.s32 %s23, 1
      %s29 = ssub.s32 %s23, 2
      %s30 = sadd.s32 %s23, 1
      %s31 = ssub.s32 %s23, %s30
      %p32 = scmp.eq.s32.totalorder %s31, 0
      %s34 = sadd.s32 %s33, 1
      %s35 = scalar_select %p32, %s33, %s34
      %p38 = pneg %p32
      %p39 = scmp.eq.s32.totalorder %s23, 3
      %p40 = por %p38, %p39
      %p41 = scmp.ne.s32.totalorder %s33, %s36
      %p42 = scmp.eq.s32.totalorder %s23, 0
      %p43 = por %p41, %p42
      %p44 = scmp.ne.s32.totalorder %s33, %s36
      %p45 = scmp.eq.s32.totalorder %s28, 3
      %p46 = por %p44, %p45
      %p47 = scmp.ne.s32.totalorder %s36, %s37
      %p48 = scmp.eq.s32.totalorder %s28, 0
      %p49 = por %p47, %p48
      %p50 = scmp.ne.s32.totalorder %s36, %s37
      %p51 = scmp.eq.s32.totalorder %s29, 3
      %p52 = por %p50, %p51
      %p54 = scmp.ne.s32.totalorder %s37, %s53
      %p55 = scmp.eq.s32.totalorder %s29, 0
      %p56 = por %p54, %p55
      %s57 = ssub.s32 %s23, %s30
      %p58 = scmp.eq.s32.totalorder %s57, 0
      %s60 = sadd.s32 %s59, 1
      %s61 = scalar_select %p58, %s59, %s60
      %p64 = pneg %p58
      %p65 = scmp.eq.s32.totalorder %s23, 3
      %p66 = por %p64, %p65
      %p67 = scmp.ne.s32.totalorder %s59, %s62
      %p68 = scmp.eq.s32.totalorder %s23, 0
      %p69 = por %p67, %p68
      %p70 = scmp.ne.s32.totalorder %s59, %s62
      %p71 = scmp.eq.s32.totalorder %s28, 3
      %p72 = por %p70, %p71
      %p73 = scmp.ne.s32.totalorder %s62, %s63
      %p74 = scmp.eq.s32.totalorder %s28, 0
      %p75 = por %p73, %p74
      %p76 = scmp.ne.s32.totalorder %s62, %s63
      %p77 = scmp.eq.s32.totalorder %s29, 3
      %p78 = por %p76, %p77
      %p80 = scmp.ne.s32.totalorder %s63, %s79
      %p81 = scmp.eq.s32.totalorder %s29, 0
      %p82 = por %p80, %p81
      %s84 = sadd.s32 %s83, 1
      %p87 = scmp.eq.s32.totalorder %s23, 3
      %p88 = scmp.ne.s32.totalorder %s83, %s85
      %p89 = scmp.eq.s32.totalorder %s23, 0
      %p90 = por %p88, %p89
      %p91 = scmp.ne.s32.totalorder %s83, %s85
      %p92 = scmp.eq.s32.totalorder %s28, 3
      %p93 = por %p91, %p92
      %p94 = scmp.ne.s32.totalorder %s85, %s86
      %p95 = scmp.eq.s32.totalorder %s28, 0
      %p96 = por %p94, %p95
      %p97 = scmp.ne.s32.totalorder %s85, %s86
      %p98 = scmp.eq.s32.totalorder %s29, 3
      %p99 = por %p97, %p98
      %p101 = scmp.ne.s32.totalorder %s86, %s100
      %p102 = scmp.eq.s32.totalorder %s29, 0
      %p103 = por %p101, %p102
      %s105 = sadd.s32 %s104, 1
      %p108 = scmp.eq.s32.totalorder %s23, 3
      %p109 = scmp.ne.s32.totalorder %s104, %s106
      %p110 = scmp.eq.s32.totalorder %s23, 0
      %p111 = por %p109, %p110
      %p112 = scmp.ne.s32.totalorder %s104, %s106
      %p113 = scmp.eq.s32.totalorder %s28, 3
      %p114 = por %p112, %p113
      %p115 = scmp.ne.s32.totalorder %s106, %s107
      %p116 = scmp.eq.s32.totalorder %s28, 0
      %p117 = por %p115, %p116
      %p118 = scmp.ne.s32.totalorder %s106, %s107
      %p119 = scmp.eq.s32.totalorder %s29, 3
      %p120 = por %p118, %p119
      %p122 = scmp.ne.s32.totalorder %s107, %s121
      %p123 = scmp.eq.s32.totalorder %s29, 0
      %p124 = por %p122, %p123
      %s126 = sadd.s32 %s125, 1
      %p129 = scmp.eq.s32.totalorder %s23, 3
      %p130 = scmp.ne.s32.totalorder %s125, %s127
      %p131 = scmp.eq.s32.totalorder %s23, 0
      %p132 = por %p130, %p131
      %p133 = scmp.ne.s32.totalorder %s125, %s127
      %p134 = scmp.eq.s32.totalorder %s28, 3
      %p135 = por %p133, %p134
      %p136 = scmp.ne.s32.totalorder %s127, %s128
      %p137 = scmp.eq.s32.totalorder %s28, 0
      %p138 = por %p136, %p137
      %p139 = scmp.ne.s32.totalorder %s127, %s128
      %p140 = scmp.eq.s32.totalorder %s29, 3
      %p141 = por %p139, %p140
      %p143 = scmp.ne.s32.totalorder %s128, %s142
      %p144 = scmp.eq.s32.totalorder %s29, 0
      %p145 = por %p143, %p144
      %s147 = sadd.s32 %s146, 1
      %p150 = scmp.eq.s32.totalorder %s23, 3
      %p151 = scmp.ne.s32.totalorder %s146, %s148
      %p152 = scmp.eq.s32.totalorder %s23, 0
      %p153 = por %p151, %p152
      %p154 = scmp.ne.s32.totalorder %s146, %s148
      %p155 = scmp.eq.s32.totalorder %s28, 3
      %p156 = por %p154, %p155
      %p157 = scmp.ne.s32.totalorder %s148, %s149
      %p158 = scmp.eq.s32.totalorder %s28, 0
      %p159 = por %p157, %p158
      %p160 = scmp.ne.s32.totalorder %s148, %s149
      %p161 = scmp.eq.s32.totalorder %s29, 3
      %p162 = por %p160, %p161
      %p164 = scmp.ne.s32.totalorder %s149, %s163
      %p165 = scmp.eq.s32.totalorder %s29, 0
      %p166 = por %p164, %p165
      %s167 = ssub.s32 %s23, %s30
      %p168 = scmp.eq.s32.totalorder %s167, 0
      %s170 = sadd.s32 %s169, 1
      %s171 = scalar_select %p168, %s169, %s170
      %p174 = pneg %p168
      %p175 = scmp.eq.s32.totalorder %s23, 3
      %p176 = por %p174, %p175
      %p177 = scmp.ne.s32.totalorder %s169, %s172
      %p178 = scmp.eq.s32.totalorder %s23, 0
      %p179 = por %p177, %p178
      %p180 = scmp.ne.s32.totalorder %s169, %s172
      %p181 = scmp.eq.s32.totalorder %s28, 3
      %p182 = por %p180, %p181
      %p183 = scmp.ne.s32.totalorder %s172, %s173
      %p184 = scmp.eq.s32.totalorder %s28, 0
      %p185 = por %p183, %p184
      %p186 = scmp.ne.s32.totalorder %s172, %s173
      %p187 = scmp.eq.s32.totalorder %s29, 3
      %p188 = por %p186, %p187
      %p190 = scmp.ne.s32.totalorder %s173, %s189
      %p191 = scmp.eq.s32.totalorder %s29, 0
      %p192 = por %p190, %p191
      %p193 = scmp.le.s32.totalorder 1, %s23
      %p194 = scmp.lt.s32.totalorder %s23, 5
      %p195 = pnand %p193, %p194
      %p196 = pneg %p195
      // Predicated region
      $region9: #{fuse_stage_forward.1} parent=5 // pred_check
        _
      $region10: #{fuse_stage_forward.1} parent=5 // pred_check_branch
        %198 = sbr.rel (%p195) target = $region12
      $region11: #{fuse_stage_forward.1} parent=5 // pred_region
        %s199 = ssub.s32 %s23, 1
        // Predicated region
        $region13: #{fuse_stage_forward.1} parent=11 // pred_check
          %p200 = pneg %p96
        $region14: #{fuse_stage_forward.1} parent=11 // pred_check_branch
          %202 = sbr.rel (%p200) target = $region16
        $region15: #{fuse_stage_forward.1} parent=11 // pred_region
          %204 = vsyncadd [#allocation6], 0
          %s205 = sshll.u32 %s2, 4
          %s206 = int_to_ptr.hbm [resolvable:$true] %s205
          %s207 = sshll.u32 [#allocation7], 4
          %s208 = int_to_ptr.vmem [resolvable:$true] %s207
          %213 = dma.hbm_to_vmem [thread:$0]  %s206, 2048, %s208, [#allocation6], 64, 64, 4
        $region16: #{fuse_stage_forward.1} parent=11 // pred_fallthru
          _
        // Predicated region
        $region17: #{fuse_stage_forward.1} parent=11 // pred_check
          %p214 = pneg %p117
        $region18: #{fuse_stage_forward.1} parent=11 // pred_check_branch
          %216 = sbr.rel (%p214) target = $region20
        $region19: #{fuse_stage_forward.1} parent=11 // pred_region
          %218 = vsyncadd [#allocation9], 0
          %s220 = sshll.u32 %s3, 4
          %s221 = int_to_ptr.hbm [resolvable:$true] %s220
          %s222 = sshll.u32 [#allocation8], 4
          %s223 = int_to_ptr.vmem [resolvable:$true] %s222
          %225 = dma.hbm_to_vmem [thread:$0]  %s221, 16, %s223, [#allocation9]
        $region20: #{fuse_stage_forward.1} parent=11 // pred_fallthru
          _
        // Predicated region
        $region21: #{fuse_stage_forward.1} parent=11 // pred_check
          %p226 = pneg %p138
        $region22: #{fuse_stage_forward.1} parent=11 // pred_check_branch
          %228 = sbr.rel (%p226) target = $region24
        $region23: #{fuse_stage_forward.1} parent=11 // pred_region
          %230 = vsyncadd [#allocation9], 0
          %s231 = sshll.u32 %s4, 4
          %s232 = int_to_ptr.hbm [resolvable:$true] %s231
          %s233 = sshll.u32 [#allocation10], 4
          %s234 = int_to_ptr.vmem [resolvable:$true] %s233
          %239 = dma.hbm_to_vmem [thread:$0]  %s232, 2048, %s234, [#allocation9], 64, 64, 4
        $region24: #{fuse_stage_forward.1} parent=11 // pred_fallthru
          _
        // Predicated region
        $region25: #{fuse_stage_forward.1} parent=11 // pred_check
          %p240 = pneg %p159
        $region26: #{fuse_stage_forward.1} parent=11 // pred_check_branch
          %242 = sbr.rel (%p240) target = $region28
        $region27: #{fuse_stage_forward.1} parent=11 // pred_region
          %244 = vsyncadd [#allocation12], 0
          %s246 = sshll.u32 %s5, 4
          %s247 = int_to_ptr.hbm [resolvable:$true] %s246
          %s248 = sshll.u32 [#allocation11], 4
          %s249 = int_to_ptr.vmem [resolvable:$true] %s248
          %251 = dma.hbm_to_vmem [thread:$0]  %s247, 16, %s249, [#allocation12]
        $region28: #{fuse_stage_forward.1} parent=11 // pred_fallthru
          _
      $region12: #{fuse_stage_forward.1} parent=5 // pred_fallthru
        _
      %p252 = scmp.lt.s32.totalorder %s23, 4
      // Predicated region
      $region29: #{fuse_stage_forward.1} parent=5 // pred_check
        %p253 = pneg %p252
      $region30: #{fuse_stage_forward.1} parent=5 // pred_check_branch
        %255 = sbr.rel (%p253) target = $region32
      $region31: #{fuse_stage_forward.1} parent=5 // pred_region
        // Predicated region
        $region33: #{fuse_stage_forward.1} parent=31 // pred_check
          %p256 = pneg %p43
        $region34: #{fuse_stage_forward.1} parent=31 // pred_check_branch
          %258 = sbr.rel (%p256) target = $region36
        $region35: #{fuse_stage_forward.1} parent=31 // pred_region
          %s259 = sand.u32 %s33, 1
          %s260 = scalar_lea.sflag [#allocation3], %s259
          %s261 = sand.u32 %s33, 1
          %s262 = smul.addr %s261, 1024
          %s263 = scalar_lea.vmem [#allocation2], %s262
          %s264 = smul.u32 8, %s23
          %266 = vsyncadd %s260, 0
          %s267 = smul.addr %s264, 16
          %s268 = smul.addr %s267, 8
          %s269 = scalar_lea.hbm %s0, %s268
          %s270 = sshll.u32 %s269, 4
          %s271 = int_to_ptr.hbm [resolvable:$true] %s270
          %s272 = sshll.u32 %s263, 4
          %s273 = int_to_ptr.vmem [resolvable:$true] %s272
          %278 = dma.hbm_to_vmem [thread:$0]  %s271, 16384, %s273, %s260, 256, 256, 16
        $region36: #{fuse_stage_forward.1} parent=31 // pred_fallthru
          _
        // Predicated region
        $region37: #{fuse_stage_forward.1} parent=31 // pred_check
          %p279 = pneg %p69
        $region38: #{fuse_stage_forward.1} parent=31 // pred_check_branch
          %281 = sbr.rel (%p279) target = $region40
        $region39: #{fuse_stage_forward.1} parent=31 // pred_region
          %s282 = sand.u32 %s23, 1
          %s283 = scalar_lea.sflag [#allocation6], %s282
          %s284 = sand.u32 %s59, 1
          %s285 = smul.addr %s284, 256
          %s286 = scalar_lea.vmem [#allocation5], %s285
          %s287 = smul.u32 8, %s23
          %289 = vsyncadd %s283, 0
          %s290 = smul.addr %s287, 4
          %s291 = smul.addr %s290, 8
          %s292 = scalar_lea.hbm %s1, %s291
          %s293 = sshll.u32 %s292, 4
          %s294 = int_to_ptr.hbm [resolvable:$true] %s293
          %s295 = sshll.u32 %s286, 4
          %s296 = int_to_ptr.vmem [resolvable:$true] %s295
          %301 = dma.hbm_to_vmem [thread:$0]  %s294, 4096, %s296, %s283, 256, 256, 16
        $region40: #{fuse_stage_forward.1} parent=31 // pred_fallthru
          _
      $region32: #{fuse_stage_forward.1} parent=5 // pred_fallthru
        _
      %p302 = scmp.le.s32.totalorder 1, %s23
      %p303 = scmp.lt.s32.totalorder %s23, 5
      %p304 = pnand %p302, %p303
      %p305 = pneg %p304
      // Predicated region
      $region41: #{fuse_stage_forward.1} parent=5 // pred_check
        _
      $region42: #{fuse_stage_forward.1} parent=5 // pred_check_branch
        %307 = sbr.rel (%p304) target = $region44
      $region43: #{fuse_stage_forward.1} parent=5 // pred_region
        %s308 = ssub.s32 %s23, 1
        %s309 = sand.u32 %s36, 1
        %s310 = scalar_lea.sflag [#allocation3], %s309
        %s311 = sand.u32 %s36, 1
        %s312 = smul.addr %s311, 1024
        %s313 = scalar_lea.vmem [#allocation2], %s312
        // Predicated region
        $region45: #{fuse_stage_forward.1} parent=43 // pred_check
          %p314 = pneg %p49
        $region46: #{fuse_stage_forward.1} parent=43 // pred_check_branch
          %316 = sbr.rel (%p314) target = $region48
        $region47: #{fuse_stage_forward.1} parent=43 // pred_region
          %318 = dma.done %s310, 16384
        $region48: #{fuse_stage_forward.1} parent=43 // pred_fallthru
          _
        %s319 = sand.u32 %s28, 1
        %s320 = scalar_lea.sflag [#allocation6], %s319
        %s321 = sand.u32 %s62, 1
        %s322 = smul.addr %s321, 256
        %s323 = scalar_lea.vmem [#allocation5], %s322
        // Predicated region
        $region49: #{fuse_stage_forward.1} parent=43 // pred_check
          %p324 = pneg %p75
        $region50: #{fuse_stage_forward.1} parent=43 // pred_check_branch
          %326 = sbr.rel (%p324) target = $region52
        $region51: #{fuse_stage_forward.1} parent=43 // pred_region
          %328 = dma.done %s320, 4096
        $region52: #{fuse_stage_forward.1} parent=43 // pred_fallthru
          _
        // Predicated region
        $region53: #{fuse_stage_forward.1} parent=43 // pred_check
          %p329 = pneg %p96
        $region54: #{fuse_stage_forward.1} parent=43 // pred_check_branch
          %331 = sbr.rel (%p329) target = $region56
        $region55: #{fuse_stage_forward.1} parent=43 // pred_region
          %333 = dma.done [#allocation6], 2048
        $region56: #{fuse_stage_forward.1} parent=43 // pred_fallthru
          _
        // Predicated region
        $region57: #{fuse_stage_forward.1} parent=43 // pred_check
          %p334 = pneg %p117
        $region58: #{fuse_stage_forward.1} parent=43 // pred_check_branch
          %336 = sbr.rel (%p334) target = $region60
        $region59: #{fuse_stage_forward.1} parent=43 // pred_region
          %338 = dma.done [#allocation9], 16
        $region60: #{fuse_stage_forward.1} parent=43 // pred_fallthru
          _
        // Predicated region
        $region61: #{fuse_stage_forward.1} parent=43 // pred_check
          %p339 = pneg %p138
        $region62: #{fuse_stage_forward.1} parent=43 // pred_check_branch
          %341 = sbr.rel (%p339) target = $region64
        $region63: #{fuse_stage_forward.1} parent=43 // pred_region
          %343 = dma.done [#allocation9], 2048
        $region64: #{fuse_stage_forward.1} parent=43 // pred_fallthru
          _
        // Predicated region
        $region65: #{fuse_stage_forward.1} parent=43 // pred_check
          %p344 = pneg %p159
        $region66: #{fuse_stage_forward.1} parent=43 // pred_check_branch
          %346 = sbr.rel (%p344) target = $region68
        $region67: #{fuse_stage_forward.1} parent=43 // pred_region
          %348 = dma.done [#allocation12], 16
        $region68: #{fuse_stage_forward.1} parent=43 // pred_fallthru
          _
        %s349 = sand.u32 %s36, 1
        %s350 = scalar_lea.sflag [#allocation3], %s349
        %s351 = sand.u32 %s36, 1
        %s352 = smul.addr %s351, 1024
        %s353 = scalar_lea.vmem [#allocation2], %s352
        %p354 = pneg %p49
        %p355 = pneg %p46
        %s356 = sand.u32 %s28, 1
        %s357 = scalar_lea.sflag [#allocation6], %s356
        %s358 = sand.u32 %s62, 1
        %s359 = smul.addr %s358, 256
        %s360 = scalar_lea.vmem [#allocation5], %s359
        %p361 = pneg %p75
        %p362 = pneg %p72
        %p363 = pneg %p96
        %p364 = pneg %p93
        %p365 = pneg %p117
        %p366 = pneg %p114
        %p367 = pneg %p138
        %p368 = pneg %p135
        %p369 = pneg %p159
        %p370 = pneg %p156
        %p371 = pneg %p185
        %p372 = pneg %p182
        %s373 = sand.u32 %s172, 1
        %s374 = scalar_lea.sflag [#allocation4], %s373
        %s375 = sand.u32 %s172, 1
        %s376 = smul.addr %s375, 1024
        %s377 = scalar_lea.vmem [#allocation13], %s376
        %s378 = smul.u32 8, %s28
        %s379 = smul.u32 8, %s28
        %s380 = smul.u32 8, %s28
        %v381 = vld [vmem:[#allocation7] sm:$0xf]
        %v382 = vld [vmem:[#allocation7 + $0x4] sm:$0xf]
        %v383 = vld [vmem:[#allocation7 + $0x8] sm:$0xf]
        %v384 = vld [vmem:[#allocation7 + $0xc] sm:$0xf]
        %v385 = vld [vmem:[#allocation7 + $0x10] sm:$0xf]
        %v386 = vld [vmem:[#allocation7 + $0x14] sm:$0xf]
        %v387 = vld [vmem:[#allocation7 + $0x18] sm:$0xf]
        %v388 = vld [vmem:[#allocation7 + $0x1c] sm:$0xf]
        %v389 = vld [vmem:[#allocation7 + $0x20] sm:$0xf]
        %v390 = vld [vmem:[#allocation7 + $0x24] sm:$0xf]
        %v391 = vld [vmem:[#allocation7 + $0x28] sm:$0xf]
        %v392 = vld [vmem:[#allocation7 + $0x2c] sm:$0xf]
        %v393 = vld [vmem:[#allocation7 + $0x30] sm:$0xf]
        %v394 = vld [vmem:[#allocation7 + $0x34] sm:$0xf]
        %v395 = vld [vmem:[#allocation7 + $0x38] sm:$0xf]
        %v396 = vld [vmem:[#allocation7 + $0x3c] sm:$0xf]
        %v397 = vld [vmem:[#allocation7 + $0x40] sm:$0xf]
        %v398 = vld [vmem:[#allocation7 + $0x44] sm:$0xf]
        %v399 = vld [vmem:[#allocation7 + $0x48] sm:$0xf]
        %v400 = vld [vmem:[#allocation7 + $0x4c] sm:$0xf]
        %v401 = vld [vmem:[#allocation7 + $0x50] sm:$0xf]
        %v402 = vld [vmem:[#allocation7 + $0x54] sm:$0xf]
        %v403 = vld [vmem:[#allocation7 + $0x58] sm:$0xf]
        %v404 = vld [vmem:[#allocation7 + $0x5c] sm:$0xf]
        %v405 = vld [vmem:[#allocation7 + $0x60] sm:$0xf]
        %v406 = vld [vmem:[#allocation7 + $0x64] sm:$0xf]
        %v407 = vld [vmem:[#allocation7 + $0x68] sm:$0xf]
        %v408 = vld [vmem:[#allocation7 + $0x6c] sm:$0xf]
        %v409 = vld [vmem:[#allocation7 + $0x70] sm:$0xf]
        %v410 = vld [vmem:[#allocation7 + $0x74] sm:$0xf]
        %v411 = vld [vmem:[#allocation7 + $0x78] sm:$0xf]
        %v412 = vld [vmem:[#allocation7 + $0x7c] sm:$0xf]
        %v413 = vld [vmem:[#allocation10] sm:$0xf]
        %v414 = vld [vmem:[#allocation10 + $0x4] sm:$0xf]
        %v415 = vld [vmem:[#allocation10 + $0x8] sm:$0xf]
        %v416 = vld [vmem:[#allocation10 + $0xc] sm:$0xf]
        %v417 = vld [vmem:[#allocation10 + $0x10] sm:$0xf]
        %v418 = vld [vmem:[#allocation10 + $0x14] sm:$0xf]
        %v419 = vld [vmem:[#allocation10 + $0x18] sm:$0xf]
        %v420 = vld [vmem:[#allocation10 + $0x1c] sm:$0xf]
        %v421 = vld [vmem:[#allocation10 + $0x20] sm:$0xf]
        %v422 = vld [vmem:[#allocation10 + $0x24] sm:$0xf]
        %v423 = vld [vmem:[#allocation10 + $0x28] sm:$0xf]
        %v424 = vld [vmem:[#allocation10 + $0x2c] sm:$0xf]
        %v425 = vld [vmem:[#allocation10 + $0x30] sm:$0xf]
        %v426 = vld [vmem:[#allocation10 + $0x34] sm:$0xf]
        %v427 = vld [vmem:[#allocation10 + $0x38] sm:$0xf]
        %v428 = vld [vmem:[#allocation10 + $0x3c] sm:$0xf]
        %v429 = vld [vmem:[#allocation10 + $0x40] sm:$0xf]
        %v430 = vld [vmem:[#allocation10 + $0x44] sm:$0xf]
        %v431 = vld [vmem:[#allocation10 + $0x48] sm:$0xf]
        %v432 = vld [vmem:[#allocation10 + $0x4c] sm:$0xf]
        %v433 = vld [vmem:[#allocation10 + $0x50] sm:$0xf]
        %v434 = vld [vmem:[#allocation10 + $0x54] sm:$0xf]
        %v435 = vld [vmem:[#allocation10 + $0x58] sm:$0xf]
        %v436 = vld [vmem:[#allocation10 + $0x5c] sm:$0xf]
        %v437 = vld [vmem:[#allocation10 + $0x60] sm:$0xf]
        %v438 = vld [vmem:[#allocation10 + $0x64] sm:$0xf]
        %v439 = vld [vmem:[#allocation10 + $0x68] sm:$0xf]
        %v440 = vld [vmem:[#allocation10 + $0x6c] sm:$0xf]
        %v441 = vld [vmem:[#allocation10 + $0x70] sm:$0xf]
        %v442 = vld [vmem:[#allocation10 + $0x74] sm:$0xf]
        %v443 = vld [vmem:[#allocation10 + $0x78] sm:$0xf]
        %v444 = vld [vmem:[#allocation10 + $0x7c] sm:$0xf]
        %v445 = vld [vmem:[%s323] sm:$0xff]
        %v446 = vld [vmem:[%s323 + $0x8] sm:$0xff]
        %v447 = vld [vmem:[%s323 + $0x10] sm:$0xff]
        %v448 = vld [vmem:[%s323 + $0x18] sm:$0xff]
        %v449 = vld [vmem:[%s323 + $0x20] sm:$0xff]
        %v450 = vld [vmem:[%s323 + $0x28] sm:$0xff]
        %v451 = vld [vmem:[%s323 + $0x30] sm:$0xff]
        %v452 = vld [vmem:[%s323 + $0x38] sm:$0xff]
        %v453 = vld [vmem:[%s323 + $0x40] sm:$0xff]
        %v454 = vld [vmem:[%s323 + $0x48] sm:$0xff]
        %v455 = vld [vmem:[%s323 + $0x50] sm:$0xff]
        %v456 = vld [vmem:[%s323 + $0x58] sm:$0xff]
        %v457 = vld [vmem:[%s323 + $0x60] sm:$0xff]
        %v458 = vld [vmem:[%s323 + $0x68] sm:$0xff]
        %v459 = vld [vmem:[%s323 + $0x70] sm:$0xff]
        %v460 = vld [vmem:[%s323 + $0x78] sm:$0xff]
        %v461 = vld [vmem:[%s323 + $0x80] sm:$0xff]
        %v462 = vld [vmem:[%s323 + $0x88] sm:$0xff]
        %v463 = vld [vmem:[%s323 + $0x90] sm:$0xff]
        %v464 = vld [vmem:[%s323 + $0x98] sm:$0xff]
        %v465 = vld [vmem:[%s323 + $0xa0] sm:$0xff]
        %v466 = vld [vmem:[%s323 + $0xa8] sm:$0xff]
        %v467 = vld [vmem:[%s323 + $0xb0] sm:$0xff]
        %v468 = vld [vmem:[%s323 + $0xb8] sm:$0xff]
        %v469 = vld [vmem:[%s323 + $0xc0] sm:$0xff]
        %v470 = vld [vmem:[%s323 + $0xc8] sm:$0xff]
        %v471 = vld [vmem:[%s323 + $0xd0] sm:$0xff]
        %v472 = vld [vmem:[%s323 + $0xd8] sm:$0xff]
        %v473 = vld [vmem:[%s323 + $0xe0] sm:$0xff]
        %v474 = vld [vmem:[%s323 + $0xe8] sm:$0xff]
        %v475 = vld [vmem:[%s323 + $0xf0] sm:$0xff]
        %v476 = vld [vmem:[%s323 + $0xf8] sm:$0xff]
        %v477 = vpack.c.bf16 %v447, %v445
        %v478 = vpack.c.bf16 %v448, %v446
        %v479 = vpack.c.bf16 %v451, %v449
        %v480 = vpack.c.bf16 %v452, %v450
        %v481 = vpack.c.bf16 %v455, %v453
        %v482 = vpack.c.bf16 %v456, %v454
        %v483 = vpack.c.bf16 %v459, %v457
        %v484 = vpack.c.bf16 %v460, %v458
        %v485 = vpack.c.bf16 %v463, %v461
        %v486 = vpack.c.bf16 %v464, %v462
        %v487 = vpack.c.bf16 %v467, %v465
        %v488 = vpack.c.bf16 %v468, %v466
        %v489 = vpack.c.bf16 %v471, %v469
        %v490 = vpack.c.bf16 %v472, %v470
        %v491 = vpack.c.bf16 %v475, %v473
        %v492 = vpack.c.bf16 %v476, %v474
        %v493 = vld [vmem:[#allocation11] sm:$0x1]
        %v495 = vperm.slane %v493, 0
        %v529 = vunpack.c.l.b16 %v413
        %v530 = vunpack.c.l.b16 %v414
        %v531 = vunpack.c.l.b16 %v415
        %v532 = vunpack.c.l.b16 %v416
        %v533 = vunpack.c.l.b16 %v417
        %v534 = vunpack.c.l.b16 %v418
        %v535 = vunpack.c.l.b16 %v419
        %v536 = vunpack.c.l.b16 %v420
        %v537 = vunpack.c.l.b16 %v421
        %v538 = vunpack.c.l.b16 %v422
        %v539 = vunpack.c.l.b16 %v423
        %v540 = vunpack.c.l.b16 %v424
        %v541 = vunpack.c.l.b16 %v425
        %v542 = vunpack.c.l.b16 %v426
        %v543 = vunpack.c.l.b16 %v427
        %v544 = vunpack.c.l.b16 %v428
        %v545 = vunpack.c.l.b16 %v429
        %v546 = vunpack.c.l.b16 %v430
        %v547 = vunpack.c.l.b16 %v431
        %v548 = vunpack.c.l.b16 %v432
        %v549 = vunpack.c.l.b16 %v433
        %v550 = vunpack.c.l.b16 %v434
        %v551 = vunpack.c.l.b16 %v435
        %v552 = vunpack.c.l.b16 %v436
        %v553 = vunpack.c.l.b16 %v437
        %v554 = vunpack.c.l.b16 %v438
        %v555 = vunpack.c.l.b16 %v439
        %v556 = vunpack.c.l.b16 %v440
        %v557 = vunpack.c.l.b16 %v441
        %v558 = vunpack.c.l.b16 %v442
        %v559 = vunpack.c.l.b16 %v443
        %v560 = vunpack.c.l.b16 %v444
        %v561 = vpack.c.b16 %v530, %v529
        %v562 = vpack.c.b16 %v532, %v531
        %v563 = vpack.c.b16 %v534, %v533
        %v564 = vpack.c.b16 %v536, %v535
        %v565 = vpack.c.b16 %v538, %v537
        %v566 = vpack.c.b16 %v540, %v539
        %v567 = vpack.c.b16 %v542, %v541
        %v568 = vpack.c.b16 %v544, %v543
        %v569 = vpack.c.b16 %v546, %v545
        %v570 = vpack.c.b16 %v548, %v547
        %v571 = vpack.c.b16 %v550, %v549
        %v572 = vpack.c.b16 %v552, %v551
        %v573 = vpack.c.b16 %v554, %v553
        %v574 = vpack.c.b16 %v556, %v555
        %v575 = vpack.c.b16 %v558, %v557
        %v576 = vpack.c.b16 %v560, %v559
        %593 = vmatpush.bf16.msra.mxu0 %v568
        %594 = vmatpush.bf16.msra.mxu0 %v567
        %595 = vmatpush.bf16.msra.mxu0 %v566
        %596 = vmatpush.bf16.msra.mxu0 %v565
        %597 = vmatpush.bf16.msra.mxu0 %v564
        %598 = vmatpush.bf16.msra.mxu0 %v563
        %599 = vmatpush.bf16.msra.mxu0 %v562
        %600 = vmatpush.bf16.msra.mxu0 %v561
        %601 = vmatmul.bf16.gmra.mxu0 %v477
        %v602 = vpop.f32.mrf.mxu0
        %v603 = vadd.f32 %v495, %v602
        %v604 = vpop.f32.mrf.mxu0
        %v605 = vadd.f32 %v495, %v604
        %606 = vmatmul.bf16.gmra.mxu0 %v479
        %v607 = vpop.f32.mrf.mxu0
        %v608 = vadd.f32 %v495, %v607
        %v609 = vpop.f32.mrf.mxu0
        %v610 = vadd.f32 %v495, %v609
        %611 = vmatmul.bf16.gmra.mxu0 %v481
        %v612 = vpop.f32.mrf.mxu0
        %v613 = vadd.f32 %v495, %v612
        %v614 = vpop.f32.mrf.mxu0
        %v615 = vadd.f32 %v495, %v614
        %616 = vmatmul.bf16.gmra.mxu0 %v483
        %v617 = vpop.f32.mrf.mxu0
        %v618 = vadd.f32 %v495, %v617
        %v619 = vpop.f32.mrf.mxu0
        %v620 = vadd.f32 %v495, %v619
        %621 = vmatmul.bf16.gmra.mxu0 %v485
        %v622 = vpop.f32.mrf.mxu0
        %v623 = vadd.f32 %v495, %v622
        %v624 = vpop.f32.mrf.mxu0
        %v625 = vadd.f32 %v495, %v624
        %626 = vmatmul.bf16.gmra.mxu0 %v487
        %v627 = vpop.f32.mrf.mxu0
        %v628 = vadd.f32 %v495, %v627
        %v629 = vpop.f32.mrf.mxu0
        %v630 = vadd.f32 %v495, %v629
        %631 = vmatmul.bf16.gmra.mxu0 %v489
        %v632 = vpop.f32.mrf.mxu0
        %v633 = vadd.f32 %v495, %v632
        %v634 = vpop.f32.mrf.mxu0
        %v635 = vadd.f32 %v495, %v634
        %636 = vmatmul.bf16.gmra.mxu0 %v491
        %v637 = vpop.f32.mrf.mxu0
        %v638 = vadd.f32 %v495, %v637
        %v639 = vpop.f32.mrf.mxu0
        %v640 = vadd.f32 %v495, %v639
        %641 = vdwg.mxu0
        %642 = vmatpush.bf16.msra.mxu0 %v576
        %643 = vmatpush.bf16.msra.mxu0 %v575
        %644 = vmatpush.bf16.msra.mxu0 %v574
        %645 = vmatpush.bf16.msra.mxu0 %v573
        %646 = vmatpush.bf16.msra.mxu0 %v572
        %647 = vmatpush.bf16.msra.mxu0 %v571
        %648 = vmatpush.bf16.msra.mxu0 %v570
        %649 = vmatpush.bf16.msra.mxu0 %v569
        %650 = vmatmul.bf16.gmra.mxu0 %v478
        %v651 = vpop.f32.mrf.mxu0
        %v652 = vadd.f32 %v603, %v651
        %v653 = vpop.f32.mrf.mxu0
        %v654 = vadd.f32 %v605, %v653
        %655 = vmatmul.bf16.gmra.mxu0 %v480
        %v656 = vpop.f32.mrf.mxu0
        %v657 = vadd.f32 %v608, %v656
        %v658 = vpop.f32.mrf.mxu0
        %v659 = vadd.f32 %v610, %v658
        %660 = vmatmul.bf16.gmra.mxu0 %v482
        %v661 = vpop.f32.mrf.mxu0
        %v662 = vadd.f32 %v613, %v661
        %v663 = vpop.f32.mrf.mxu0
        %v664 = vadd.f32 %v615, %v663
        %665 = vmatmul.bf16.gmra.mxu0 %v484
        %v666 = vpop.f32.mrf.mxu0
        %v667 = vadd.f32 %v618, %v666
        %v668 = vpop.f32.mrf.mxu0
        %v669 = vadd.f32 %v620, %v668
        %670 = vmatmul.bf16.gmra.mxu0 %v486
        %v671 = vpop.f32.mrf.mxu0
        %v672 = vadd.f32 %v623, %v671
        %v673 = vpop.f32.mrf.mxu0
        %v674 = vadd.f32 %v625, %v673
        %675 = vmatmul.bf16.gmra.mxu0 %v488
        %v676 = vpop.f32.mrf.mxu0
        %v677 = vadd.f32 %v628, %v676
        %v678 = vpop.f32.mrf.mxu0
        %v679 = vadd.f32 %v630, %v678
        %680 = vmatmul.bf16.gmra.mxu0 %v490
        %v681 = vpop.f32.mrf.mxu0
        %v682 = vadd.f32 %v633, %v681
        %v683 = vpop.f32.mrf.mxu0
        %v684 = vadd.f32 %v635, %v683
        %685 = vmatmul.bf16.gmra.mxu0 %v492
        %v686 = vpop.f32.mrf.mxu0
        %v687 = vadd.f32 %v638, %v686
        %v688 = vpop.f32.mrf.mxu0
        %v689 = vadd.f32 %v640, %v688
        %690 = vdwg.mxu0
        %v691 = vmin.f32 %v652, 40.0
        %v692 = vmin.f32 %v654, 40.0
        %v693 = vmin.f32 %v657, 40.0
        %v694 = vmin.f32 %v659, 40.0
        %v695 = vmin.f32 %v662, 40.0
        %v696 = vmin.f32 %v664, 40.0
        %v697 = vmin.f32 %v667, 40.0
        %v698 = vmin.f32 %v669, 40.0
        %v699 = vmin.f32 %v672, 40.0
        %v700 = vmin.f32 %v674, 40.0
        %v701 = vmin.f32 %v677, 40.0
        %v702 = vmin.f32 %v679, 40.0
        %v703 = vmin.f32 %v682, 40.0
        %v704 = vmin.f32 %v684, 40.0
        %v705 = vmin.f32 %v687, 40.0
        %v706 = vmin.f32 %v689, 40.0
        %v707 = vmul.f32 %v691, 1.442695
        %v708 = vpow.pop %v707
        %v709 = vmul.f32 %v692, 1.442695
        %v710 = vpow.pop %v709
        %v711 = vmul.f32 %v693, 1.442695
        %v712 = vpow.pop %v711
        %v713 = vmul.f32 %v694, 1.442695
        %v714 = vpow.pop %v713
        %v715 = vmul.f32 %v695, 1.442695
        %v716 = vpow.pop %v715
        %v717 = vmul.f32 %v696, 1.442695
        %v718 = vpow.pop %v717
        %v719 = vmul.f32 %v697, 1.442695
        %v720 = vpow.pop %v719
        %v721 = vmul.f32 %v698, 1.442695
        %v722 = vpow.pop %v721
        %v723 = vmul.f32 %v699, 1.442695
        %v724 = vpow.pop %v723
        %v725 = vmul.f32 %v700, 1.442695
        %v726 = vpow.pop %v725
        %v727 = vmul.f32 %v701, 1.442695
        %v728 = vpow.pop %v727
        %v729 = vmul.f32 %v702, 1.442695
        %v730 = vpow.pop %v729
        %v731 = vmul.f32 %v703, 1.442695
        %v732 = vpow.pop %v731
        %v733 = vmul.f32 %v704, 1.442695
        %v734 = vpow.pop %v733
        %v735 = vmul.f32 %v705, 1.442695
        %v736 = vpow.pop %v735
        %v737 = vmul.f32 %v706, 1.442695
        %v738 = vpow.pop %v737
        %v739 = vadd.f32 %v708, 1.0
        %v740 = vadd.f32 %v710, 1.0
        %v741 = vadd.f32 %v712, 1.0
        %v742 = vadd.f32 %v714, 1.0
        %v743 = vadd.f32 %v716, 1.0
        %v744 = vadd.f32 %v718, 1.0
        %v745 = vadd.f32 %v720, 1.0
        %v746 = vadd.f32 %v722, 1.0
        %v747 = vadd.f32 %v724, 1.0
        %v748 = vadd.f32 %v726, 1.0
        %v749 = vadd.f32 %v728, 1.0
        %v750 = vadd.f32 %v730, 1.0
        %v751 = vadd.f32 %v732, 1.0
        %v752 = vadd.f32 %v734, 1.0
        %v753 = vadd.f32 %v736, 1.0
        %v754 = vadd.f32 %v738, 1.0
        %v755 = vmul.f32 %v739, %v739
        %v756 = vmul.f32 %v740, %v740
        %v757 = vmul.f32 %v741, %v741
        %v758 = vmul.f32 %v742, %v742
        %v759 = vmul.f32 %v743, %v743
        %v760 = vmul.f32 %v744, %v744
        %v761 = vmul.f32 %v745, %v745
        %v762 = vmul.f32 %v746, %v746
        %v763 = vmul.f32 %v747, %v747
        %v764 = vmul.f32 %v748, %v748
        %v765 = vmul.f32 %v749, %v749
        %v766 = vmul.f32 %v750, %v750
        %v767 = vmul.f32 %v751, %v751
        %v768 = vmul.f32 %v752, %v752
        %v769 = vmul.f32 %v753, %v753
        %v770 = vmul.f32 %v754, %v754
        %v771 = vadd.f32 %v755, 1.0
        %v772 = vadd.f32 %v756, 1.0
        %v773 = vadd.f32 %v757, 1.0
        %v774 = vadd.f32 %v758, 1.0
        %v775 = vadd.f32 %v759, 1.0
        %v776 = vadd.f32 %v760, 1.0
        %v777 = vadd.f32 %v761, 1.0
        %v778 = vadd.f32 %v762, 1.0
        %v779 = vadd.f32 %v763, 1.0
        %v780 = vadd.f32 %v764, 1.0
        %v781 = vadd.f32 %v765, 1.0
        %v782 = vadd.f32 %v766, 1.0
        %v783 = vadd.f32 %v767, 1.0
        %v784 = vadd.f32 %v768, 1.0
        %v785 = vadd.f32 %v769, 1.0
        %v786 = vadd.f32 %v770, 1.0
        %v787 = vmul.f32 %v652, 2.0
        %v788 = vmul.f32 %v654, 2.0
        %v789 = vmul.f32 %v657, 2.0
        %v790 = vmul.f32 %v659, 2.0
        %v791 = vmul.f32 %v662, 2.0
        %v792 = vmul.f32 %v664, 2.0
        %v793 = vmul.f32 %v667, 2.0
        %v794 = vmul.f32 %v669, 2.0
        %v795 = vmul.f32 %v672, 2.0
        %v796 = vmul.f32 %v674, 2.0
        %v797 = vmul.f32 %v677, 2.0
        %v798 = vmul.f32 %v679, 2.0
        %v799 = vmul.f32 %v682, 2.0
        %v800 = vmul.f32 %v684, 2.0
        %v801 = vmul.f32 %v687, 2.0
        %v802 = vmul.f32 %v689, 2.0
        %v803 = vrcp.pop %v771
        %v804 = vmul.f32 %v771, %v803
        %v805 = vsub.f32 1.0, %v804
        %v806 = vmul.f32 %v803, %v805
        %v807 = vadd.f32 %v803, %v806
        %vm808 = vweird.f32 %v771
        %vm809 = vweird.f32 %v803
        %vm810 = vmor %vm808, %vm809
        %v811 = vsel %vm810, %v803, %v807
        %v812 = vand.u32 2147483647, %v771
        %vm813 = vcmp.eq.f32.partialorder %v812, 8.507059e+37
        %v814 = vand.u32 %v771, 2147483648
        %v815 = vor.u32 1.1754944e-38, %v814
        %v816 = vsel %vm813, %v815, %v811
        %v817 = vrcp.pop %v772
        %v818 = vmul.f32 %v772, %v817
        %v819 = vsub.f32 1.0, %v818
        %v820 = vmul.f32 %v817, %v819
        %v821 = vadd.f32 %v817, %v820
        %vm822 = vweird.f32 %v772
        %vm823 = vweird.f32 %v817
        %vm824 = vmor %vm822, %vm823
        %v825 = vsel %vm824, %v817, %v821
        %v826 = vand.u32 2147483647, %v772
        %vm827 = vcmp.eq.f32.partialorder %v826, 8.507059e+37
        %v828 = vand.u32 %v772, 2147483648
        %v829 = vor.u32 1.1754944e-38, %v828
        %v830 = vsel %vm827, %v829, %v825
        %v831 = vrcp.pop %v773
        %v832 = vmul.f32 %v773, %v831
        %v833 = vsub.f32 1.0, %v832
        %v834 = vmul.f32 %v831, %v833
        %v835 = vadd.f32 %v831, %v834
        %vm836 = vweird.f32 %v773
        %vm837 = vweird.f32 %v831
        %vm838 = vmor %vm836, %vm837
        %v839 = vsel %vm838, %v831, %v835
        %v840 = vand.u32 2147483647, %v773
        %vm841 = vcmp.eq.f32.partialorder %v840, 8.507059e+37
        %v842 = vand.u32 %v773, 2147483648
        %v843 = vor.u32 1.1754944e-38, %v842
        %v844 = vsel %vm841, %v843, %v839
        %v845 = vrcp.pop %v774
        %v846 = vmul.f32 %v774, %v845
        %v847 = vsub.f32 1.0, %v846
        %v848 = vmul.f32 %v845, %v847
        %v849 = vadd.f32 %v845, %v848
        %vm850 = vweird.f32 %v774
        %vm851 = vweird.f32 %v845
        %vm852 = vmor %vm850, %vm851
        %v853 = vsel %vm852, %v845, %v849
        %v854 = vand.u32 2147483647, %v774
        %vm855 = vcmp.eq.f32.partialorder %v854, 8.507059e+37
        %v856 = vand.u32 %v774, 2147483648
        %v857 = vor.u32 1.1754944e-38, %v856
        %v858 = vsel %vm855, %v857, %v853
        %v859 = vrcp.pop %v775
        %v860 = vmul.f32 %v775, %v859
        %v861 = vsub.f32 1.0, %v860
        %v862 = vmul.f32 %v859, %v861
        %v863 = vadd.f32 %v859, %v862
        %vm864 = vweird.f32 %v775
        %vm865 = vweird.f32 %v859
        %vm866 = vmor %vm864, %vm865
        %v867 = vsel %vm866, %v859, %v863
        %v868 = vand.u32 2147483647, %v775
        %vm869 = vcmp.eq.f32.partialorder %v868, 8.507059e+37
        %v870 = vand.u32 %v775, 2147483648
        %v871 = vor.u32 1.1754944e-38, %v870
        %v872 = vsel %vm869, %v871, %v867
        %v873 = vrcp.pop %v776
        %v874 = vmul.f32 %v776, %v873
        %v875 = vsub.f32 1.0, %v874
        %v876 = vmul.f32 %v873, %v875
        %v877 = vadd.f32 %v873, %v876
        %vm878 = vweird.f32 %v776
        %vm879 = vweird.f32 %v873
        %vm880 = vmor %vm878, %vm879
        %v881 = vsel %vm880, %v873, %v877
        %v882 = vand.u32 2147483647, %v776
        %vm883 = vcmp.eq.f32.partialorder %v882, 8.507059e+37
        %v884 = vand.u32 %v776, 2147483648
        %v885 = vor.u32 1.1754944e-38, %v884
        %v886 = vsel %vm883, %v885, %v881
        %v887 = vrcp.pop %v777
        %v888 = vmul.f32 %v777, %v887
        %v889 = vsub.f32 1.0, %v888
        %v890 = vmul.f32 %v887, %v889
        %v891 = vadd.f32 %v887, %v890
        %vm892 = vweird.f32 %v777
        %vm893 = vweird.f32 %v887
        %vm894 = vmor %vm892, %vm893
        %v895 = vsel %vm894, %v887, %v891
        %v896 = vand.u32 2147483647, %v777
        %vm897 = vcmp.eq.f32.partialorder %v896, 8.507059e+37
        %v898 = vand.u32 %v777, 2147483648
        %v899 = vor.u32 1.1754944e-38, %v898
        %v900 = vsel %vm897, %v899, %v895
        %v901 = vrcp.pop %v778
        %v902 = vmul.f32 %v778, %v901
        %v903 = vsub.f32 1.0, %v902
        %v904 = vmul.f32 %v901, %v903
        %v905 = vadd.f32 %v901, %v904
        %vm906 = vweird.f32 %v778
        %vm907 = vweird.f32 %v901
        %vm908 = vmor %vm906, %vm907
        %v909 = vsel %vm908, %v901, %v905
        %v910 = vand.u32 2147483647, %v778
        %vm911 = vcmp.eq.f32.partialorder %v910, 8.507059e+37
        %v912 = vand.u32 %v778, 2147483648
        %v913 = vor.u32 1.1754944e-38, %v912
        %v914 = vsel %vm911, %v913, %v909
        %v915 = vrcp.pop %v779
        %v916 = vmul.f32 %v779, %v915
        %v917 = vsub.f32 1.0, %v916
        %v918 = vmul.f32 %v915, %v917
        %v919 = vadd.f32 %v915, %v918
        %vm920 = vweird.f32 %v779
        %vm921 = vweird.f32 %v915
        %vm922 = vmor %vm920, %vm921
        %v923 = vsel %vm922, %v915, %v919
        %v924 = vand.u32 2147483647, %v779
        %vm925 = vcmp.eq.f32.partialorder %v924, 8.507059e+37
        %v926 = vand.u32 %v779, 2147483648
        %v927 = vor.u32 1.1754944e-38, %v926
        %v928 = vsel %vm925, %v927, %v923
        %v929 = vrcp.pop %v780
        %v930 = vmul.f32 %v780, %v929
        %v931 = vsub.f32 1.0, %v930
        %v932 = vmul.f32 %v929, %v931
        %v933 = vadd.f32 %v929, %v932
        %vm934 = vweird.f32 %v780
        %vm935 = vweird.f32 %v929
        %vm936 = vmor %vm934, %vm935
        %v937 = vsel %vm936, %v929, %v933
        %v938 = vand.u32 2147483647, %v780
        %vm939 = vcmp.eq.f32.partialorder %v938, 8.507059e+37
        %v940 = vand.u32 %v780, 2147483648
        %v941 = vor.u32 1.1754944e-38, %v940
        %v942 = vsel %vm939, %v941, %v937
        %v943 = vrcp.pop %v781
        %v944 = vmul.f32 %v781, %v943
        %v945 = vsub.f32 1.0, %v944
        %v946 = vmul.f32 %v943, %v945
        %v947 = vadd.f32 %v943, %v946
        %vm948 = vweird.f32 %v781
        %vm949 = vweird.f32 %v943
        %vm950 = vmor %vm948, %vm949
        %v951 = vsel %vm950, %v943, %v947
        %v952 = vand.u32 2147483647, %v781
        %vm953 = vcmp.eq.f32.partialorder %v952, 8.507059e+37
        %v954 = vand.u32 %v781, 2147483648
        %v955 = vor.u32 1.1754944e-38, %v954
        %v956 = vsel %vm953, %v955, %v951
        %v957 = vrcp.pop %v782
        %v958 = vmul.f32 %v782, %v957
        %v959 = vsub.f32 1.0, %v958
        %v960 = vmul.f32 %v957, %v959
        %v961 = vadd.f32 %v957, %v960
        %vm962 = vweird.f32 %v782
        %vm963 = vweird.f32 %v957
        %vm964 = vmor %vm962, %vm963
        %v965 = vsel %vm964, %v957, %v961
        %v966 = vand.u32 2147483647, %v782
        %vm967 = vcmp.eq.f32.partialorder %v966, 8.507059e+37
        %v968 = vand.u32 %v782, 2147483648
        %v969 = vor.u32 1.1754944e-38, %v968
        %v970 = vsel %vm967, %v969, %v965
        %v971 = vrcp.pop %v783
        %v972 = vmul.f32 %v783, %v971
        %v973 = vsub.f32 1.0, %v972
        %v974 = vmul.f32 %v971, %v973
        %v975 = vadd.f32 %v971, %v974
        %vm976 = vweird.f32 %v783
        %vm977 = vweird.f32 %v971
        %vm978 = vmor %vm976, %vm977
        %v979 = vsel %vm978, %v971, %v975
        %v980 = vand.u32 2147483647, %v783
        %vm981 = vcmp.eq.f32.partialorder %v980, 8.507059e+37
        %v982 = vand.u32 %v783, 2147483648
        %v983 = vor.u32 1.1754944e-38, %v982
        %v984 = vsel %vm981, %v983, %v979
        %v985 = vrcp.pop %v784
        %v986 = vmul.f32 %v784, %v985
        %v987 = vsub.f32 1.0, %v986
        %v988 = vmul.f32 %v985, %v987
        %v989 = vadd.f32 %v985, %v988
        %vm990 = vweird.f32 %v784
        %vm991 = vweird.f32 %v985
        %vm992 = vmor %vm990, %vm991
        %v993 = vsel %vm992, %v985, %v989
        %v994 = vand.u32 2147483647, %v784
        %vm995 = vcmp.eq.f32.partialorder %v994, 8.507059e+37
        %v996 = vand.u32 %v784, 2147483648
        %v997 = vor.u32 1.1754944e-38, %v996
        %v998 = vsel %vm995, %v997, %v993
        %v999 = vrcp.pop %v785
        %v1000 = vmul.f32 %v785, %v999
        %v1001 = vsub.f32 1.0, %v1000
        %v1002 = vmul.f32 %v999, %v1001
        %v1003 = vadd.f32 %v999, %v1002
        %vm1004 = vweird.f32 %v785
        %vm1005 = vweird.f32 %v999
        %vm1006 = vmor %vm1004, %vm1005
        %v1007 = vsel %vm1006, %v999, %v1003
        %v1008 = vand.u32 2147483647, %v785
        %vm1009 = vcmp.eq.f32.partialorder %v1008, 8.507059e+37
        %v1010 = vand.u32 %v785, 2147483648
        %v1011 = vor.u32 1.1754944e-38, %v1010
        %v1012 = vsel %vm1009, %v1011, %v1007
        %v1013 = vrcp.pop %v786
        %v1014 = vmul.f32 %v786, %v1013
        %v1015 = vsub.f32 1.0, %v1014
        %v1016 = vmul.f32 %v1013, %v1015
        %v1017 = vadd.f32 %v1013, %v1016
        %vm1018 = vweird.f32 %v786
        %vm1019 = vweird.f32 %v1013
        %vm1020 = vmor %vm1018, %vm1019
        %v1021 = vsel %vm1020, %v1013, %v1017
        %v1022 = vand.u32 2147483647, %v786
        %vm1023 = vcmp.eq.f32.partialorder %v1022, 8.507059e+37
        %v1024 = vand.u32 %v786, 2147483648
        %v1025 = vor.u32 1.1754944e-38, %v1024
        %v1026 = vsel %vm1023, %v1025, %v1021
        %v1027 = vmul.f32 %v787, %v816
        %v1028 = vmul.f32 %v788, %v830
        %v1029 = vmul.f32 %v789, %v844
        %v1030 = vmul.f32 %v790, %v858
        %v1031 = vmul.f32 %v791, %v872
        %v1032 = vmul.f32 %v792, %v886
        %v1033 = vmul.f32 %v793, %v900
        %v1034 = vmul.f32 %v794, %v914
        %v1035 = vmul.f32 %v795, %v928
        %v1036 = vmul.f32 %v796, %v942
        %v1037 = vmul.f32 %v797, %v956
        %v1038 = vmul.f32 %v798, %v970
        %v1039 = vmul.f32 %v799, %v984
        %v1040 = vmul.f32 %v800, %v998
        %v1041 = vmul.f32 %v801, %v1012
        %v1042 = vmul.f32 %v802, %v1026
        %v1043 = vsub.f32 %v652, %v1027
        %v1044 = vsub.f32 %v654, %v1028
        %v1045 = vsub.f32 %v657, %v1029
        %v1046 = vsub.f32 %v659, %v1030
        %v1047 = vsub.f32 %v662, %v1031
        %v1048 = vsub.f32 %v664, %v1032
        %v1049 = vsub.f32 %v667, %v1033
        %v1050 = vsub.f32 %v669, %v1034
        %v1051 = vsub.f32 %v672, %v1035
        %v1052 = vsub.f32 %v674, %v1036
        %v1053 = vsub.f32 %v677, %v1037
        %v1054 = vsub.f32 %v679, %v1038
        %v1055 = vsub.f32 %v682, %v1039
        %v1056 = vsub.f32 %v684, %v1040
        %v1057 = vsub.f32 %v687, %v1041
        %v1058 = vsub.f32 %v689, %v1042
        %v1075 = vrot.slane %v1043, 1
        %v1076 = vrot.slane %v1043, 2
        %v1077 = vrot.slane %v1043, 3
        %v1078 = vrot.slane %v1043, 4
        %v1079 = vrot.slane %v1043, 5
        %v1080 = vrot.slane %v1043, 6
        %v1081 = vrot.slane %v1043, 7
        %v1082 = vrot.slane %v1044, 1
        %v1083 = vrot.slane %v1044, 2
        %v1084 = vrot.slane %v1044, 3
        %v1085 = vrot.slane %v1044, 4
        %v1086 = vrot.slane %v1044, 5
        %v1087 = vrot.slane %v1044, 6
        %v1088 = vrot.slane %v1044, 7
        %v1089 = vrot.slane %v1045, 1
        %v1090 = vrot.slane %v1045, 2
        %v1091 = vrot.slane %v1045, 3
        %v1092 = vrot.slane %v1045, 4
        %v1093 = vrot.slane %v1045, 5
        %v1094 = vrot.slane %v1045, 6
        %v1095 = vrot.slane %v1045, 7
        %v1096 = vrot.slane %v1046, 1
        %v1097 = vrot.slane %v1046, 2
        %v1098 = vrot.slane %v1046, 3
        %v1099 = vrot.slane %v1046, 4
        %v1100 = vrot.slane %v1046, 5
        %v1101 = vrot.slane %v1046, 6
        %v1102 = vrot.slane %v1046, 7
        %v1103 = vrot.slane %v1047, 1
        %v1104 = vrot.slane %v1047, 2
        %v1105 = vrot.slane %v1047, 3
        %v1106 = vrot.slane %v1047, 4
        %v1107 = vrot.slane %v1047, 5
        %v1108 = vrot.slane %v1047, 6
        %v1109 = vrot.slane %v1047, 7
        %v1110 = vrot.slane %v1048, 1
        %v1111 = vrot.slane %v1048, 2
        %v1112 = vrot.slane %v1048, 3
        %v1113 = vrot.slane %v1048, 4
        %v1114 = vrot.slane %v1048, 5
        %v1115 = vrot.slane %v1048, 6
        %v1116 = vrot.slane %v1048, 7
        %v1117 = vrot.slane %v1049, 1
        %v1118 = vrot.slane %v1049, 2
        %v1119 = vrot.slane %v1049, 3
        %v1120 = vrot.slane %v1049, 4
        %v1121 = vrot.slane %v1049, 5
        %v1122 = vrot.slane %v1049, 6
        %v1123 = vrot.slane %v1049, 7
        %v1124 = vrot.slane %v1050, 1
        %v1125 = vrot.slane %v1050, 2
        %v1126 = vrot.slane %v1050, 3
        %v1127 = vrot.slane %v1050, 4
        %v1128 = vrot.slane %v1050, 5
        %v1129 = vrot.slane %v1050, 6
        %v1130 = vrot.slane %v1050, 7
        %v1131 = vrot.slane %v1051, 1
        %v1132 = vrot.slane %v1051, 2
        %v1133 = vrot.slane %v1051, 3
        %v1134 = vrot.slane %v1051, 4
        %v1135 = vrot.slane %v1051, 5
        %v1136 = vrot.slane %v1051, 6
        %v1137 = vrot.slane %v1051, 7
        %v1138 = vrot.slane %v1052, 1
        %v1139 = vrot.slane %v1052, 2
        %v1140 = vrot.slane %v1052, 3
        %v1141 = vrot.slane %v1052, 4
        %v1142 = vrot.slane %v1052, 5
        %v1143 = vrot.slane %v1052, 6
        %v1144 = vrot.slane %v1052, 7
        %v1145 = vrot.slane %v1053, 1
        %v1146 = vrot.slane %v1053, 2
        %v1147 = vrot.slane %v1053, 3
        %v1148 = vrot.slane %v1053, 4
        %v1149 = vrot.slane %v1053, 5
        %v1150 = vrot.slane %v1053, 6
        %v1151 = vrot.slane %v1053, 7
        %v1152 = vrot.slane %v1054, 1
        %v1153 = vrot.slane %v1054, 2
        %v1154 = vrot.slane %v1054, 3
        %v1155 = vrot.slane %v1054, 4
        %v1156 = vrot.slane %v1054, 5
        %v1157 = vrot.slane %v1054, 6
        %v1158 = vrot.slane %v1054, 7
        %v1159 = vrot.slane %v1055, 1
        %v1160 = vrot.slane %v1055, 2
        %v1161 = vrot.slane %v1055, 3
        %v1162 = vrot.slane %v1055, 4
        %v1163 = vrot.slane %v1055, 5
        %v1164 = vrot.slane %v1055, 6
        %v1165 = vrot.slane %v1055, 7
        %v1166 = vrot.slane %v1056, 1
        %v1167 = vrot.slane %v1056, 2
        %v1168 = vrot.slane %v1056, 3
        %v1169 = vrot.slane %v1056, 4
        %v1170 = vrot.slane %v1056, 5
        %v1171 = vrot.slane %v1056, 6
        %v1172 = vrot.slane %v1056, 7
        %v1173 = vrot.slane %v1057, 1
        %v1174 = vrot.slane %v1057, 2
        %v1175 = vrot.slane %v1057, 3
        %v1176 = vrot.slane %v1057, 4
        %v1177 = vrot.slane %v1057, 5
        %v1178 = vrot.slane %v1057, 6
        %v1179 = vrot.slane %v1057, 7
        %v1180 = vrot.slane %v1058, 1
        %v1181 = vrot.slane %v1058, 2
        %v1182 = vrot.slane %v1058, 3
        %v1183 = vrot.slane %v1058, 4
        %v1184 = vrot.slane %v1058, 5
        %v1185 = vrot.slane %v1058, 6
        %v1186 = vrot.slane %v1058, 7
        %v1187 = vperm.slane %v1043, 0
        %v1188 = vperm.slane %v1075, 0
        %v1189 = vperm.slane %v1076, 0
        %v1190 = vperm.slane %v1077, 0
        %v1191 = vperm.slane %v1078, 0
        %v1192 = vperm.slane %v1079, 0
        %v1193 = vperm.slane %v1080, 0
        %v1194 = vperm.slane %v1081, 0
        %v1195 = vperm.slane %v1044, 0
        %v1196 = vperm.slane %v1082, 0
        %v1197 = vperm.slane %v1083, 0
        %v1198 = vperm.slane %v1084, 0
        %v1199 = vperm.slane %v1085, 0
        %v1200 = vperm.slane %v1086, 0
        %v1201 = vperm.slane %v1087, 0
        %v1202 = vperm.slane %v1088, 0
        %v1203 = vperm.slane %v1045, 0
        %v1204 = vperm.slane %v1089, 0
        %v1205 = vperm.slane %v1090, 0
        %v1206 = vperm.slane %v1091, 0
        %v1207 = vperm.slane %v1092, 0
        %v1208 = vperm.slane %v1093, 0
        %v1209 = vperm.slane %v1094, 0
        %v1210 = vperm.slane %v1095, 0
        %v1211 = vperm.slane %v1046, 0
        %v1212 = vperm.slane %v1096, 0
        %v1213 = vperm.slane %v1097, 0
        %v1214 = vperm.slane %v1098, 0
        %v1215 = vperm.slane %v1099, 0
        %v1216 = vperm.slane %v1100, 0
        %v1217 = vperm.slane %v1101, 0
        %v1218 = vperm.slane %v1102, 0
        %v1219 = vperm.slane %v1047, 0
        %v1220 = vperm.slane %v1103, 0
        %v1221 = vperm.slane %v1104, 0
        %v1222 = vperm.slane %v1105, 0
        %v1223 = vperm.slane %v1106, 0
        %v1224 = vperm.slane %v1107, 0
        %v1225 = vperm.slane %v1108, 0
        %v1226 = vperm.slane %v1109, 0
        %v1227 = vperm.slane %v1048, 0
        %v1228 = vperm.slane %v1110, 0
        %v1229 = vperm.slane %v1111, 0
        %v1230 = vperm.slane %v1112, 0
        %v1231 = vperm.slane %v1113, 0
        %v1232 = vperm.slane %v1114, 0
        %v1233 = vperm.slane %v1115, 0
        %v1234 = vperm.slane %v1116, 0
        %v1235 = vperm.slane %v1049, 0
        %v1236 = vperm.slane %v1117, 0
        %v1237 = vperm.slane %v1118, 0
        %v1238 = vperm.slane %v1119, 0
        %v1239 = vperm.slane %v1120, 0
        %v1240 = vperm.slane %v1121, 0
        %v1241 = vperm.slane %v1122, 0
        %v1242 = vperm.slane %v1123, 0
        %v1243 = vperm.slane %v1050, 0
        %v1244 = vperm.slane %v1124, 0
        %v1245 = vperm.slane %v1125, 0
        %v1246 = vperm.slane %v1126, 0
        %v1247 = vperm.slane %v1127, 0
        %v1248 = vperm.slane %v1128, 0
        %v1249 = vperm.slane %v1129, 0
        %v1250 = vperm.slane %v1130, 0
        %v1251 = vperm.slane %v1051, 0
        %v1252 = vperm.slane %v1131, 0
        %v1253 = vperm.slane %v1132, 0
        %v1254 = vperm.slane %v1133, 0
        %v1255 = vperm.slane %v1134, 0
        %v1256 = vperm.slane %v1135, 0
        %v1257 = vperm.slane %v1136, 0
        %v1258 = vperm.slane %v1137, 0
        %v1259 = vperm.slane %v1052, 0
        %v1260 = vperm.slane %v1138, 0
        %v1261 = vperm.slane %v1139, 0
        %v1262 = vperm.slane %v1140, 0
        %v1263 = vperm.slane %v1141, 0
        %v1264 = vperm.slane %v1142, 0
        %v1265 = vperm.slane %v1143, 0
        %v1266 = vperm.slane %v1144, 0
        %v1267 = vperm.slane %v1053, 0
        %v1268 = vperm.slane %v1145, 0
        %v1269 = vperm.slane %v1146, 0
        %v1270 = vperm.slane %v1147, 0
        %v1271 = vperm.slane %v1148, 0
        %v1272 = vperm.slane %v1149, 0
        %v1273 = vperm.slane %v1150, 0
        %v1274 = vperm.slane %v1151, 0
        %v1275 = vperm.slane %v1054, 0
        %v1276 = vperm.slane %v1152, 0
        %v1277 = vperm.slane %v1153, 0
        %v1278 = vperm.slane %v1154, 0
        %v1279 = vperm.slane %v1155, 0
        %v1280 = vperm.slane %v1156, 0
        %v1281 = vperm.slane %v1157, 0
        %v1282 = vperm.slane %v1158, 0
        %v1283 = vperm.slane %v1055, 0
        %v1284 = vperm.slane %v1159, 0
        %v1285 = vperm.slane %v1160, 0
        %v1286 = vperm.slane %v1161, 0
        %v1287 = vperm.slane %v1162, 0
        %v1288 = vperm.slane %v1163, 0
        %v1289 = vperm.slane %v1164, 0
        %v1290 = vperm.slane %v1165, 0
        %v1291 = vperm.slane %v1056, 0
        %v1292 = vperm.slane %v1166, 0
        %v1293 = vperm.slane %v1167, 0
        %v1294 = vperm.slane %v1168, 0
        %v1295 = vperm.slane %v1169, 0
        %v1296 = vperm.slane %v1170, 0
        %v1297 = vperm.slane %v1171, 0
        %v1298 = vperm.slane %v1172, 0
        %v1299 = vperm.slane %v1057, 0
        %v1300 = vperm.slane %v1173, 0
        %v1301 = vperm.slane %v1174, 0
        %v1302 = vperm.slane %v1175, 0
        %v1303 = vperm.slane %v1176, 0
        %v1304 = vperm.slane %v1177, 0
        %v1305 = vperm.slane %v1178, 0
        %v1306 = vperm.slane %v1179, 0
        %v1307 = vperm.slane %v1058, 0
        %v1308 = vperm.slane %v1180, 0
        %v1309 = vperm.slane %v1181, 0
        %v1310 = vperm.slane %v1182, 0
        %v1311 = vperm.slane %v1183, 0
        %v1312 = vperm.slane %v1184, 0
        %v1313 = vperm.slane %v1185, 0
        %v1314 = vperm.slane %v1186, 0
        %v1315 = vld [vmem:[%s313] sm:$0xff]
        %v1316 = vld [vmem:[%s313 + $0x8] sm:$0xff]
        %v1317 = vld [vmem:[%s313 + $0x10] sm:$0xff]
        %v1318 = vld [vmem:[%s313 + $0x18] sm:$0xff]
        %v1319 = vld [vmem:[%s313 + $0x20] sm:$0xff]
        %v1320 = vld [vmem:[%s313 + $0x28] sm:$0xff]
        %v1321 = vld [vmem:[%s313 + $0x30] sm:$0xff]
        %v1322 = vld [vmem:[%s313 + $0x38] sm:$0xff]
        %v1323 = vld [vmem:[%s313 + $0x40] sm:$0xff]
        %v1324 = vld [vmem:[%s313 + $0x48] sm:$0xff]
        %v1325 = vld [vmem:[%s313 + $0x50] sm:$0xff]
        %v1326 = vld [vmem:[%s313 + $0x58] sm:$0xff]
        %v1327 = vld [vmem:[%s313 + $0x60] sm:$0xff]
        %v1328 = vld [vmem:[%s313 + $0x68] sm:$0xff]
        %v1329 = vld [vmem:[%s313 + $0x70] sm:$0xff]
        %v1330 = vld [vmem:[%s313 + $0x78] sm:$0xff]
        %v1331 = vld [vmem:[%s313 + $0x80] sm:$0xff]
        %v1332 = vld [vmem:[%s313 + $0x88] sm:$0xff]
        %v1333 = vld [vmem:[%s313 + $0x90] sm:$0xff]
        %v1334 = vld [vmem:[%s313 + $0x98] sm:$0xff]
        %v1335 = vld [vmem:[%s313 + $0xa0] sm:$0xff]
        %v1336 = vld [vmem:[%s313 + $0xa8] sm:$0xff]
        %v1337 = vld [vmem:[%s313 + $0xb0] sm:$0xff]
        %v1338 = vld [vmem:[%s313 + $0xb8] sm:$0xff]
        %v1339 = vld [vmem:[%s313 + $0xc0] sm:$0xff]
        %v1340 = vld [vmem:[%s313 + $0xc8] sm:$0xff]
        %v1341 = vld [vmem:[%s313 + $0xd0] sm:$0xff]
        %v1342 = vld [vmem:[%s313 + $0xd8] sm:$0xff]
        %v1343 = vld [vmem:[%s313 + $0xe0] sm:$0xff]
        %v1344 = vld [vmem:[%s313 + $0xe8] sm:$0xff]
        %v1345 = vld [vmem:[%s313 + $0xf0] sm:$0xff]
        %v1346 = vld [vmem:[%s313 + $0xf8] sm:$0xff]
        %v1347 = vld [vmem:[%s313 + $0x100] sm:$0xff]
        %v1348 = vld [vmem:[%s313 + $0x108] sm:$0xff]
        %v1349 = vld [vmem:[%s313 + $0x110] sm:$0xff]
        %v1350 = vld [vmem:[%s313 + $0x118] sm:$0xff]
        %v1351 = vld [vmem:[%s313 + $0x120] sm:$0xff]
        %v1352 = vld [vmem:[%s313 + $0x128] sm:$0xff]
        %v1353 = vld [vmem:[%s313 + $0x130] sm:$0xff]
        %v1354 = vld [vmem:[%s313 + $0x138] sm:$0xff]
        %v1355 = vld [vmem:[%s313 + $0x140] sm:$0xff]
        %v1356 = vld [vmem:[%s313 + $0x148] sm:$0xff]
        %v1357 = vld [vmem:[%s313 + $0x150] sm:$0xff]
        %v1358 = vld [vmem:[%s313 + $0x158] sm:$0xff]
        %v1359 = vld [vmem:[%s313 + $0x160] sm:$0xff]
        %v1360 = vld [vmem:[%s313 + $0x168] sm:$0xff]
        %v1361 = vld [vmem:[%s313 + $0x170] sm:$0xff]
        %v1362 = vld [vmem:[%s313 + $0x178] sm:$0xff]
        %v1363 = vld [vmem:[%s313 + $0x180] sm:$0xff]
        %v1364 = vld [vmem:[%s313 + $0x188] sm:$0xff]
        %v1365 = vld [vmem:[%s313 + $0x190] sm:$0xff]
        %v1366 = vld [vmem:[%s313 + $0x198] sm:$0xff]
        %v1367 = vld [vmem:[%s313 + $0x1a0] sm:$0xff]
        %v1368 = vld [vmem:[%s313 + $0x1a8] sm:$0xff]
        %v1369 = vld [vmem:[%s313 + $0x1b0] sm:$0xff]
        %v1370 = vld [vmem:[%s313 + $0x1b8] sm:$0xff]
        %v1371 = vld [vmem:[%s313 + $0x1c0] sm:$0xff]
        %v1372 = vld [vmem:[%s313 + $0x1c8] sm:$0xff]
        %v1373 = vld [vmem:[%s313 + $0x1d0] sm:$0xff]
        %v1374 = vld [vmem:[%s313 + $0x1d8] sm:$0xff]
        %v1375 = vld [vmem:[%s313 + $0x1e0] sm:$0xff]
        %v1376 = vld [vmem:[%s313 + $0x1e8] sm:$0xff]
        %v1377 = vld [vmem:[%s313 + $0x1f0] sm:$0xff]
        %v1378 = vld [vmem:[%s313 + $0x1f8] sm:$0xff]
        %v1379 = vld [vmem:[%s313 + $0x200] sm:$0xff]
        %v1380 = vld [vmem:[%s313 + $0x208] sm:$0xff]
        %v1381 = vld [vmem:[%s313 + $0x210] sm:$0xff]
        %v1382 = vld [vmem:[%s313 + $0x218] sm:$0xff]
        %v1383 = vld [vmem:[%s313 + $0x220] sm:$0xff]
        %v1384 = vld [vmem:[%s313 + $0x228] sm:$0xff]
        %v1385 = vld [vmem:[%s313 + $0x230] sm:$0xff]
        %v1386 = vld [vmem:[%s313 + $0x238] sm:$0xff]
        %v1387 = vld [vmem:[%s313 + $0x240] sm:$0xff]
        %v1388 = vld [vmem:[%s313 + $0x248] sm:$0xff]
        %v1389 = vld [vmem:[%s313 + $0x250] sm:$0xff]
        %v1390 = vld [vmem:[%s313 + $0x258] sm:$0xff]
        %v1391 = vld [vmem:[%s313 + $0x260] sm:$0xff]
        %v1392 = vld [vmem:[%s313 + $0x268] sm:$0xff]
        %v1393 = vld [vmem:[%s313 + $0x270] sm:$0xff]
        %v1394 = vld [vmem:[%s313 + $0x278] sm:$0xff]
        %v1395 = vld [vmem:[%s313 + $0x280] sm:$0xff]
        %v1396 = vld [vmem:[%s313 + $0x288] sm:$0xff]
        %v1397 = vld [vmem:[%s313 + $0x290] sm:$0xff]
        %v1398 = vld [vmem:[%s313 + $0x298] sm:$0xff]
        %v1399 = vld [vmem:[%s313 + $0x2a0] sm:$0xff]
        %v1400 = vld [vmem:[%s313 + $0x2a8] sm:$0xff]
        %v1401 = vld [vmem:[%s313 + $0x2b0] sm:$0xff]
        %v1402 = vld [vmem:[%s313 + $0x2b8] sm:$0xff]
        %v1403 = vld [vmem:[%s313 + $0x2c0] sm:$0xff]
        %v1404 = vld [vmem:[%s313 + $0x2c8] sm:$0xff]
        %v1405 = vld [vmem:[%s313 + $0x2d0] sm:$0xff]
        %v1406 = vld [vmem:[%s313 + $0x2d8] sm:$0xff]
        %v1407 = vld [vmem:[%s313 + $0x2e0] sm:$0xff]
        %v1408 = vld [vmem:[%s313 + $0x2e8] sm:$0xff]
        %v1409 = vld [vmem:[%s313 + $0x2f0] sm:$0xff]
        %v1410 = vld [vmem:[%s313 + $0x2f8] sm:$0xff]
        %v1411 = vld [vmem:[%s313 + $0x300] sm:$0xff]
        %v1412 = vld [vmem:[%s313 + $0x308] sm:$0xff]
        %v1413 = vld [vmem:[%s313 + $0x310] sm:$0xff]
        %v1414 = vld [vmem:[%s313 + $0x318] sm:$0xff]
        %v1415 = vld [vmem:[%s313 + $0x320] sm:$0xff]
        %v1416 = vld [vmem:[%s313 + $0x328] sm:$0xff]
        %v1417 = vld [vmem:[%s313 + $0x330] sm:$0xff]
        %v1418 = vld [vmem:[%s313 + $0x338] sm:$0xff]
        %v1419 = vld [vmem:[%s313 + $0x340] sm:$0xff]
        %v1420 = vld [vmem:[%s313 + $0x348] sm:$0xff]
        %v1421 = vld [vmem:[%s313 + $0x350] sm:$0xff]
        %v1422 = vld [vmem:[%s313 + $0x358] sm:$0xff]
        %v1423 = vld [vmem:[%s313 + $0x360] sm:$0xff]
        %v1424 = vld [vmem:[%s313 + $0x368] sm:$0xff]
        %v1425 = vld [vmem:[%s313 + $0x370] sm:$0xff]
        %v1426 = vld [vmem:[%s313 + $0x378] sm:$0xff]
        %v1427 = vld [vmem:[%s313 + $0x380] sm:$0xff]
        %v1428 = vld [vmem:[%s313 + $0x388] sm:$0xff]
        %v1429 = vld [vmem:[%s313 + $0x390] sm:$0xff]
        %v1430 = vld [vmem:[%s313 + $0x398] sm:$0xff]
        %v1431 = vld [vmem:[%s313 + $0x3a0] sm:$0xff]
        %v1432 = vld [vmem:[%s313 + $0x3a8] sm:$0xff]
        %v1433 = vld [vmem:[%s313 + $0x3b0] sm:$0xff]
        %v1434 = vld [vmem:[%s313 + $0x3b8] sm:$0xff]
        %v1435 = vld [vmem:[%s313 + $0x3c0] sm:$0xff]
        %v1436 = vld [vmem:[%s313 + $0x3c8] sm:$0xff]
        %v1437 = vld [vmem:[%s313 + $0x3d0] sm:$0xff]
        %v1438 = vld [vmem:[%s313 + $0x3d8] sm:$0xff]
        %v1439 = vld [vmem:[%s313 + $0x3e0] sm:$0xff]
        %v1440 = vld [vmem:[%s313 + $0x3e8] sm:$0xff]
        %v1441 = vld [vmem:[%s313 + $0x3f0] sm:$0xff]
        %v1442 = vld [vmem:[%s313 + $0x3f8] sm:$0xff]
        %v1443 = vpack.c.bf16 %v1317, %v1315
        %v1444 = vpack.c.bf16 %v1318, %v1316
        %v1445 = vpack.c.bf16 %v1321, %v1319
        %v1446 = vpack.c.bf16 %v1322, %v1320
        %v1447 = vpack.c.bf16 %v1325, %v1323
        %v1448 = vpack.c.bf16 %v1326, %v1324
        %v1449 = vpack.c.bf16 %v1329, %v1327
        %v1450 = vpack.c.bf16 %v1330, %v1328
        %v1451 = vpack.c.bf16 %v1333, %v1331
        %v1452 = vpack.c.bf16 %v1334, %v1332
        %v1453 = vpack.c.bf16 %v1337, %v1335
        %v1454 = vpack.c.bf16 %v1338, %v1336
        %v1455 = vpack.c.bf16 %v1341, %v1339
        %v1456 = vpack.c.bf16 %v1342, %v1340
        %v1457 = vpack.c.bf16 %v1345, %v1343
        %v1458 = vpack.c.bf16 %v1346, %v1344
        %v1459 = vpack.c.bf16 %v1349, %v1347
        %v1460 = vpack.c.bf16 %v1350, %v1348
        %v1461 = vpack.c.bf16 %v1353, %v1351
        %v1462 = vpack.c.bf16 %v1354, %v1352
        %v1463 = vpack.c.bf16 %v1357, %v1355
        %v1464 = vpack.c.bf16 %v1358, %v1356
        %v1465 = vpack.c.bf16 %v1361, %v1359
        %v1466 = vpack.c.bf16 %v1362, %v1360
        %v1467 = vpack.c.bf16 %v1365, %v1363
        %v1468 = vpack.c.bf16 %v1366, %v1364
        %v1469 = vpack.c.bf16 %v1369, %v1367
        %v1470 = vpack.c.bf16 %v1370, %v1368
        %v1471 = vpack.c.bf16 %v1373, %v1371
        %v1472 = vpack.c.bf16 %v1374, %v1372
        %v1473 = vpack.c.bf16 %v1377, %v1375
        %v1474 = vpack.c.bf16 %v1378, %v1376
        %v1475 = vpack.c.bf16 %v1381, %v1379
        %v1476 = vpack.c.bf16 %v1382, %v1380
        %v1477 = vpack.c.bf16 %v1385, %v1383
        %v1478 = vpack.c.bf16 %v1386, %v1384
        %v1479 = vpack.c.bf16 %v1389, %v1387
        %v1480 = vpack.c.bf16 %v1390, %v1388
        %v1481 = vpack.c.bf16 %v1393, %v1391
        %v1482 = vpack.c.bf16 %v1394, %v1392
        %v1483 = vpack.c.bf16 %v1397, %v1395
        %v1484 = vpack.c.bf16 %v1398, %v1396
        %v1485 = vpack.c.bf16 %v1401, %v1399
        %v1486 = vpack.c.bf16 %v1402, %v1400
        %v1487 = vpack.c.bf16 %v1405, %v1403
        %v1488 = vpack.c.bf16 %v1406, %v1404
        %v1489 = vpack.c.bf16 %v1409, %v1407
        %v1490 = vpack.c.bf16 %v1410, %v1408
        %v1491 = vpack.c.bf16 %v1413, %v1411
        %v1492 = vpack.c.bf16 %v1414, %v1412
        %v1493 = vpack.c.bf16 %v1417, %v1415
        %v1494 = vpack.c.bf16 %v1418, %v1416
        %v1495 = vpack.c.bf16 %v1421, %v1419
        %v1496 = vpack.c.bf16 %v1422, %v1420
        %v1497 = vpack.c.bf16 %v1425, %v1423
        %v1498 = vpack.c.bf16 %v1426, %v1424
        %v1499 = vpack.c.bf16 %v1429, %v1427
        %v1500 = vpack.c.bf16 %v1430, %v1428
        %v1501 = vpack.c.bf16 %v1433, %v1431
        %v1502 = vpack.c.bf16 %v1434, %v1432
        %v1503 = vpack.c.bf16 %v1437, %v1435
        %v1504 = vpack.c.bf16 %v1438, %v1436
        %v1505 = vpack.c.bf16 %v1441, %v1439
        %v1506 = vpack.c.bf16 %v1442, %v1440
        %v1507 = vld [vmem:[#allocation8] sm:$0x1]
        %v1509 = vperm.slane %v1507, 0
        %v1543 = vunpack.c.l.b16 %v381
        %v1544 = vunpack.c.l.b16 %v382
        %v1545 = vunpack.c.l.b16 %v383
        %v1546 = vunpack.c.l.b16 %v384
        %v1547 = vunpack.c.l.b16 %v385
        %v1548 = vunpack.c.l.b16 %v386
        %v1549 = vunpack.c.l.b16 %v387
        %v1550 = vunpack.c.l.b16 %v388
        %v1551 = vunpack.c.l.b16 %v389
        %v1552 = vunpack.c.l.b16 %v390
        %v1553 = vunpack.c.l.b16 %v391
        %v1554 = vunpack.c.l.b16 %v392
        %v1555 = vunpack.c.l.b16 %v393
        %v1556 = vunpack.c.l.b16 %v394
        %v1557 = vunpack.c.l.b16 %v395
        %v1558 = vunpack.c.l.b16 %v396
        %v1559 = vunpack.c.l.b16 %v397
        %v1560 = vunpack.c.l.b16 %v398
        %v1561 = vunpack.c.l.b16 %v399
        %v1562 = vunpack.c.l.b16 %v400
        %v1563 = vunpack.c.l.b16 %v401
        %v1564 = vunpack.c.l.b16 %v402
        %v1565 = vunpack.c.l.b16 %v403
        %v1566 = vunpack.c.l.b16 %v404
        %v1567 = vunpack.c.l.b16 %v405
        %v1568 = vunpack.c.l.b16 %v406
        %v1569 = vunpack.c.l.b16 %v407
        %v1570 = vunpack.c.l.b16 %v408
        %v1571 = vunpack.c.l.b16 %v409
        %v1572 = vunpack.c.l.b16 %v410
        %v1573 = vunpack.c.l.b16 %v411
        %v1574 = vunpack.c.l.b16 %v412
        %v1575 = vpack.c.b16 %v1544, %v1543
        %v1576 = vpack.c.b16 %v1546, %v1545
        %v1577 = vpack.c.b16 %v1548, %v1547
        %v1578 = vpack.c.b16 %v1550, %v1549
        %v1579 = vpack.c.b16 %v1552, %v1551
        %v1580 = vpack.c.b16 %v1554, %v1553
        %v1581 = vpack.c.b16 %v1556, %v1555
        %v1582 = vpack.c.b16 %v1558, %v1557
        %v1583 = vpack.c.b16 %v1560, %v1559
        %v1584 = vpack.c.b16 %v1562, %v1561
        %v1585 = vpack.c.b16 %v1564, %v1563
        %v1586 = vpack.c.b16 %v1566, %v1565
        %v1587 = vpack.c.b16 %v1568, %v1567
        %v1588 = vpack.c.b16 %v1570, %v1569
        %v1589 = vpack.c.b16 %v1572, %v1571
        %v1590 = vpack.c.b16 %v1574, %v1573
        %1607 = vmatpush.bf16.msra.mxu0 %v1582
        %1608 = vmatpush.bf16.msra.mxu0 %v1581
        %1609 = vmatpush.bf16.msra.mxu0 %v1580
        %1610 = vmatpush.bf16.msra.mxu0 %v1579
        %1611 = vmatpush.bf16.msra.mxu0 %v1578
        %1612 = vmatpush.bf16.msra.mxu0 %v1577
        %1613 = vmatpush.bf16.msra.mxu0 %v1576
        %1614 = vmatpush.bf16.msra.mxu0 %v1575
        %1615 = vmatmul.bf16.gmra.mxu0 %v1443
        %v1616 = vpop.f32.mrf.mxu0
        %v1617 = vadd.f32 %v1509, %v1616
        %v1618 = vpop.f32.mrf.mxu0
        %v1619 = vadd.f32 %v1509, %v1618
        %1620 = vmatmul.bf16.gmra.mxu0 %v1445
        %v1621 = vpop.f32.mrf.mxu0
        %v1622 = vadd.f32 %v1509, %v1621
        %v1623 = vpop.f32.mrf.mxu0
        %v1624 = vadd.f32 %v1509, %v1623
        %1625 = vmatmul.bf16.gmra.mxu0 %v1447
        %v1626 = vpop.f32.mrf.mxu0
        %v1627 = vadd.f32 %v1509, %v1626
        %v1628 = vpop.f32.mrf.mxu0
        %v1629 = vadd.f32 %v1509, %v1628
        %1630 = vmatmul.bf16.gmra.mxu0 %v1449
        %v1631 = vpop.f32.mrf.mxu0
        %v1632 = vadd.f32 %v1509, %v1631
        %v1633 = vpop.f32.mrf.mxu0
        %v1634 = vadd.f32 %v1509, %v1633
        %1635 = vmatmul.bf16.gmra.mxu0 %v1451
        %v1636 = vpop.f32.mrf.mxu0
        %v1637 = vadd.f32 %v1509, %v1636
        %v1638 = vpop.f32.mrf.mxu0
        %v1639 = vadd.f32 %v1509, %v1638
        %1640 = vmatmul.bf16.gmra.mxu0 %v1453
        %v1641 = vpop.f32.mrf.mxu0
        %v1642 = vadd.f32 %v1509, %v1641
        %v1643 = vpop.f32.mrf.mxu0
        %v1644 = vadd.f32 %v1509, %v1643
        %1645 = vmatmul.bf16.gmra.mxu0 %v1455
        %v1646 = vpop.f32.mrf.mxu0
        %v1647 = vadd.f32 %v1509, %v1646
        %v1648 = vpop.f32.mrf.mxu0
        %v1649 = vadd.f32 %v1509, %v1648
        %1650 = vmatmul.bf16.gmra.mxu0 %v1457
        %v1651 = vpop.f32.mrf.mxu0
        %v1652 = vadd.f32 %v1509, %v1651
        %v1653 = vpop.f32.mrf.mxu0
        %v1654 = vadd.f32 %v1509, %v1653
        %1655 = vmatmul.bf16.gmra.mxu0 %v1459
        %v1656 = vpop.f32.mrf.mxu0
        %v1657 = vadd.f32 %v1509, %v1656
        %v1658 = vpop.f32.mrf.mxu0
        %v1659 = vadd.f32 %v1509, %v1658
        %1660 = vmatmul.bf16.gmra.mxu0 %v1461
        %v1661 = vpop.f32.mrf.mxu0
        %v1662 = vadd.f32 %v1509, %v1661
        %v1663 = vpop.f32.mrf.mxu0
        %v1664 = vadd.f32 %v1509, %v1663
        %1665 = vmatmul.bf16.gmra.mxu0 %v1463
        %v1666 = vpop.f32.mrf.mxu0
        %v1667 = vadd.f32 %v1509, %v1666
        %v1668 = vpop.f32.mrf.mxu0
        %v1669 = vadd.f32 %v1509, %v1668
        %1670 = vmatmul.bf16.gmra.mxu0 %v1465
        %v1671 = vpop.f32.mrf.mxu0
        %v1672 = vadd.f32 %v1509, %v1671
        %v1673 = vpop.f32.mrf.mxu0
        %v1674 = vadd.f32 %v1509, %v1673
        %1675 = vmatmul.bf16.gmra.mxu0 %v1467
        %v1676 = vpop.f32.mrf.mxu0
        %v1677 = vadd.f32 %v1509, %v1676
        %v1678 = vpop.f32.mrf.mxu0
        %v1679 = vadd.f32 %v1509, %v1678
        %1680 = vmatmul.bf16.gmra.mxu0 %v1469
        %v1681 = vpop.f32.mrf.mxu0
        %v1682 = vadd.f32 %v1509, %v1681
        %v1683 = vpop.f32.mrf.mxu0
        %v1684 = vadd.f32 %v1509, %v1683
        %1685 = vmatmul.bf16.gmra.mxu0 %v1471
        %v1686 = vpop.f32.mrf.mxu0
        %v1687 = vadd.f32 %v1509, %v1686
        %v1688 = vpop.f32.mrf.mxu0
        %v1689 = vadd.f32 %v1509, %v1688
        %1690 = vmatmul.bf16.gmra.mxu0 %v1473
        %v1691 = vpop.f32.mrf.mxu0
        %v1692 = vadd.f32 %v1509, %v1691
        %v1693 = vpop.f32.mrf.mxu0
        %v1694 = vadd.f32 %v1509, %v1693
        %1695 = vmatmul.bf16.gmra.mxu0 %v1475
        %v1696 = vpop.f32.mrf.mxu0
        %v1697 = vadd.f32 %v1509, %v1696
        %v1698 = vpop.f32.mrf.mxu0
        %v1699 = vadd.f32 %v1509, %v1698
        %1700 = vmatmul.bf16.gmra.mxu0 %v1477
        %v1701 = vpop.f32.mrf.mxu0
        %v1702 = vadd.f32 %v1509, %v1701
        %v1703 = vpop.f32.mrf.mxu0
        %v1704 = vadd.f32 %v1509, %v1703
        %1705 = vmatmul.bf16.gmra.mxu0 %v1479
        %v1706 = vpop.f32.mrf.mxu0
        %v1707 = vadd.f32 %v1509, %v1706
        %v1708 = vpop.f32.mrf.mxu0
        %v1709 = vadd.f32 %v1509, %v1708
        %1710 = vmatmul.bf16.gmra.mxu0 %v1481
        %v1711 = vpop.f32.mrf.mxu0
        %v1712 = vadd.f32 %v1509, %v1711
        %v1713 = vpop.f32.mrf.mxu0
        %v1714 = vadd.f32 %v1509, %v1713
        %1715 = vmatmul.bf16.gmra.mxu0 %v1483
        %v1716 = vpop.f32.mrf.mxu0
        %v1717 = vadd.f32 %v1509, %v1716
        %v1718 = vpop.f32.mrf.mxu0
        %v1719 = vadd.f32 %v1509, %v1718
        %1720 = vmatmul.bf16.gmra.mxu0 %v1485
        %v1721 = vpop.f32.mrf.mxu0
        %v1722 = vadd.f32 %v1509, %v1721
        %v1723 = vpop.f32.mrf.mxu0
        %v1724 = vadd.f32 %v1509, %v1723
        %1725 = vmatmul.bf16.gmra.mxu0 %v1487
        %v1726 = vpop.f32.mrf.mxu0
        %v1727 = vadd.f32 %v1509, %v1726
        %v1728 = vpop.f32.mrf.mxu0
        %v1729 = vadd.f32 %v1509, %v1728
        %1730 = vmatmul.bf16.gmra.mxu0 %v1489
        %v1731 = vpop.f32.mrf.mxu0
        %v1732 = vadd.f32 %v1509, %v1731
        %v1733 = vpop.f32.mrf.mxu0
        %v1734 = vadd.f32 %v1509, %v1733
        %1735 = vmatmul.bf16.gmra.mxu0 %v1491
        %v1736 = vpop.f32.mrf.mxu0
        %v1737 = vadd.f32 %v1509, %v1736
        %v1738 = vpop.f32.mrf.mxu0
        %v1739 = vadd.f32 %v1509, %v1738
        %1740 = vmatmul.bf16.gmra.mxu0 %v1493
        %v1741 = vpop.f32.mrf.mxu0
        %v1742 = vadd.f32 %v1509, %v1741
        %v1743 = vpop.f32.mrf.mxu0
        %v1744 = vadd.f32 %v1509, %v1743
        %1745 = vmatmul.bf16.gmra.mxu0 %v1495
        %v1746 = vpop.f32.mrf.mxu0
        %v1747 = vadd.f32 %v1509, %v1746
        %v1748 = vpop.f32.mrf.mxu0
        %v1749 = vadd.f32 %v1509, %v1748
        %1750 = vmatmul.bf16.gmra.mxu0 %v1497
        %v1751 = vpop.f32.mrf.mxu0
        %v1752 = vadd.f32 %v1509, %v1751
        %v1753 = vpop.f32.mrf.mxu0
        %v1754 = vadd.f32 %v1509, %v1753
        %1755 = vmatmul.bf16.gmra.mxu0 %v1499
        %v1756 = vpop.f32.mrf.mxu0
        %v1757 = vadd.f32 %v1509, %v1756
        %v1758 = vpop.f32.mrf.mxu0
        %v1759 = vadd.f32 %v1509, %v1758
        %1760 = vmatmul.bf16.gmra.mxu0 %v1501
        %v1761 = vpop.f32.mrf.mxu0
        %v1762 = vadd.f32 %v1509, %v1761
        %v1763 = vpop.f32.mrf.mxu0
        %v1764 = vadd.f32 %v1509, %v1763
        %1765 = vmatmul.bf16.gmra.mxu0 %v1503
        %v1766 = vpop.f32.mrf.mxu0
        %v1767 = vadd.f32 %v1509, %v1766
        %v1768 = vpop.f32.mrf.mxu0
        %v1769 = vadd.f32 %v1509, %v1768
        %1770 = vmatmul.bf16.gmra.mxu0 %v1505
        %v1771 = vpop.f32.mrf.mxu0
        %v1772 = vadd.f32 %v1509, %v1771
        %v1773 = vpop.f32.mrf.mxu0
        %v1774 = vadd.f32 %v1509, %v1773
        %1775 = vdwg.mxu0
        %1776 = vmatpush.bf16.msra.mxu0 %v1590
        %1777 = vmatpush.bf16.msra.mxu0 %v1589
        %1778 = vmatpush.bf16.msra.mxu0 %v1588
        %1779 = vmatpush.bf16.msra.mxu0 %v1587
        %1780 = vmatpush.bf16.msra.mxu0 %v1586
        %1781 = vmatpush.bf16.msra.mxu0 %v1585
        %1782 = vmatpush.bf16.msra.mxu0 %v1584
        %1783 = vmatpush.bf16.msra.mxu0 %v1583
        %1784 = vmatmul.bf16.gmra.mxu0 %v1444
        %v1785 = vpop.f32.mrf.mxu0
        %v1786 = vadd.f32 %v1617, %v1785
        %v1787 = vpop.f32.mrf.mxu0
        %v1788 = vadd.f32 %v1619, %v1787
        %1789 = vmatmul.bf16.gmra.mxu0 %v1446
        %v1790 = vpop.f32.mrf.mxu0
        %v1791 = vadd.f32 %v1622, %v1790
        %v1792 = vpop.f32.mrf.mxu0
        %v1793 = vadd.f32 %v1624, %v1792
        %1794 = vmatmul.bf16.gmra.mxu0 %v1448
        %v1795 = vpop.f32.mrf.mxu0
        %v1796 = vadd.f32 %v1627, %v1795
        %v1797 = vpop.f32.mrf.mxu0
        %v1798 = vadd.f32 %v1629, %v1797
        %1799 = vmatmul.bf16.gmra.mxu0 %v1450
        %v1800 = vpop.f32.mrf.mxu0
        %v1801 = vadd.f32 %v1632, %v1800
        %v1802 = vpop.f32.mrf.mxu0
        %v1803 = vadd.f32 %v1634, %v1802
        %1804 = vmatmul.bf16.gmra.mxu0 %v1452
        %v1805 = vpop.f32.mrf.mxu0
        %v1806 = vadd.f32 %v1637, %v1805
        %v1807 = vpop.f32.mrf.mxu0
        %v1808 = vadd.f32 %v1639, %v1807
        %1809 = vmatmul.bf16.gmra.mxu0 %v1454
        %v1810 = vpop.f32.mrf.mxu0
        %v1811 = vadd.f32 %v1642, %v1810
        %v1812 = vpop.f32.mrf.mxu0
        %v1813 = vadd.f32 %v1644, %v1812
        %1814 = vmatmul.bf16.gmra.mxu0 %v1456
        %v1815 = vpop.f32.mrf.mxu0
        %v1816 = vadd.f32 %v1647, %v1815
        %v1817 = vpop.f32.mrf.mxu0
        %v1818 = vadd.f32 %v1649, %v1817
        %1819 = vmatmul.bf16.gmra.mxu0 %v1458
        %v1820 = vpop.f32.mrf.mxu0
        %v1821 = vadd.f32 %v1652, %v1820
        %v1822 = vpop.f32.mrf.mxu0
        %v1823 = vadd.f32 %v1654, %v1822
        %1824 = vmatmul.bf16.gmra.mxu0 %v1460
        %v1825 = vpop.f32.mrf.mxu0
        %v1826 = vadd.f32 %v1657, %v1825
        %v1827 = vpop.f32.mrf.mxu0
        %v1828 = vadd.f32 %v1659, %v1827
        %1829 = vmatmul.bf16.gmra.mxu0 %v1462
        %v1830 = vpop.f32.mrf.mxu0
        %v1831 = vadd.f32 %v1662, %v1830
        %v1832 = vpop.f32.mrf.mxu0
        %v1833 = vadd.f32 %v1664, %v1832
        %1834 = vmatmul.bf16.gmra.mxu0 %v1464
        %v1835 = vpop.f32.mrf.mxu0
        %v1836 = vadd.f32 %v1667, %v1835
        %v1837 = vpop.f32.mrf.mxu0
        %v1838 = vadd.f32 %v1669, %v1837
        %1839 = vmatmul.bf16.gmra.mxu0 %v1466
        %v1840 = vpop.f32.mrf.mxu0
        %v1841 = vadd.f32 %v1672, %v1840
        %v1842 = vpop.f32.mrf.mxu0
        %v1843 = vadd.f32 %v1674, %v1842
        %1844 = vmatmul.bf16.gmra.mxu0 %v1468
        %v1845 = vpop.f32.mrf.mxu0
        %v1846 = vadd.f32 %v1677, %v1845
        %v1847 = vpop.f32.mrf.mxu0
        %v1848 = vadd.f32 %v1679, %v1847
        %1849 = vmatmul.bf16.gmra.mxu0 %v1470
        %v1850 = vpop.f32.mrf.mxu0
        %v1851 = vadd.f32 %v1682, %v1850
        %v1852 = vpop.f32.mrf.mxu0
        %v1853 = vadd.f32 %v1684, %v1852
        %1854 = vmatmul.bf16.gmra.mxu0 %v1472
        %v1855 = vpop.f32.mrf.mxu0
        %v1856 = vadd.f32 %v1687, %v1855
        %v1857 = vpop.f32.mrf.mxu0
        %v1858 = vadd.f32 %v1689, %v1857
        %1859 = vmatmul.bf16.gmra.mxu0 %v1474
        %v1860 = vpop.f32.mrf.mxu0
        %v1861 = vadd.f32 %v1692, %v1860
        %v1862 = vpop.f32.mrf.mxu0
        %v1863 = vadd.f32 %v1694, %v1862
        %1864 = vmatmul.bf16.gmra.mxu0 %v1476
        %v1865 = vpop.f32.mrf.mxu0
        %v1866 = vadd.f32 %v1697, %v1865
        %v1867 = vpop.f32.mrf.mxu0
        %v1868 = vadd.f32 %v1699, %v1867
        %1869 = vmatmul.bf16.gmra.mxu0 %v1478
        %v1870 = vpop.f32.mrf.mxu0
        %v1871 = vadd.f32 %v1702, %v1870
        %v1872 = vpop.f32.mrf.mxu0
        %v1873 = vadd.f32 %v1704, %v1872
        %1874 = vmatmul.bf16.gmra.mxu0 %v1480
        %v1875 = vpop.f32.mrf.mxu0
        %v1876 = vadd.f32 %v1707, %v1875
        %v1877 = vpop.f32.mrf.mxu0
        %v1878 = vadd.f32 %v1709, %v1877
        %1879 = vmatmul.bf16.gmra.mxu0 %v1482
        %v1880 = vpop.f32.mrf.mxu0
        %v1881 = vadd.f32 %v1712, %v1880
        %v1882 = vpop.f32.mrf.mxu0
        %v1883 = vadd.f32 %v1714, %v1882
        %1884 = vmatmul.bf16.gmra.mxu0 %v1484
        %v1885 = vpop.f32.mrf.mxu0
        %v1886 = vadd.f32 %v1717, %v1885
        %v1887 = vpop.f32.mrf.mxu0
        %v1888 = vadd.f32 %v1719, %v1887
        %1889 = vmatmul.bf16.gmra.mxu0 %v1486
        %v1890 = vpop.f32.mrf.mxu0
        %v1891 = vadd.f32 %v1722, %v1890
        %v1892 = vpop.f32.mrf.mxu0
        %v1893 = vadd.f32 %v1724, %v1892
        %1894 = vmatmul.bf16.gmra.mxu0 %v1488
        %v1895 = vpop.f32.mrf.mxu0
        %v1896 = vadd.f32 %v1727, %v1895
        %v1897 = vpop.f32.mrf.mxu0
        %v1898 = vadd.f32 %v1729, %v1897
        %1899 = vmatmul.bf16.gmra.mxu0 %v1490
        %v1900 = vpop.f32.mrf.mxu0
        %v1901 = vadd.f32 %v1732, %v1900
        %v1902 = vpop.f32.mrf.mxu0
        %v1903 = vadd.f32 %v1734, %v1902
        %1904 = vmatmul.bf16.gmra.mxu0 %v1492
        %v1905 = vpop.f32.mrf.mxu0
        %v1906 = vadd.f32 %v1737, %v1905
        %v1907 = vpop.f32.mrf.mxu0
        %v1908 = vadd.f32 %v1739, %v1907
        %1909 = vmatmul.bf16.gmra.mxu0 %v1494
        %v1910 = vpop.f32.mrf.mxu0
        %v1911 = vadd.f32 %v1742, %v1910
        %v1912 = vpop.f32.mrf.mxu0
        %v1913 = vadd.f32 %v1744, %v1912
        %1914 = vmatmul.bf16.gmra.mxu0 %v1496
        %v1915 = vpop.f32.mrf.mxu0
        %v1916 = vadd.f32 %v1747, %v1915
        %v1917 = vpop.f32.mrf.mxu0
        %v1918 = vadd.f32 %v1749, %v1917
        %1919 = vmatmul.bf16.gmra.mxu0 %v1498
        %v1920 = vpop.f32.mrf.mxu0
        %v1921 = vadd.f32 %v1752, %v1920
        %v1922 = vpop.f32.mrf.mxu0
        %v1923 = vadd.f32 %v1754, %v1922
        %1924 = vmatmul.bf16.gmra.mxu0 %v1500
        %v1925 = vpop.f32.mrf.mxu0
        %v1926 = vadd.f32 %v1757, %v1925
        %v1927 = vpop.f32.mrf.mxu0
        %v1928 = vadd.f32 %v1759, %v1927
        %1929 = vmatmul.bf16.gmra.mxu0 %v1502
        %v1930 = vpop.f32.mrf.mxu0
        %v1931 = vadd.f32 %v1762, %v1930
        %v1932 = vpop.f32.mrf.mxu0
        %v1933 = vadd.f32 %v1764, %v1932
        %1934 = vmatmul.bf16.gmra.mxu0 %v1504
        %v1935 = vpop.f32.mrf.mxu0
        %v1936 = vadd.f32 %v1767, %v1935
        %v1937 = vpop.f32.mrf.mxu0
        %v1938 = vadd.f32 %v1769, %v1937
        %1939 = vmatmul.bf16.gmra.mxu0 %v1506
        %v1940 = vpop.f32.mrf.mxu0
        %v1941 = vadd.f32 %v1772, %v1940
        %v1942 = vpop.f32.mrf.mxu0
        %v1943 = vadd.f32 %v1774, %v1942
        %1944 = vdwg.mxu0
        %v1945 = vmin.f32 %v1786, 40.0
        %v1946 = vmin.f32 %v1788, 40.0
        %v1947 = vmin.f32 %v1791, 40.0
        %v1948 = vmin.f32 %v1793, 40.0
        %v1949 = vmin.f32 %v1796, 40.0
        %v1950 = vmin.f32 %v1798, 40.0
        %v1951 = vmin.f32 %v1801, 40.0
        %v1952 = vmin.f32 %v1803, 40.0
        %v1953 = vmin.f32 %v1806, 40.0
        %v1954 = vmin.f32 %v1808, 40.0
        %v1955 = vmin.f32 %v1811, 40.0
        %v1956 = vmin.f32 %v1813, 40.0
        %v1957 = vmin.f32 %v1816, 40.0
        %v1958 = vmin.f32 %v1818, 40.0
        %v1959 = vmin.f32 %v1821, 40.0
        %v1960 = vmin.f32 %v1823, 40.0
        %v1961 = vmin.f32 %v1826, 40.0
        %v1962 = vmin.f32 %v1828, 40.0
        %v1963 = vmin.f32 %v1831, 40.0
        %v1964 = vmin.f32 %v1833, 40.0
        %v1965 = vmin.f32 %v1836, 40.0
        %v1966 = vmin.f32 %v1838, 40.0
        %v1967 = vmin.f32 %v1841, 40.0
        %v1968 = vmin.f32 %v1843, 40.0
        %v1969 = vmin.f32 %v1846, 40.0
        %v1970 = vmin.f32 %v1848, 40.0
        %v1971 = vmin.f32 %v1851, 40.0
        %v1972 = vmin.f32 %v1853, 40.0
        %v1973 = vmin.f32 %v1856, 40.0
        %v1974 = vmin.f32 %v1858, 40.0
        %v1975 = vmin.f32 %v1861, 40.0
        %v1976 = vmin.f32 %v1863, 40.0
        %v1977 = vmin.f32 %v1866, 40.0
        %v1978 = vmin.f32 %v1868, 40.0
        %v1979 = vmin.f32 %v1871, 40.0
        %v1980 = vmin.f32 %v1873, 40.0
        %v1981 = vmin.f32 %v1876, 40.0
        %v1982 = vmin.f32 %v1878, 40.0
        %v1983 = vmin.f32 %v1881, 40.0
        %v1984 = vmin.f32 %v1883, 40.0
        %v1985 = vmin.f32 %v1886, 40.0
        %v1986 = vmin.f32 %v1888, 40.0
        %v1987 = vmin.f32 %v1891, 40.0
        %v1988 = vmin.f32 %v1893, 40.0
        %v1989 = vmin.f32 %v1896, 40.0
        %v1990 = vmin.f32 %v1898, 40.0
        %v1991 = vmin.f32 %v1901, 40.0
        %v1992 = vmin.f32 %v1903, 40.0
        %v1993 = vmin.f32 %v1906, 40.0
        %v1994 = vmin.f32 %v1908, 40.0
        %v1995 = vmin.f32 %v1911, 40.0
        %v1996 = vmin.f32 %v1913, 40.0
        %v1997 = vmin.f32 %v1916, 40.0
        %v1998 = vmin.f32 %v1918, 40.0
        %v1999 = vmin.f32 %v1921, 40.0
        %v2000 = vmin.f32 %v1923, 40.0
        %v2001 = vmin.f32 %v1926, 40.0
        %v2002 = vmin.f32 %v1928, 40.0
        %v2003 = vmin.f32 %v1931, 40.0
        %v2004 = vmin.f32 %v1933, 40.0
        %v2005 = vmin.f32 %v1936, 40.0
        %v2006 = vmin.f32 %v1938, 40.0
        %v2007 = vmin.f32 %v1941, 40.0
        %v2008 = vmin.f32 %v1943, 40.0
        %v2009 = vmul.f32 %v1945, 1.442695
        %v2010 = vpow.pop %v2009
        %v2011 = vmul.f32 %v1946, 1.442695
        %v2012 = vpow.pop %v2011
        %v2013 = vmul.f32 %v1947, 1.442695
        %v2014 = vpow.pop %v2013
        %v2015 = vmul.f32 %v1948, 1.442695
        %v2016 = vpow.pop %v2015
        %v2017 = vmul.f32 %v1949, 1.442695
        %v2018 = vpow.pop %v2017
        %v2019 = vmul.f32 %v1950, 1.442695
        %v2020 = vpow.pop %v2019
        %v2021 = vmul.f32 %v1951, 1.442695
        %v2022 = vpow.pop %v2021
        %v2023 = vmul.f32 %v1952, 1.442695
        %v2024 = vpow.pop %v2023
        %v2025 = vmul.f32 %v1953, 1.442695
        %v2026 = vpow.pop %v2025
        %v2027 = vmul.f32 %v1954, 1.442695
        %v2028 = vpow.pop %v2027
        %v2029 = vmul.f32 %v1955, 1.442695
        %v2030 = vpow.pop %v2029
        %v2031 = vmul.f32 %v1956, 1.442695
        %v2032 = vpow.pop %v2031
        %v2033 = vmul.f32 %v1957, 1.442695
        %v2034 = vpow.pop %v2033
        %v2035 = vmul.f32 %v1958, 1.442695
        %v2036 = vpow.pop %v2035
        %v2037 = vmul.f32 %v1959, 1.442695
        %v2038 = vpow.pop %v2037
        %v2039 = vmul.f32 %v1960, 1.442695
        %v2040 = vpow.pop %v2039
        %v2041 = vmul.f32 %v1961, 1.442695
        %v2042 = vpow.pop %v2041
        %v2043 = vmul.f32 %v1962, 1.442695
        %v2044 = vpow.pop %v2043
        %v2045 = vmul.f32 %v1963, 1.442695
        %v2046 = vpow.pop %v2045
        %v2047 = vmul.f32 %v1964, 1.442695
        %v2048 = vpow.pop %v2047
        %v2049 = vmul.f32 %v1965, 1.442695
        %v2050 = vpow.pop %v2049
        %v2051 = vmul.f32 %v1966, 1.442695
        %v2052 = vpow.pop %v2051
        %v2053 = vmul.f32 %v1967, 1.442695
        %v2054 = vpow.pop %v2053
        %v2055 = vmul.f32 %v1968, 1.442695
        %v2056 = vpow.pop %v2055
        %v2057 = vmul.f32 %v1969, 1.442695
        %v2058 = vpow.pop %v2057
        %v2059 = vmul.f32 %v1970, 1.442695
        %v2060 = vpow.pop %v2059
        %v2061 = vmul.f32 %v1971, 1.442695
        %v2062 = vpow.pop %v2061
        %v2063 = vmul.f32 %v1972, 1.442695
        %v2064 = vpow.pop %v2063
        %v2065 = vmul.f32 %v1973, 1.442695
        %v2066 = vpow.pop %v2065
        %v2067 = vmul.f32 %v1974, 1.442695
        %v2068 = vpow.pop %v2067
        %v2069 = vmul.f32 %v1975, 1.442695
        %v2070 = vpow.pop %v2069
        %v2071 = vmul.f32 %v1976, 1.442695
        %v2072 = vpow.pop %v2071
        %v2073 = vmul.f32 %v1977, 1.442695
        %v2074 = vpow.pop %v2073
        %v2075 = vmul.f32 %v1978, 1.442695
        %v2076 = vpow.pop %v2075
        %v2077 = vmul.f32 %v1979, 1.442695
        %v2078 = vpow.pop %v2077
        %v2079 = vmul.f32 %v1980, 1.442695
        %v2080 = vpow.pop %v2079
        %v2081 = vmul.f32 %v1981, 1.442695
        %v2082 = vpow.pop %v2081
        %v2083 = vmul.f32 %v1982, 1.442695
        %v2084 = vpow.pop %v2083
        %v2085 = vmul.f32 %v1983, 1.442695
        %v2086 = vpow.pop %v2085
        %v2087 = vmul.f32 %v1984, 1.442695
        %v2088 = vpow.pop %v2087
        %v2089 = vmul.f32 %v1985, 1.442695
        %v2090 = vpow.pop %v2089
        %v2091 = vmul.f32 %v1986, 1.442695
        %v2092 = vpow.pop %v2091
        %v2093 = vmul.f32 %v1987, 1.442695
        %v2094 = vpow.pop %v2093
        %v2095 = vmul.f32 %v1988, 1.442695
        %v2096 = vpow.pop %v2095
        %v2097 = vmul.f32 %v1989, 1.442695
        %v2098 = vpow.pop %v2097
        %v2099 = vmul.f32 %v1990, 1.442695
        %v2100 = vpow.pop %v2099
        %v2101 = vmul.f32 %v1991, 1.442695
        %v2102 = vpow.pop %v2101
        %v2103 = vmul.f32 %v1992, 1.442695
        %v2104 = vpow.pop %v2103
        %v2105 = vmul.f32 %v1993, 1.442695
        %v2106 = vpow.pop %v2105
        %v2107 = vmul.f32 %v1994, 1.442695
        %v2108 = vpow.pop %v2107
        %v2109 = vmul.f32 %v1995, 1.442695
        %v2110 = vpow.pop %v2109
        %v2111 = vmul.f32 %v1996, 1.442695
        %v2112 = vpow.pop %v2111
        %v2113 = vmul.f32 %v1997, 1.442695
        %v2114 = vpow.pop %v2113
        %v2115 = vmul.f32 %v1998, 1.442695
        %v2116 = vpow.pop %v2115
        %v2117 = vmul.f32 %v1999, 1.442695
        %v2118 = vpow.pop %v2117
        %v2119 = vmul.f32 %v2000, 1.442695
        %v2120 = vpow.pop %v2119
        %v2121 = vmul.f32 %v2001, 1.442695
        %v2122 = vpow.pop %v2121
        %v2123 = vmul.f32 %v2002, 1.442695
        %v2124 = vpow.pop %v2123
        %v2125 = vmul.f32 %v2003, 1.442695
        %v2126 = vpow.pop %v2125
        %v2127 = vmul.f32 %v2004, 1.442695
        %v2128 = vpow.pop %v2127
        %v2129 = vmul.f32 %v2005, 1.442695
        %v2130 = vpow.pop %v2129
        %v2131 = vmul.f32 %v2006, 1.442695
        %v2132 = vpow.pop %v2131
        %v2133 = vmul.f32 %v2007, 1.442695
        %v2134 = vpow.pop %v2133
        %v2135 = vmul.f32 %v2008, 1.442695
        %v2136 = vpow.pop %v2135
        %v2137 = vadd.f32 %v2010, 1.0
        %v2138 = vadd.f32 %v2012, 1.0
        %v2139 = vadd.f32 %v2014, 1.0
        %v2140 = vadd.f32 %v2016, 1.0
        %v2141 = vadd.f32 %v2018, 1.0
        %v2142 = vadd.f32 %v2020, 1.0
        %v2143 = vadd.f32 %v2022, 1.0
        %v2144 = vadd.f32 %v2024, 1.0
        %v2145 = vadd.f32 %v2026, 1.0
        %v2146 = vadd.f32 %v2028, 1.0
        %v2147 = vadd.f32 %v2030, 1.0
        %v2148 = vadd.f32 %v2032, 1.0
        %v2149 = vadd.f32 %v2034, 1.0
        %v2150 = vadd.f32 %v2036, 1.0
        %v2151 = vadd.f32 %v2038, 1.0
        %v2152 = vadd.f32 %v2040, 1.0
        %v2153 = vadd.f32 %v2042, 1.0
        %v2154 = vadd.f32 %v2044, 1.0
        %v2155 = vadd.f32 %v2046, 1.0
        %v2156 = vadd.f32 %v2048, 1.0
        %v2157 = vadd.f32 %v2050, 1.0
        %v2158 = vadd.f32 %v2052, 1.0
        %v2159 = vadd.f32 %v2054, 1.0
        %v2160 = vadd.f32 %v2056, 1.0
        %v2161 = vadd.f32 %v2058, 1.0
        %v2162 = vadd.f32 %v2060, 1.0
        %v2163 = vadd.f32 %v2062, 1.0
        %v2164 = vadd.f32 %v2064, 1.0
        %v2165 = vadd.f32 %v2066, 1.0
        %v2166 = vadd.f32 %v2068, 1.0
        %v2167 = vadd.f32 %v2070, 1.0
        %v2168 = vadd.f32 %v2072, 1.0
        %v2169 = vadd.f32 %v2074, 1.0
        %v2170 = vadd.f32 %v2076, 1.0
        %v2171 = vadd.f32 %v2078, 1.0
        %v2172 = vadd.f32 %v2080, 1.0
        %v2173 = vadd.f32 %v2082, 1.0
        %v2174 = vadd.f32 %v2084, 1.0
        %v2175 = vadd.f32 %v2086, 1.0
        %v2176 = vadd.f32 %v2088, 1.0
        %v2177 = vadd.f32 %v2090, 1.0
        %v2178 = vadd.f32 %v2092, 1.0
        %v2179 = vadd.f32 %v2094, 1.0
        %v2180 = vadd.f32 %v2096, 1.0
        %v2181 = vadd.f32 %v2098, 1.0
        %v2182 = vadd.f32 %v2100, 1.0
        %v2183 = vadd.f32 %v2102, 1.0
        %v2184 = vadd.f32 %v2104, 1.0
        %v2185 = vadd.f32 %v2106, 1.0
        %v2186 = vadd.f32 %v2108, 1.0
        %v2187 = vadd.f32 %v2110, 1.0
        %v2188 = vadd.f32 %v2112, 1.0
        %v2189 = vadd.f32 %v2114, 1.0
        %v2190 = vadd.f32 %v2116, 1.0
        %v2191 = vadd.f32 %v2118, 1.0
        %v2192 = vadd.f32 %v2120, 1.0
        %v2193 = vadd.f32 %v2122, 1.0
        %v2194 = vadd.f32 %v2124, 1.0
        %v2195 = vadd.f32 %v2126, 1.0
        %v2196 = vadd.f32 %v2128, 1.0
        %v2197 = vadd.f32 %v2130, 1.0
        %v2198 = vadd.f32 %v2132, 1.0
        %v2199 = vadd.f32 %v2134, 1.0
        %v2200 = vadd.f32 %v2136, 1.0
        %v2201 = vmul.f32 %v2137, %v2137
        %v2202 = vmul.f32 %v2138, %v2138
        %v2203 = vmul.f32 %v2139, %v2139
        %v2204 = vmul.f32 %v2140, %v2140
        %v2205 = vmul.f32 %v2141, %v2141
        %v2206 = vmul.f32 %v2142, %v2142
        %v2207 = vmul.f32 %v2143, %v2143
        %v2208 = vmul.f32 %v2144, %v2144
        %v2209 = vmul.f32 %v2145, %v2145
        %v2210 = vmul.f32 %v2146, %v2146
        %v2211 = vmul.f32 %v2147, %v2147
        %v2212 = vmul.f32 %v2148, %v2148
        %v2213 = vmul.f32 %v2149, %v2149
        %v2214 = vmul.f32 %v2150, %v2150
        %v2215 = vmul.f32 %v2151, %v2151
        %v2216 = vmul.f32 %v2152, %v2152
        %v2217 = vmul.f32 %v2153, %v2153
        %v2218 = vmul.f32 %v2154, %v2154
        %v2219 = vmul.f32 %v2155, %v2155
        %v2220 = vmul.f32 %v2156, %v2156
        %v2221 = vmul.f32 %v2157, %v2157
        %v2222 = vmul.f32 %v2158, %v2158
        %v2223 = vmul.f32 %v2159, %v2159
        %v2224 = vmul.f32 %v2160, %v2160
        %v2225 = vmul.f32 %v2161, %v2161
        %v2226 = vmul.f32 %v2162, %v2162
        %v2227 = vmul.f32 %v2163, %v2163
        %v2228 = vmul.f32 %v2164, %v2164
        %v2229 = vmul.f32 %v2165, %v2165
        %v2230 = vmul.f32 %v2166, %v2166
        %v2231 = vmul.f32 %v2167, %v2167
        %v2232 = vmul.f32 %v2168, %v2168
        %v2233 = vmul.f32 %v2169, %v2169
        %v2234 = vmul.f32 %v2170, %v2170
        %v2235 = vmul.f32 %v2171, %v2171
        %v2236 = vmul.f32 %v2172, %v2172
        %v2237 = vmul.f32 %v2173, %v2173
        %v2238 = vmul.f32 %v2174, %v2174
        %v2239 = vmul.f32 %v2175, %v2175
        %v2240 = vmul.f32 %v2176, %v2176
        %v2241 = vmul.f32 %v2177, %v2177
        %v2242 = vmul.f32 %v2178, %v2178
        %v2243 = vmul.f32 %v2179, %v2179
        %v2244 = vmul.f32 %v2180, %v2180
        %v2245 = vmul.f32 %v2181, %v2181
        %v2246 = vmul.f32 %v2182, %v2182
        %v2247 = vmul.f32 %v2183, %v2183
        %v2248 = vmul.f32 %v2184, %v2184
        %v2249 = vmul.f32 %v2185, %v2185
        %v2250 = vmul.f32 %v2186, %v2186
        %v2251 = vmul.f32 %v2187, %v2187
        %v2252 = vmul.f32 %v2188, %v2188
        %v2253 = vmul.f32 %v2189, %v2189
        %v2254 = vmul.f32 %v2190, %v2190
        %v2255 = vmul.f32 %v2191, %v2191
        %v2256 = vmul.f32 %v2192, %v2192
        %v2257 = vmul.f32 %v2193, %v2193
        %v2258 = vmul.f32 %v2194, %v2194
        %v2259 = vmul.f32 %v2195, %v2195
        %v2260 = vmul.f32 %v2196, %v2196
        %v2261 = vmul.f32 %v2197, %v2197
        %v2262 = vmul.f32 %v2198, %v2198
        %v2263 = vmul.f32 %v2199, %v2199
        %v2264 = vmul.f32 %v2200, %v2200
        %v2265 = vadd.f32 %v2201, 1.0
        %v2266 = vadd.f32 %v2202, 1.0
        %v2267 = vadd.f32 %v2203, 1.0
        %v2268 = vadd.f32 %v2204, 1.0
        %v2269 = vadd.f32 %v2205, 1.0
        %v2270 = vadd.f32 %v2206, 1.0
        %v2271 = vadd.f32 %v2207, 1.0
        %v2272 = vadd.f32 %v2208, 1.0
        %v2273 = vadd.f32 %v2209, 1.0
        %v2274 = vadd.f32 %v2210, 1.0
        %v2275 = vadd.f32 %v2211, 1.0
        %v2276 = vadd.f32 %v2212, 1.0
        %v2277 = vadd.f32 %v2213, 1.0
        %v2278 = vadd.f32 %v2214, 1.0
        %v2279 = vadd.f32 %v2215, 1.0
        %v2280 = vadd.f32 %v2216, 1.0
        %v2281 = vadd.f32 %v2217, 1.0
        %v2282 = vadd.f32 %v2218, 1.0
        %v2283 = vadd.f32 %v2219, 1.0
        %v2284 = vadd.f32 %v2220, 1.0
        %v2285 = vadd.f32 %v2221, 1.0
        %v2286 = vadd.f32 %v2222, 1.0
        %v2287 = vadd.f32 %v2223, 1.0
        %v2288 = vadd.f32 %v2224, 1.0
        %v2289 = vadd.f32 %v2225, 1.0
        %v2290 = vadd.f32 %v2226, 1.0
        %v2291 = vadd.f32 %v2227, 1.0
        %v2292 = vadd.f32 %v2228, 1.0
        %v2293 = vadd.f32 %v2229, 1.0
        %v2294 = vadd.f32 %v2230, 1.0
        %v2295 = vadd.f32 %v2231, 1.0
        %v2296 = vadd.f32 %v2232, 1.0
        %v2297 = vadd.f32 %v2233, 1.0
        %v2298 = vadd.f32 %v2234, 1.0
        %v2299 = vadd.f32 %v2235, 1.0
        %v2300 = vadd.f32 %v2236, 1.0
        %v2301 = vadd.f32 %v2237, 1.0
        %v2302 = vadd.f32 %v2238, 1.0
        %v2303 = vadd.f32 %v2239, 1.0
        %v2304 = vadd.f32 %v2240, 1.0
        %v2305 = vadd.f32 %v2241, 1.0
        %v2306 = vadd.f32 %v2242, 1.0
        %v2307 = vadd.f32 %v2243, 1.0
        %v2308 = vadd.f32 %v2244, 1.0
        %v2309 = vadd.f32 %v2245, 1.0
        %v2310 = vadd.f32 %v2246, 1.0
        %v2311 = vadd.f32 %v2247, 1.0
        %v2312 = vadd.f32 %v2248, 1.0
        %v2313 = vadd.f32 %v2249, 1.0
        %v2314 = vadd.f32 %v2250, 1.0
        %v2315 = vadd.f32 %v2251, 1.0
        %v2316 = vadd.f32 %v2252, 1.0
        %v2317 = vadd.f32 %v2253, 1.0
        %v2318 = vadd.f32 %v2254, 1.0
        %v2319 = vadd.f32 %v2255, 1.0
        %v2320 = vadd.f32 %v2256, 1.0
        %v2321 = vadd.f32 %v2257, 1.0
        %v2322 = vadd.f32 %v2258, 1.0
        %v2323 = vadd.f32 %v2259, 1.0
        %v2324 = vadd.f32 %v2260, 1.0
        %v2325 = vadd.f32 %v2261, 1.0
        %v2326 = vadd.f32 %v2262, 1.0
        %v2327 = vadd.f32 %v2263, 1.0
        %v2328 = vadd.f32 %v2264, 1.0
        %v2329 = vmul.f32 %v1786, 2.0
        %v2330 = vmul.f32 %v1788, 2.0
        %v2331 = vmul.f32 %v1791, 2.0
        %v2332 = vmul.f32 %v1793, 2.0
        %v2333 = vmul.f32 %v1796, 2.0
        %v2334 = vmul.f32 %v1798, 2.0
        %v2335 = vmul.f32 %v1801, 2.0
        %v2336 = vmul.f32 %v1803, 2.0
        %v2337 = vmul.f32 %v1806, 2.0
        %v2338 = vmul.f32 %v1808, 2.0
        %v2339 = vmul.f32 %v1811, 2.0
        %v2340 = vmul.f32 %v1813, 2.0
        %v2341 = vmul.f32 %v1816, 2.0
        %v2342 = vmul.f32 %v1818, 2.0
        %v2343 = vmul.f32 %v1821, 2.0
        %v2344 = vmul.f32 %v1823, 2.0
        %v2345 = vmul.f32 %v1826, 2.0
        %v2346 = vmul.f32 %v1828, 2.0
        %v2347 = vmul.f32 %v1831, 2.0
        %v2348 = vmul.f32 %v1833, 2.0
        %v2349 = vmul.f32 %v1836, 2.0
        %v2350 = vmul.f32 %v1838, 2.0
        %v2351 = vmul.f32 %v1841, 2.0
        %v2352 = vmul.f32 %v1843, 2.0
        %v2353 = vmul.f32 %v1846, 2.0
        %v2354 = vmul.f32 %v1848, 2.0
        %v2355 = vmul.f32 %v1851, 2.0
        %v2356 = vmul.f32 %v1853, 2.0
        %v2357 = vmul.f32 %v1856, 2.0
        %v2358 = vmul.f32 %v1858, 2.0
        %v2359 = vmul.f32 %v1861, 2.0
        %v2360 = vmul.f32 %v1863, 2.0
        %v2361 = vmul.f32 %v1866, 2.0
        %v2362 = vmul.f32 %v1868, 2.0
        %v2363 = vmul.f32 %v1871, 2.0
        %v2364 = vmul.f32 %v1873, 2.0
        %v2365 = vmul.f32 %v1876, 2.0
        %v2366 = vmul.f32 %v1878, 2.0
        %v2367 = vmul.f32 %v1881, 2.0
        %v2368 = vmul.f32 %v1883, 2.0
        %v2369 = vmul.f32 %v1886, 2.0
        %v2370 = vmul.f32 %v1888, 2.0
        %v2371 = vmul.f32 %v1891, 2.0
        %v2372 = vmul.f32 %v1893, 2.0
        %v2373 = vmul.f32 %v1896, 2.0
        %v2374 = vmul.f32 %v1898, 2.0
        %v2375 = vmul.f32 %v1901, 2.0
        %v2376 = vmul.f32 %v1903, 2.0
        %v2377 = vmul.f32 %v1906, 2.0
        %v2378 = vmul.f32 %v1908, 2.0
        %v2379 = vmul.f32 %v1911, 2.0
        %v2380 = vmul.f32 %v1913, 2.0
        %v2381 = vmul.f32 %v1916, 2.0
        %v2382 = vmul.f32 %v1918, 2.0
        %v2383 = vmul.f32 %v1921, 2.0
        %v2384 = vmul.f32 %v1923, 2.0
        %v2385 = vmul.f32 %v1926, 2.0
        %v2386 = vmul.f32 %v1928, 2.0
        %v2387 = vmul.f32 %v1931, 2.0
        %v2388 = vmul.f32 %v1933, 2.0
        %v2389 = vmul.f32 %v1936, 2.0
        %v2390 = vmul.f32 %v1938, 2.0
        %v2391 = vmul.f32 %v1941, 2.0
        %v2392 = vmul.f32 %v1943, 2.0
        %v2393 = vrcp.pop %v2265
        %v2394 = vmul.f32 %v2265, %v2393
        %v2395 = vsub.f32 1.0, %v2394
        %v2396 = vmul.f32 %v2393, %v2395
        %v2397 = vadd.f32 %v2393, %v2396
        %vm2398 = vweird.f32 %v2265
        %vm2399 = vweird.f32 %v2393
        %vm2400 = vmor %vm2398, %vm2399
        %v2401 = vsel %vm2400, %v2393, %v2397
        %v2402 = vand.u32 2147483647, %v2265
        %vm2403 = vcmp.eq.f32.partialorder %v2402, 8.507059e+37
        %v2404 = vand.u32 %v2265, 2147483648
        %v2405 = vor.u32 1.1754944e-38, %v2404
        %v2406 = vsel %vm2403, %v2405, %v2401
        %v2407 = vrcp.pop %v2266
        %v2408 = vmul.f32 %v2266, %v2407
        %v2409 = vsub.f32 1.0, %v2408
        %v2410 = vmul.f32 %v2407, %v2409
        %v2411 = vadd.f32 %v2407, %v2410
        %vm2412 = vweird.f32 %v2266
        %vm2413 = vweird.f32 %v2407
        %vm2414 = vmor %vm2412, %vm2413
        %v2415 = vsel %vm2414, %v2407, %v2411
        %v2416 = vand.u32 2147483647, %v2266
        %vm2417 = vcmp.eq.f32.partialorder %v2416, 8.507059e+37
        %v2418 = vand.u32 %v2266, 2147483648
        %v2419 = vor.u32 1.1754944e-38, %v2418
        %v2420 = vsel %vm2417, %v2419, %v2415
        %v2421 = vrcp.pop %v2267
        %v2422 = vmul.f32 %v2267, %v2421
        %v2423 = vsub.f32 1.0, %v2422
        %v2424 = vmul.f32 %v2421, %v2423
        %v2425 = vadd.f32 %v2421, %v2424
        %vm2426 = vweird.f32 %v2267
        %vm2427 = vweird.f32 %v2421
        %vm2428 = vmor %vm2426, %vm2427
        %v2429 = vsel %vm2428, %v2421, %v2425
        %v2430 = vand.u32 2147483647, %v2267
        %vm2431 = vcmp.eq.f32.partialorder %v2430, 8.507059e+37
        %v2432 = vand.u32 %v2267, 2147483648
        %v2433 = vor.u32 1.1754944e-38, %v2432
        %v2434 = vsel %vm2431, %v2433, %v2429
        %v2435 = vrcp.pop %v2268
        %v2436 = vmul.f32 %v2268, %v2435
        %v2437 = vsub.f32 1.0, %v2436
        %v2438 = vmul.f32 %v2435, %v2437
        %v2439 = vadd.f32 %v2435, %v2438
        %vm2440 = vweird.f32 %v2268
        %vm2441 = vweird.f32 %v2435
        %vm2442 = vmor %vm2440, %vm2441
        %v2443 = vsel %vm2442, %v2435, %v2439
        %v2444 = vand.u32 2147483647, %v2268
        %vm2445 = vcmp.eq.f32.partialorder %v2444, 8.507059e+37
        %v2446 = vand.u32 %v2268, 2147483648
        %v2447 = vor.u32 1.1754944e-38, %v2446
        %v2448 = vsel %vm2445, %v2447, %v2443
        %v2449 = vrcp.pop %v2269
        %v2450 = vmul.f32 %v2269, %v2449
        %v2451 = vsub.f32 1.0, %v2450
        %v2452 = vmul.f32 %v2449, %v2451
        %v2453 = vadd.f32 %v2449, %v2452
        %vm2454 = vweird.f32 %v2269
        %vm2455 = vweird.f32 %v2449
        %vm2456 = vmor %vm2454, %vm2455
        %v2457 = vsel %vm2456, %v2449, %v2453
        %v2458 = vand.u32 2147483647, %v2269
        %vm2459 = vcmp.eq.f32.partialorder %v2458, 8.507059e+37
        %v2460 = vand.u32 %v2269, 2147483648
        %v2461 = vor.u32 1.1754944e-38, %v2460
        %v2462 = vsel %vm2459, %v2461, %v2457
        %v2463 = vrcp.pop %v2270
        %v2464 = vmul.f32 %v2270, %v2463
        %v2465 = vsub.f32 1.0, %v2464
        %v2466 = vmul.f32 %v2463, %v2465
        %v2467 = vadd.f32 %v2463, %v2466
        %vm2468 = vweird.f32 %v2270
        %vm2469 = vweird.f32 %v2463
        %vm2470 = vmor %vm2468, %vm2469
        %v2471 = vsel %vm2470, %v2463, %v2467
        %v2472 = vand.u32 2147483647, %v2270
        %vm2473 = vcmp.eq.f32.partialorder %v2472, 8.507059e+37
        %v2474 = vand.u32 %v2270, 2147483648
        %v2475 = vor.u32 1.1754944e-38, %v2474
        %v2476 = vsel %vm2473, %v2475, %v2471
        %v2477 = vrcp.pop %v2271
        %v2478 = vmul.f32 %v2271, %v2477
        %v2479 = vsub.f32 1.0, %v2478
        %v2480 = vmul.f32 %v2477, %v2479
        %v2481 = vadd.f32 %v2477, %v2480
        %vm2482 = vweird.f32 %v2271
        %vm2483 = vweird.f32 %v2477
        %vm2484 = vmor %vm2482, %vm2483
        %v2485 = vsel %vm2484, %v2477, %v2481
        %v2486 = vand.u32 2147483647, %v2271
        %vm2487 = vcmp.eq.f32.partialorder %v2486, 8.507059e+37
        %v2488 = vand.u32 %v2271, 2147483648
        %v2489 = vor.u32 1.1754944e-38, %v2488
        %v2490 = vsel %vm2487, %v2489, %v2485
        %v2491 = vrcp.pop %v2272
        %v2492 = vmul.f32 %v2272, %v2491
        %v2493 = vsub.f32 1.0, %v2492
        %v2494 = vmul.f32 %v2491, %v2493
        %v2495 = vadd.f32 %v2491, %v2494
        %vm2496 = vweird.f32 %v2272
        %vm2497 = vweird.f32 %v2491
        %vm2498 = vmor %vm2496, %vm2497
        %v2499 = vsel %vm2498, %v2491, %v2495
        %v2500 = vand.u32 2147483647, %v2272
        %vm2501 = vcmp.eq.f32.partialorder %v2500, 8.507059e+37
        %v2502 = vand.u32 %v2272, 2147483648
        %v2503 = vor.u32 1.1754944e-38, %v2502
        %v2504 = vsel %vm2501, %v2503, %v2499
        %v2505 = vrcp.pop %v2273
        %v2506 = vmul.f32 %v2273, %v2505
        %v2507 = vsub.f32 1.0, %v2506
        %v2508 = vmul.f32 %v2505, %v2507
        %v2509 = vadd.f32 %v2505, %v2508
        %vm2510 = vweird.f32 %v2273
        %vm2511 = vweird.f32 %v2505
        %vm2512 = vmor %vm2510, %vm2511
        %v2513 = vsel %vm2512, %v2505, %v2509
        %v2514 = vand.u32 2147483647, %v2273
        %vm2515 = vcmp.eq.f32.partialorder %v2514, 8.507059e+37
        %v2516 = vand.u32 %v2273, 2147483648
        %v2517 = vor.u32 1.1754944e-38, %v2516
        %v2518 = vsel %vm2515, %v2517, %v2513
        %v2519 = vrcp.pop %v2274
        %v2520 = vmul.f32 %v2274, %v2519
        %v2521 = vsub.f32 1.0, %v2520
        %v2522 = vmul.f32 %v2519, %v2521
        %v2523 = vadd.f32 %v2519, %v2522
        %vm2524 = vweird.f32 %v2274
        %vm2525 = vweird.f32 %v2519
        %vm2526 = vmor %vm2524, %vm2525
        %v2527 = vsel %vm2526, %v2519, %v2523
        %v2528 = vand.u32 2147483647, %v2274
        %vm2529 = vcmp.eq.f32.partialorder %v2528, 8.507059e+37
        %v2530 = vand.u32 %v2274, 2147483648
        %v2531 = vor.u32 1.1754944e-38, %v2530
        %v2532 = vsel %vm2529, %v2531, %v2527
        %v2533 = vrcp.pop %v2275
        %v2534 = vmul.f32 %v2275, %v2533
        %v2535 = vsub.f32 1.0, %v2534
        %v2536 = vmul.f32 %v2533, %v2535
        %v2537 = vadd.f32 %v2533, %v2536
        %vm2538 = vweird.f32 %v2275
        %vm2539 = vweird.f32 %v2533
        %vm2540 = vmor %vm2538, %vm2539
        %v2541 = vsel %vm2540, %v2533, %v2537
        %v2542 = vand.u32 2147483647, %v2275
        %vm2543 = vcmp.eq.f32.partialorder %v2542, 8.507059e+37
        %v2544 = vand.u32 %v2275, 2147483648
        %v2545 = vor.u32 1.1754944e-38, %v2544
        %v2546 = vsel %vm2543, %v2545, %v2541
        %v2547 = vrcp.pop %v2276
        %v2548 = vmul.f32 %v2276, %v2547
        %v2549 = vsub.f32 1.0, %v2548
        %v2550 = vmul.f32 %v2547, %v2549
        %v2551 = vadd.f32 %v2547, %v2550
        %vm2552 = vweird.f32 %v2276
        %vm2553 = vweird.f32 %v2547
        %vm2554 = vmor %vm2552, %vm2553
        %v2555 = vsel %vm2554, %v2547, %v2551
        %v2556 = vand.u32 2147483647, %v2276
        %vm2557 = vcmp.eq.f32.partialorder %v2556, 8.507059e+37
        %v2558 = vand.u32 %v2276, 2147483648
        %v2559 = vor.u32 1.1754944e-38, %v2558
        %v2560 = vsel %vm2557, %v2559, %v2555
        %v2561 = vrcp.pop %v2277
        %v2562 = vmul.f32 %v2277, %v2561
        %v2563 = vsub.f32 1.0, %v2562
        %v2564 = vmul.f32 %v2561, %v2563
        %v2565 = vadd.f32 %v2561, %v2564
        %vm2566 = vweird.f32 %v2277
        %vm2567 = vweird.f32 %v2561
        %vm2568 = vmor %vm2566, %vm2567
        %v2569 = vsel %vm2568, %v2561, %v2565
        %v2570 = vand.u32 2147483647, %v2277
        %vm2571 = vcmp.eq.f32.partialorder %v2570, 8.507059e+37
        %v2572 = vand.u32 %v2277, 2147483648
        %v2573 = vor.u32 1.1754944e-38, %v2572
        %v2574 = vsel %vm2571, %v2573, %v2569
        %v2575 = vrcp.pop %v2278
        %v2576 = vmul.f32 %v2278, %v2575
        %v2577 = vsub.f32 1.0, %v2576
        %v2578 = vmul.f32 %v2575, %v2577
        %v2579 = vadd.f32 %v2575, %v2578
        %vm2580 = vweird.f32 %v2278
        %vm2581 = vweird.f32 %v2575
        %vm2582 = vmor %vm2580, %vm2581
        %v2583 = vsel %vm2582, %v2575, %v2579
        %v2584 = vand.u32 2147483647, %v2278
        %vm2585 = vcmp.eq.f32.partialorder %v2584, 8.507059e+37
        %v2586 = vand.u32 %v2278, 2147483648
        %v2587 = vor.u32 1.1754944e-38, %v2586
        %v2588 = vsel %vm2585, %v2587, %v2583
        %v2589 = vrcp.pop %v2279
        %v2590 = vmul.f32 %v2279, %v2589
        %v2591 = vsub.f32 1.0, %v2590
        %v2592 = vmul.f32 %v2589, %v2591
        %v2593 = vadd.f32 %v2589, %v2592
        %vm2594 = vweird.f32 %v2279
        %vm2595 = vweird.f32 %v2589
        %vm2596 = vmor %vm2594, %vm2595
        %v2597 = vsel %vm2596, %v2589, %v2593
        %v2598 = vand.u32 2147483647, %v2279
        %vm2599 = vcmp.eq.f32.partialorder %v2598, 8.507059e+37
        %v2600 = vand.u32 %v2279, 2147483648
        %v2601 = vor.u32 1.1754944e-38, %v2600
        %v2602 = vsel %vm2599, %v2601, %v2597
        %v2603 = vrcp.pop %v2280
        %v2604 = vmul.f32 %v2280, %v2603
        %v2605 = vsub.f32 1.0, %v2604
        %v2606 = vmul.f32 %v2603, %v2605
        %v2607 = vadd.f32 %v2603, %v2606
        %vm2608 = vweird.f32 %v2280
        %vm2609 = vweird.f32 %v2603
        %vm2610 = vmor %vm2608, %vm2609
        %v2611 = vsel %vm2610, %v2603, %v2607
        %v2612 = vand.u32 2147483647, %v2280
        %vm2613 = vcmp.eq.f32.partialorder %v2612, 8.507059e+37
        %v2614 = vand.u32 %v2280, 2147483648
        %v2615 = vor.u32 1.1754944e-38, %v2614
        %v2616 = vsel %vm2613, %v2615, %v2611
        %v2617 = vrcp.pop %v2281
        %v2618 = vmul.f32 %v2281, %v2617
        %v2619 = vsub.f32 1.0, %v2618
        %v2620 = vmul.f32 %v2617, %v2619
        %v2621 = vadd.f32 %v2617, %v2620
        %vm2622 = vweird.f32 %v2281
        %vm2623 = vweird.f32 %v2617
        %vm2624 = vmor %vm2622, %vm2623
        %v2625 = vsel %vm2624, %v2617, %v2621
        %v2626 = vand.u32 2147483647, %v2281
        %vm2627 = vcmp.eq.f32.partialorder %v2626, 8.507059e+37
        %v2628 = vand.u32 %v2281, 2147483648
        %v2629 = vor.u32 1.1754944e-38, %v2628
        %v2630 = vsel %vm2627, %v2629, %v2625
        %v2631 = vrcp.pop %v2282
        %v2632 = vmul.f32 %v2282, %v2631
        %v2633 = vsub.f32 1.0, %v2632
        %v2634 = vmul.f32 %v2631, %v2633
        %v2635 = vadd.f32 %v2631, %v2634
        %vm2636 = vweird.f32 %v2282
        %vm2637 = vweird.f32 %v2631
        %vm2638 = vmor %vm2636, %vm2637
        %v2639 = vsel %vm2638, %v2631, %v2635
        %v2640 = vand.u32 2147483647, %v2282
        %vm2641 = vcmp.eq.f32.partialorder %v2640, 8.507059e+37
        %v2642 = vand.u32 %v2282, 2147483648
        %v2643 = vor.u32 1.1754944e-38, %v2642
        %v2644 = vsel %vm2641, %v2643, %v2639
        %v2645 = vrcp.pop %v2283
        %v2646 = vmul.f32 %v2283, %v2645
        %v2647 = vsub.f32 1.0, %v2646
        %v2648 = vmul.f32 %v2645, %v2647
        %v2649 = vadd.f32 %v2645, %v2648
        %vm2650 = vweird.f32 %v2283
        %vm2651 = vweird.f32 %v2645
        %vm2652 = vmor %vm2650, %vm2651
        %v2653 = vsel %vm2652, %v2645, %v2649
        %v2654 = vand.u32 2147483647, %v2283
        %vm2655 = vcmp.eq.f32.partialorder %v2654, 8.507059e+37
        %v2656 = vand.u32 %v2283, 2147483648
        %v2657 = vor.u32 1.1754944e-38, %v2656
        %v2658 = vsel %vm2655, %v2657, %v2653
        %v2659 = vrcp.pop %v2284
        %v2660 = vmul.f32 %v2284, %v2659
        %v2661 = vsub.f32 1.0, %v2660
        %v2662 = vmul.f32 %v2659, %v2661
        %v2663 = vadd.f32 %v2659, %v2662
        %vm2664 = vweird.f32 %v2284
        %vm2665 = vweird.f32 %v2659
        %vm2666 = vmor %vm2664, %vm2665
        %v2667 = vsel %vm2666, %v2659, %v2663
        %v2668 = vand.u32 2147483647, %v2284
        %vm2669 = vcmp.eq.f32.partialorder %v2668, 8.507059e+37
        %v2670 = vand.u32 %v2284, 2147483648
        %v2671 = vor.u32 1.1754944e-38, %v2670
        %v2672 = vsel %vm2669, %v2671, %v2667
        %v2673 = vrcp.pop %v2285
        %v2674 = vmul.f32 %v2285, %v2673
        %v2675 = vsub.f32 1.0, %v2674
        %v2676 = vmul.f32 %v2673, %v2675
        %v2677 = vadd.f32 %v2673, %v2676
        %vm2678 = vweird.f32 %v2285
        %vm2679 = vweird.f32 %v2673
        %vm2680 = vmor %vm2678, %vm2679
        %v2681 = vsel %vm2680, %v2673, %v2677
        %v2682 = vand.u32 2147483647, %v2285
        %vm2683 = vcmp.eq.f32.partialorder %v2682, 8.507059e+37
        %v2684 = vand.u32 %v2285, 2147483648
        %v2685 = vor.u32 1.1754944e-38, %v2684
        %v2686 = vsel %vm2683, %v2685, %v2681
        %v2687 = vrcp.pop %v2286
        %v2688 = vmul.f32 %v2286, %v2687
        %v2689 = vsub.f32 1.0, %v2688
        %v2690 = vmul.f32 %v2687, %v2689
        %v2691 = vadd.f32 %v2687, %v2690
        %vm2692 = vweird.f32 %v2286
        %vm2693 = vweird.f32 %v2687
        %vm2694 = vmor %vm2692, %vm2693
        %v2695 = vsel %vm2694, %v2687, %v2691
        %v2696 = vand.u32 2147483647, %v2286
        %vm2697 = vcmp.eq.f32.partialorder %v2696, 8.507059e+37
        %v2698 = vand.u32 %v2286, 2147483648
        %v2699 = vor.u32 1.1754944e-38, %v2698
        %v2700 = vsel %vm2697, %v2699, %v2695
        %v2701 = vrcp.pop %v2287
        %v2702 = vmul.f32 %v2287, %v2701
        %v2703 = vsub.f32 1.0, %v2702
        %v2704 = vmul.f32 %v2701, %v2703
        %v2705 = vadd.f32 %v2701, %v2704
        %vm2706 = vweird.f32 %v2287
        %vm2707 = vweird.f32 %v2701
        %vm2708 = vmor %vm2706, %vm2707
        %v2709 = vsel %vm2708, %v2701, %v2705
        %v2710 = vand.u32 2147483647, %v2287
        %vm2711 = vcmp.eq.f32.partialorder %v2710, 8.507059e+37
        %v2712 = vand.u32 %v2287, 2147483648
        %v2713 = vor.u32 1.1754944e-38, %v2712
        %v2714 = vsel %vm2711, %v2713, %v2709
        %v2715 = vrcp.pop %v2288
        %v2716 = vmul.f32 %v2288, %v2715
        %v2717 = vsub.f32 1.0, %v2716
        %v2718 = vmul.f32 %v2715, %v2717
        %v2719 = vadd.f32 %v2715, %v2718
        %vm2720 = vweird.f32 %v2288
        %vm2721 = vweird.f32 %v2715
        %vm2722 = vmor %vm2720, %vm2721
        %v2723 = vsel %vm2722, %v2715, %v2719
        %v2724 = vand.u32 2147483647, %v2288
        %vm2725 = vcmp.eq.f32.partialorder %v2724, 8.507059e+37
        %v2726 = vand.u32 %v2288, 2147483648
        %v2727 = vor.u32 1.1754944e-38, %v2726
        %v2728 = vsel %vm2725, %v2727, %v2723
        %v2729 = vrcp.pop %v2289
        %v2730 = vmul.f32 %v2289, %v2729
        %v2731 = vsub.f32 1.0, %v2730
        %v2732 = vmul.f32 %v2729, %v2731
        %v2733 = vadd.f32 %v2729, %v2732
        %vm2734 = vweird.f32 %v2289
        %vm2735 = vweird.f32 %v2729
        %vm2736 = vmor %vm2734, %vm2735
        %v2737 = vsel %vm2736, %v2729, %v2733
        %v2738 = vand.u32 2147483647, %v2289
        %vm2739 = vcmp.eq.f32.partialorder %v2738, 8.507059e+37
        %v2740 = vand.u32 %v2289, 2147483648
        %v2741 = vor.u32 1.1754944e-38, %v2740
        %v2742 = vsel %vm2739, %v2741, %v2737
        %v2743 = vrcp.pop %v2290
        %v2744 = vmul.f32 %v2290, %v2743
        %v2745 = vsub.f32 1.0, %v2744
        %v2746 = vmul.f32 %v2743, %v2745
        %v2747 = vadd.f32 %v2743, %v2746
        %vm2748 = vweird.f32 %v2290
        %vm2749 = vweird.f32 %v2743
        %vm2750 = vmor %vm2748, %vm2749
        %v2751 = vsel %vm2750, %v2743, %v2747
        %v2752 = vand.u32 2147483647, %v2290
        %vm2753 = vcmp.eq.f32.partialorder %v2752, 8.507059e+37
        %v2754 = vand.u32 %v2290, 2147483648
        %v2755 = vor.u32 1.1754944e-38, %v2754
        %v2756 = vsel %vm2753, %v2755, %v2751
        %v2757 = vrcp.pop %v2291
        %v2758 = vmul.f32 %v2291, %v2757
        %v2759 = vsub.f32 1.0, %v2758
        %v2760 = vmul.f32 %v2757, %v2759
        %v2761 = vadd.f32 %v2757, %v2760
        %vm2762 = vweird.f32 %v2291
        %vm2763 = vweird.f32 %v2757
        %vm2764 = vmor %vm2762, %vm2763
        %v2765 = vsel %vm2764, %v2757, %v2761
        %v2766 = vand.u32 2147483647, %v2291
        %vm2767 = vcmp.eq.f32.partialorder %v2766, 8.507059e+37
        %v2768 = vand.u32 %v2291, 2147483648
        %v2769 = vor.u32 1.1754944e-38, %v2768
        %v2770 = vsel %vm2767, %v2769, %v2765
        %v2771 = vrcp.pop %v2292
        %v2772 = vmul.f32 %v2292, %v2771
        %v2773 = vsub.f32 1.0, %v2772
        %v2774 = vmul.f32 %v2771, %v2773
        %v2775 = vadd.f32 %v2771, %v2774
        %vm2776 = vweird.f32 %v2292
        %vm2777 = vweird.f32 %v2771
        %vm2778 = vmor %vm2776, %vm2777
        %v2779 = vsel %vm2778, %v2771, %v2775
        %v2780 = vand.u32 2147483647, %v2292
        %vm2781 = vcmp.eq.f32.partialorder %v2780, 8.507059e+37
        %v2782 = vand.u32 %v2292, 2147483648
        %v2783 = vor.u32 1.1754944e-38, %v2782
        %v2784 = vsel %vm2781, %v2783, %v2779
        %v2785 = vrcp.pop %v2293
        %v2786 = vmul.f32 %v2293, %v2785
        %v2787 = vsub.f32 1.0, %v2786
        %v2788 = vmul.f32 %v2785, %v2787
        %v2789 = vadd.f32 %v2785, %v2788
        %vm2790 = vweird.f32 %v2293
        %vm2791 = vweird.f32 %v2785
        %vm2792 = vmor %vm2790, %vm2791
        %v2793 = vsel %vm2792, %v2785, %v2789
        %v2794 = vand.u32 2147483647, %v2293
        %vm2795 = vcmp.eq.f32.partialorder %v2794, 8.507059e+37
        %v2796 = vand.u32 %v2293, 2147483648
        %v2797 = vor.u32 1.1754944e-38, %v2796
        %v2798 = vsel %vm2795, %v2797, %v2793
        %v2799 = vrcp.pop %v2294
        %v2800 = vmul.f32 %v2294, %v2799
        %v2801 = vsub.f32 1.0, %v2800
        %v2802 = vmul.f32 %v2799, %v2801
        %v2803 = vadd.f32 %v2799, %v2802
        %vm2804 = vweird.f32 %v2294
        %vm2805 = vweird.f32 %v2799
        %vm2806 = vmor %vm2804, %vm2805
        %v2807 = vsel %vm2806, %v2799, %v2803
        %v2808 = vand.u32 2147483647, %v2294
        %vm2809 = vcmp.eq.f32.partialorder %v2808, 8.507059e+37
        %v2810 = vand.u32 %v2294, 2147483648
        %v2811 = vor.u32 1.1754944e-38, %v2810
        %v2812 = vsel %vm2809, %v2811, %v2807
        %v2813 = vrcp.pop %v2295
        %v2814 = vmul.f32 %v2295, %v2813
        %v2815 = vsub.f32 1.0, %v2814
        %v2816 = vmul.f32 %v2813, %v2815
        %v2817 = vadd.f32 %v2813, %v2816
        %vm2818 = vweird.f32 %v2295
        %vm2819 = vweird.f32 %v2813
        %vm2820 = vmor %vm2818, %vm2819
        %v2821 = vsel %vm2820, %v2813, %v2817
        %v2822 = vand.u32 2147483647, %v2295
        %vm2823 = vcmp.eq.f32.partialorder %v2822, 8.507059e+37
        %v2824 = vand.u32 %v2295, 2147483648
        %v2825 = vor.u32 1.1754944e-38, %v2824
        %v2826 = vsel %vm2823, %v2825, %v2821
        %v2827 = vrcp.pop %v2296
        %v2828 = vmul.f32 %v2296, %v2827
        %v2829 = vsub.f32 1.0, %v2828
        %v2830 = vmul.f32 %v2827, %v2829
        %v2831 = vadd.f32 %v2827, %v2830
        %vm2832 = vweird.f32 %v2296
        %vm2833 = vweird.f32 %v2827
        %vm2834 = vmor %vm2832, %vm2833
        %v2835 = vsel %vm2834, %v2827, %v2831
        %v2836 = vand.u32 2147483647, %v2296
        %vm2837 = vcmp.eq.f32.partialorder %v2836, 8.507059e+37
        %v2838 = vand.u32 %v2296, 2147483648
        %v2839 = vor.u32 1.1754944e-38, %v2838
        %v2840 = vsel %vm2837, %v2839, %v2835
        %v2841 = vrcp.pop %v2297
        %v2842 = vmul.f32 %v2297, %v2841
        %v2843 = vsub.f32 1.0, %v2842
        %v2844 = vmul.f32 %v2841, %v2843
        %v2845 = vadd.f32 %v2841, %v2844
        %vm2846 = vweird.f32 %v2297
        %vm2847 = vweird.f32 %v2841
        %vm2848 = vmor %vm2846, %vm2847
        %v2849 = vsel %vm2848, %v2841, %v2845
        %v2850 = vand.u32 2147483647, %v2297
        %vm2851 = vcmp.eq.f32.partialorder %v2850, 8.507059e+37
        %v2852 = vand.u32 %v2297, 2147483648
        %v2853 = vor.u32 1.1754944e-38, %v2852
        %v2854 = vsel %vm2851, %v2853, %v2849
        %v2855 = vrcp.pop %v2298
        %v2856 = vmul.f32 %v2298, %v2855
        %v2857 = vsub.f32 1.0, %v2856
        %v2858 = vmul.f32 %v2855, %v2857
        %v2859 = vadd.f32 %v2855, %v2858
        %vm2860 = vweird.f32 %v2298
        %vm2861 = vweird.f32 %v2855
        %vm2862 = vmor %vm2860, %vm2861
        %v2863 = vsel %vm2862, %v2855, %v2859
        %v2864 = vand.u32 2147483647, %v2298
        %vm2865 = vcmp.eq.f32.partialorder %v2864, 8.507059e+37
        %v2866 = vand.u32 %v2298, 2147483648
        %v2867 = vor.u32 1.1754944e-38, %v2866
        %v2868 = vsel %vm2865, %v2867, %v2863
        %v2869 = vrcp.pop %v2299
        %v2870 = vmul.f32 %v2299, %v2869
        %v2871 = vsub.f32 1.0, %v2870
        %v2872 = vmul.f32 %v2869, %v2871
        %v2873 = vadd.f32 %v2869, %v2872
        %vm2874 = vweird.f32 %v2299
        %vm2875 = vweird.f32 %v2869
        %vm2876 = vmor %vm2874, %vm2875
        %v2877 = vsel %vm2876, %v2869, %v2873
        %v2878 = vand.u32 2147483647, %v2299
        %vm2879 = vcmp.eq.f32.partialorder %v2878, 8.507059e+37
        %v2880 = vand.u32 %v2299, 2147483648
        %v2881 = vor.u32 1.1754944e-38, %v2880
        %v2882 = vsel %vm2879, %v2881, %v2877
        %v2883 = vrcp.pop %v2300
        %v2884 = vmul.f32 %v2300, %v2883
        %v2885 = vsub.f32 1.0, %v2884
        %v2886 = vmul.f32 %v2883, %v2885
        %v2887 = vadd.f32 %v2883, %v2886
        %vm2888 = vweird.f32 %v2300
        %vm2889 = vweird.f32 %v2883
        %vm2890 = vmor %vm2888, %vm2889
        %v2891 = vsel %vm2890, %v2883, %v2887
        %v2892 = vand.u32 2147483647, %v2300
        %vm2893 = vcmp.eq.f32.partialorder %v2892, 8.507059e+37
        %v2894 = vand.u32 %v2300, 2147483648
        %v2895 = vor.u32 1.1754944e-38, %v2894
        %v2896 = vsel %vm2893, %v2895, %v2891
        %v2897 = vrcp.pop %v2301
        %v2898 = vmul.f32 %v2301, %v2897
        %v2899 = vsub.f32 1.0, %v2898
        %v2900 = vmul.f32 %v2897, %v2899
        %v2901 = vadd.f32 %v2897, %v2900
        %vm2902 = vweird.f32 %v2301
        %vm2903 = vweird.f32 %v2897
        %vm2904 = vmor %vm2902, %vm2903
        %v2905 = vsel %vm2904, %v2897, %v2901
        %v2906 = vand.u32 2147483647, %v2301
        %vm2907 = vcmp.eq.f32.partialorder %v2906, 8.507059e+37
        %v2908 = vand.u32 %v2301, 2147483648
        %v2909 = vor.u32 1.1754944e-38, %v2908
        %v2910 = vsel %vm2907, %v2909, %v2905
        %v2911 = vrcp.pop %v2302
        %v2912 = vmul.f32 %v2302, %v2911
        %v2913 = vsub.f32 1.0, %v2912
        %v2914 = vmul.f32 %v2911, %v2913
        %v2915 = vadd.f32 %v2911, %v2914
        %vm2916 = vweird.f32 %v2302
        %vm2917 = vweird.f32 %v2911
        %vm2918 = vmor %vm2916, %vm2917
        %v2919 = vsel %vm2918, %v2911, %v2915
        %v2920 = vand.u32 2147483647, %v2302
        %vm2921 = vcmp.eq.f32.partialorder %v2920, 8.507059e+37
        %v2922 = vand.u32 %v2302, 2147483648
        %v2923 = vor.u32 1.1754944e-38, %v2922
        %v2924 = vsel %vm2921, %v2923, %v2919
        %v2925 = vrcp.pop %v2303
        %v2926 = vmul.f32 %v2303, %v2925
        %v2927 = vsub.f32 1.0, %v2926
        %v2928 = vmul.f32 %v2925, %v2927
        %v2929 = vadd.f32 %v2925, %v2928
        %vm2930 = vweird.f32 %v2303
        %vm2931 = vweird.f32 %v2925
        %vm2932 = vmor %vm2930, %vm2931
        %v2933 = vsel %vm2932, %v2925, %v2929
        %v2934 = vand.u32 2147483647, %v2303
        %vm2935 = vcmp.eq.f32.partialorder %v2934, 8.507059e+37
        %v2936 = vand.u32 %v2303, 2147483648
        %v2937 = vor.u32 1.1754944e-38, %v2936
        %v2938 = vsel %vm2935, %v2937, %v2933
        %v2939 = vrcp.pop %v2304
        %v2940 = vmul.f32 %v2304, %v2939
        %v2941 = vsub.f32 1.0, %v2940
        %v2942 = vmul.f32 %v2939, %v2941
        %v2943 = vadd.f32 %v2939, %v2942
        %vm2944 = vweird.f32 %v2304
        %vm2945 = vweird.f32 %v2939
        %vm2946 = vmor %vm2944, %vm2945
        %v2947 = vsel %vm2946, %v2939, %v2943
        %v2948 = vand.u32 2147483647, %v2304
        %vm2949 = vcmp.eq.f32.partialorder %v2948, 8.507059e+37
        %v2950 = vand.u32 %v2304, 2147483648
        %v2951 = vor.u32 1.1754944e-38, %v2950
        %v2952 = vsel %vm2949, %v2951, %v2947
        %v2953 = vrcp.pop %v2305
        %v2954 = vmul.f32 %v2305, %v2953
        %v2955 = vsub.f32 1.0, %v2954
        %v2956 = vmul.f32 %v2953, %v2955
        %v2957 = vadd.f32 %v2953, %v2956
        %vm2958 = vweird.f32 %v2305
        %vm2959 = vweird.f32 %v2953
        %vm2960 = vmor %vm2958, %vm2959
        %v2961 = vsel %vm2960, %v2953, %v2957
        %v2962 = vand.u32 2147483647, %v2305
        %vm2963 = vcmp.eq.f32.partialorder %v2962, 8.507059e+37
        %v2964 = vand.u32 %v2305, 2147483648
        %v2965 = vor.u32 1.1754944e-38, %v2964
        %v2966 = vsel %vm2963, %v2965, %v2961
        %v2967 = vrcp.pop %v2306
        %v2968 = vmul.f32 %v2306, %v2967
        %v2969 = vsub.f32 1.0, %v2968
        %v2970 = vmul.f32 %v2967, %v2969
        %v2971 = vadd.f32 %v2967, %v2970
        %vm2972 = vweird.f32 %v2306
        %vm2973 = vweird.f32 %v2967
        %vm2974 = vmor %vm2972, %vm2973
        %v2975 = vsel %vm2974, %v2967, %v2971
        %v2976 = vand.u32 2147483647, %v2306
        %vm2977 = vcmp.eq.f32.partialorder %v2976, 8.507059e+37
        %v2978 = vand.u32 %v2306, 2147483648
        %v2979 = vor.u32 1.1754944e-38, %v2978
        %v2980 = vsel %vm2977, %v2979, %v2975
        %v2981 = vrcp.pop %v2307
        %v2982 = vmul.f32 %v2307, %v2981
        %v2983 = vsub.f32 1.0, %v2982
        %v2984 = vmul.f32 %v2981, %v2983
        %v2985 = vadd.f32 %v2981, %v2984
        %vm2986 = vweird.f32 %v2307
        %vm2987 = vweird.f32 %v2981
        %vm2988 = vmor %vm2986, %vm2987
        %v2989 = vsel %vm2988, %v2981, %v2985
        %v2990 = vand.u32 2147483647, %v2307
        %vm2991 = vcmp.eq.f32.partialorder %v2990, 8.507059e+37
        %v2992 = vand.u32 %v2307, 2147483648
        %v2993 = vor.u32 1.1754944e-38, %v2992
        %v2994 = vsel %vm2991, %v2993, %v2989
        %v2995 = vrcp.pop %v2308
        %v2996 = vmul.f32 %v2308, %v2995
        %v2997 = vsub.f32 1.0, %v2996
        %v2998 = vmul.f32 %v2995, %v2997
        %v2999 = vadd.f32 %v2995, %v2998
        %vm3000 = vweird.f32 %v2308
        %vm3001 = vweird.f32 %v2995
        %vm3002 = vmor %vm3000, %vm3001
        %v3003 = vsel %vm3002, %v2995, %v2999
        %v3004 = vand.u32 2147483647, %v2308
        %vm3005 = vcmp.eq.f32.partialorder %v3004, 8.507059e+37
        %v3006 = vand.u32 %v2308, 2147483648
        %v3007 = vor.u32 1.1754944e-38, %v3006
        %v3008 = vsel %vm3005, %v3007, %v3003
        %v3009 = vrcp.pop %v2309
        %v3010 = vmul.f32 %v2309, %v3009
        %v3011 = vsub.f32 1.0, %v3010
        %v3012 = vmul.f32 %v3009, %v3011
        %v3013 = vadd.f32 %v3009, %v3012
        %vm3014 = vweird.f32 %v2309
        %vm3015 = vweird.f32 %v3009
        %vm3016 = vmor %vm3014, %vm3015
        %v3017 = vsel %vm3016, %v3009, %v3013
        %v3018 = vand.u32 2147483647, %v2309
        %vm3019 = vcmp.eq.f32.partialorder %v3018, 8.507059e+37
        %v3020 = vand.u32 %v2309, 2147483648
        %v3021 = vor.u32 1.1754944e-38, %v3020
        %v3022 = vsel %vm3019, %v3021, %v3017
        %v3023 = vrcp.pop %v2310
        %v3024 = vmul.f32 %v2310, %v3023
        %v3025 = vsub.f32 1.0, %v3024
        %v3026 = vmul.f32 %v3023, %v3025
        %v3027 = vadd.f32 %v3023, %v3026
        %vm3028 = vweird.f32 %v2310
        %vm3029 = vweird.f32 %v3023
        %vm3030 = vmor %vm3028, %vm3029
        %v3031 = vsel %vm3030, %v3023, %v3027
        %v3032 = vand.u32 2147483647, %v2310
        %vm3033 = vcmp.eq.f32.partialorder %v3032, 8.507059e+37
        %v3034 = vand.u32 %v2310, 2147483648
        %v3035 = vor.u32 1.1754944e-38, %v3034
        %v3036 = vsel %vm3033, %v3035, %v3031
        %v3037 = vrcp.pop %v2311
        %v3038 = vmul.f32 %v2311, %v3037
        %v3039 = vsub.f32 1.0, %v3038
        %v3040 = vmul.f32 %v3037, %v3039
        %v3041 = vadd.f32 %v3037, %v3040
        %vm3042 = vweird.f32 %v2311
        %vm3043 = vweird.f32 %v3037
        %vm3044 = vmor %vm3042, %vm3043
        %v3045 = vsel %vm3044, %v3037, %v3041
        %v3046 = vand.u32 2147483647, %v2311
        %vm3047 = vcmp.eq.f32.partialorder %v3046, 8.507059e+37
        %v3048 = vand.u32 %v2311, 2147483648
        %v3049 = vor.u32 1.1754944e-38, %v3048
        %v3050 = vsel %vm3047, %v3049, %v3045
        %v3051 = vrcp.pop %v2312
        %v3052 = vmul.f32 %v2312, %v3051
        %v3053 = vsub.f32 1.0, %v3052
        %v3054 = vmul.f32 %v3051, %v3053
        %v3055 = vadd.f32 %v3051, %v3054
        %vm3056 = vweird.f32 %v2312
        %vm3057 = vweird.f32 %v3051
        %vm3058 = vmor %vm3056, %vm3057
        %v3059 = vsel %vm3058, %v3051, %v3055
        %v3060 = vand.u32 2147483647, %v2312
        %vm3061 = vcmp.eq.f32.partialorder %v3060, 8.507059e+37
        %v3062 = vand.u32 %v2312, 2147483648
        %v3063 = vor.u32 1.1754944e-38, %v3062
        %v3064 = vsel %vm3061, %v3063, %v3059
        %v3065 = vrcp.pop %v2313
        %v3066 = vmul.f32 %v2313, %v3065
        %v3067 = vsub.f32 1.0, %v3066
        %v3068 = vmul.f32 %v3065, %v3067
        %v3069 = vadd.f32 %v3065, %v3068
        %vm3070 = vweird.f32 %v2313
        %vm3071 = vweird.f32 %v3065
        %vm3072 = vmor %vm3070, %vm3071
        %v3073 = vsel %vm3072, %v3065, %v3069
        %v3074 = vand.u32 2147483647, %v2313
        %vm3075 = vcmp.eq.f32.partialorder %v3074, 8.507059e+37
        %v3076 = vand.u32 %v2313, 2147483648
        %v3077 = vor.u32 1.1754944e-38, %v3076
        %v3078 = vsel %vm3075, %v3077, %v3073
        %v3079 = vrcp.pop %v2314
        %v3080 = vmul.f32 %v2314, %v3079
        %v3081 = vsub.f32 1.0, %v3080
        %v3082 = vmul.f32 %v3079, %v3081
        %v3083 = vadd.f32 %v3079, %v3082
        %vm3084 = vweird.f32 %v2314
        %vm3085 = vweird.f32 %v3079
        %vm3086 = vmor %vm3084, %vm3085
        %v3087 = vsel %vm3086, %v3079, %v3083
        %v3088 = vand.u32 2147483647, %v2314
        %vm3089 = vcmp.eq.f32.partialorder %v3088, 8.507059e+37
        %v3090 = vand.u32 %v2314, 2147483648
        %v3091 = vor.u32 1.1754944e-38, %v3090
        %v3092 = vsel %vm3089, %v3091, %v3087
        %v3093 = vrcp.pop %v2315
        %v3094 = vmul.f32 %v2315, %v3093
        %v3095 = vsub.f32 1.0, %v3094
        %v3096 = vmul.f32 %v3093, %v3095
        %v3097 = vadd.f32 %v3093, %v3096
        %vm3098 = vweird.f32 %v2315
        %vm3099 = vweird.f32 %v3093
        %vm3100 = vmor %vm3098, %vm3099
        %v3101 = vsel %vm3100, %v3093, %v3097
        %v3102 = vand.u32 2147483647, %v2315
        %vm3103 = vcmp.eq.f32.partialorder %v3102, 8.507059e+37
        %v3104 = vand.u32 %v2315, 2147483648
        %v3105 = vor.u32 1.1754944e-38, %v3104
        %v3106 = vsel %vm3103, %v3105, %v3101
        %v3107 = vrcp.pop %v2316
        %v3108 = vmul.f32 %v2316, %v3107
        %v3109 = vsub.f32 1.0, %v3108
        %v3110 = vmul.f32 %v3107, %v3109
        %v3111 = vadd.f32 %v3107, %v3110
        %vm3112 = vweird.f32 %v2316
        %vm3113 = vweird.f32 %v3107
        %vm3114 = vmor %vm3112, %vm3113
        %v3115 = vsel %vm3114, %v3107, %v3111
        %v3116 = vand.u32 2147483647, %v2316
        %vm3117 = vcmp.eq.f32.partialorder %v3116, 8.507059e+37
        %v3118 = vand.u32 %v2316, 2147483648
        %v3119 = vor.u32 1.1754944e-38, %v3118
        %v3120 = vsel %vm3117, %v3119, %v3115
        %v3121 = vrcp.pop %v2317
        %v3122 = vmul.f32 %v2317, %v3121
        %v3123 = vsub.f32 1.0, %v3122
        %v3124 = vmul.f32 %v3121, %v3123
        %v3125 = vadd.f32 %v3121, %v3124
        %vm3126 = vweird.f32 %v2317
        %vm3127 = vweird.f32 %v3121
        %vm3128 = vmor %vm3126, %vm3127
        %v3129 = vsel %vm3128, %v3121, %v3125
        %v3130 = vand.u32 2147483647, %v2317
        %vm3131 = vcmp.eq.f32.partialorder %v3130, 8.507059e+37
        %v3132 = vand.u32 %v2317, 2147483648
        %v3133 = vor.u32 1.1754944e-38, %v3132
        %v3134 = vsel %vm3131, %v3133, %v3129
        %v3135 = vrcp.pop %v2318
        %v3136 = vmul.f32 %v2318, %v3135
        %v3137 = vsub.f32 1.0, %v3136
        %v3138 = vmul.f32 %v3135, %v3137
        %v3139 = vadd.f32 %v3135, %v3138
        %vm3140 = vweird.f32 %v2318
        %vm3141 = vweird.f32 %v3135
        %vm3142 = vmor %vm3140, %vm3141
        %v3143 = vsel %vm3142, %v3135, %v3139
        %v3144 = vand.u32 2147483647, %v2318
        %vm3145 = vcmp.eq.f32.partialorder %v3144, 8.507059e+37
        %v3146 = vand.u32 %v2318, 2147483648
        %v3147 = vor.u32 1.1754944e-38, %v3146
        %v3148 = vsel %vm3145, %v3147, %v3143
        %v3149 = vrcp.pop %v2319
        %v3150 = vmul.f32 %v2319, %v3149
        %v3151 = vsub.f32 1.0, %v3150
        %v3152 = vmul.f32 %v3149, %v3151
        %v3153 = vadd.f32 %v3149, %v3152
        %vm3154 = vweird.f32 %v2319
        %vm3155 = vweird.f32 %v3149
        %vm3156 = vmor %vm3154, %vm3155
        %v3157 = vsel %vm3156, %v3149, %v3153
        %v3158 = vand.u32 2147483647, %v2319
        %vm3159 = vcmp.eq.f32.partialorder %v3158, 8.507059e+37
        %v3160 = vand.u32 %v2319, 2147483648
        %v3161 = vor.u32 1.1754944e-38, %v3160
        %v3162 = vsel %vm3159, %v3161, %v3157
        %v3163 = vrcp.pop %v2320
        %v3164 = vmul.f32 %v2320, %v3163
        %v3165 = vsub.f32 1.0, %v3164
        %v3166 = vmul.f32 %v3163, %v3165
        %v3167 = vadd.f32 %v3163, %v3166
        %vm3168 = vweird.f32 %v2320
        %vm3169 = vweird.f32 %v3163
        %vm3170 = vmor %vm3168, %vm3169
        %v3171 = vsel %vm3170, %v3163, %v3167
        %v3172 = vand.u32 2147483647, %v2320
        %vm3173 = vcmp.eq.f32.partialorder %v3172, 8.507059e+37
        %v3174 = vand.u32 %v2320, 2147483648
        %v3175 = vor.u32 1.1754944e-38, %v3174
        %v3176 = vsel %vm3173, %v3175, %v3171
        %v3177 = vrcp.pop %v2321
        %v3178 = vmul.f32 %v2321, %v3177
        %v3179 = vsub.f32 1.0, %v3178
        %v3180 = vmul.f32 %v3177, %v3179
        %v3181 = vadd.f32 %v3177, %v3180
        %vm3182 = vweird.f32 %v2321
        %vm3183 = vweird.f32 %v3177
        %vm3184 = vmor %vm3182, %vm3183
        %v3185 = vsel %vm3184, %v3177, %v3181
        %v3186 = vand.u32 2147483647, %v2321
        %vm3187 = vcmp.eq.f32.partialorder %v3186, 8.507059e+37
        %v3188 = vand.u32 %v2321, 2147483648
        %v3189 = vor.u32 1.1754944e-38, %v3188
        %v3190 = vsel %vm3187, %v3189, %v3185
        %v3191 = vrcp.pop %v2322
        %v3192 = vmul.f32 %v2322, %v3191
        %v3193 = vsub.f32 1.0, %v3192
        %v3194 = vmul.f32 %v3191, %v3193
        %v3195 = vadd.f32 %v3191, %v3194
        %vm3196 = vweird.f32 %v2322
        %vm3197 = vweird.f32 %v3191
        %vm3198 = vmor %vm3196, %vm3197
        %v3199 = vsel %vm3198, %v3191, %v3195
        %v3200 = vand.u32 2147483647, %v2322
        %vm3201 = vcmp.eq.f32.partialorder %v3200, 8.507059e+37
        %v3202 = vand.u32 %v2322, 2147483648
        %v3203 = vor.u32 1.1754944e-38, %v3202
        %v3204 = vsel %vm3201, %v3203, %v3199
        %v3205 = vrcp.pop %v2323
        %v3206 = vmul.f32 %v2323, %v3205
        %v3207 = vsub.f32 1.0, %v3206
        %v3208 = vmul.f32 %v3205, %v3207
        %v3209 = vadd.f32 %v3205, %v3208
        %vm3210 = vweird.f32 %v2323
        %vm3211 = vweird.f32 %v3205
        %vm3212 = vmor %vm3210, %vm3211
        %v3213 = vsel %vm3212, %v3205, %v3209
        %v3214 = vand.u32 2147483647, %v2323
        %vm3215 = vcmp.eq.f32.partialorder %v3214, 8.507059e+37
        %v3216 = vand.u32 %v2323, 2147483648
        %v3217 = vor.u32 1.1754944e-38, %v3216
        %v3218 = vsel %vm3215, %v3217, %v3213
        %v3219 = vrcp.pop %v2324
        %v3220 = vmul.f32 %v2324, %v3219
        %v3221 = vsub.f32 1.0, %v3220
        %v3222 = vmul.f32 %v3219, %v3221
        %v3223 = vadd.f32 %v3219, %v3222
        %vm3224 = vweird.f32 %v2324
        %vm3225 = vweird.f32 %v3219
        %vm3226 = vmor %vm3224, %vm3225
        %v3227 = vsel %vm3226, %v3219, %v3223
        %v3228 = vand.u32 2147483647, %v2324
        %vm3229 = vcmp.eq.f32.partialorder %v3228, 8.507059e+37
        %v3230 = vand.u32 %v2324, 2147483648
        %v3231 = vor.u32 1.1754944e-38, %v3230
        %v3232 = vsel %vm3229, %v3231, %v3227
        %v3233 = vrcp.pop %v2325
        %v3234 = vmul.f32 %v2325, %v3233
        %v3235 = vsub.f32 1.0, %v3234
        %v3236 = vmul.f32 %v3233, %v3235
        %v3237 = vadd.f32 %v3233, %v3236
        %vm3238 = vweird.f32 %v2325
        %vm3239 = vweird.f32 %v3233
        %vm3240 = vmor %vm3238, %vm3239
        %v3241 = vsel %vm3240, %v3233, %v3237
        %v3242 = vand.u32 2147483647, %v2325
        %vm3243 = vcmp.eq.f32.partialorder %v3242, 8.507059e+37
        %v3244 = vand.u32 %v2325, 2147483648
        %v3245 = vor.u32 1.1754944e-38, %v3244
        %v3246 = vsel %vm3243, %v3245, %v3241
        %v3247 = vrcp.pop %v2326
        %v3248 = vmul.f32 %v2326, %v3247
        %v3249 = vsub.f32 1.0, %v3248
        %v3250 = vmul.f32 %v3247, %v3249
        %v3251 = vadd.f32 %v3247, %v3250
        %vm3252 = vweird.f32 %v2326
        %vm3253 = vweird.f32 %v3247
        %vm3254 = vmor %vm3252, %vm3253
        %v3255 = vsel %vm3254, %v3247, %v3251
        %v3256 = vand.u32 2147483647, %v2326
        %vm3257 = vcmp.eq.f32.partialorder %v3256, 8.507059e+37
        %v3258 = vand.u32 %v2326, 2147483648
        %v3259 = vor.u32 1.1754944e-38, %v3258
        %v3260 = vsel %vm3257, %v3259, %v3255
        %v3261 = vrcp.pop %v2327
        %v3262 = vmul.f32 %v2327, %v3261
        %v3263 = vsub.f32 1.0, %v3262
        %v3264 = vmul.f32 %v3261, %v3263
        %v3265 = vadd.f32 %v3261, %v3264
        %vm3266 = vweird.f32 %v2327
        %vm3267 = vweird.f32 %v3261
        %vm3268 = vmor %vm3266, %vm3267
        %v3269 = vsel %vm3268, %v3261, %v3265
        %v3270 = vand.u32 2147483647, %v2327
        %vm3271 = vcmp.eq.f32.partialorder %v3270, 8.507059e+37
        %v3272 = vand.u32 %v2327, 2147483648
        %v3273 = vor.u32 1.1754944e-38, %v3272
        %v3274 = vsel %vm3271, %v3273, %v3269
        %v3275 = vrcp.pop %v2328
        %v3276 = vmul.f32 %v2328, %v3275
        %v3277 = vsub.f32 1.0, %v3276
        %v3278 = vmul.f32 %v3275, %v3277
        %v3279 = vadd.f32 %v3275, %v3278
        %vm3280 = vweird.f32 %v2328
        %vm3281 = vweird.f32 %v3275
        %vm3282 = vmor %vm3280, %vm3281
        %v3283 = vsel %vm3282, %v3275, %v3279
        %v3284 = vand.u32 2147483647, %v2328
        %vm3285 = vcmp.eq.f32.partialorder %v3284, 8.507059e+37
        %v3286 = vand.u32 %v2328, 2147483648
        %v3287 = vor.u32 1.1754944e-38, %v3286
        %v3288 = vsel %vm3285, %v3287, %v3283
        %v3289 = vmul.f32 %v2329, %v2406
        %v3290 = vmul.f32 %v2330, %v2420
        %v3291 = vmul.f32 %v2331, %v2434
        %v3292 = vmul.f32 %v2332, %v2448
        %v3293 = vmul.f32 %v2333, %v2462
        %v3294 = vmul.f32 %v2334, %v2476
        %v3295 = vmul.f32 %v2335, %v2490
        %v3296 = vmul.f32 %v2336, %v2504
        %v3297 = vmul.f32 %v2337, %v2518
        %v3298 = vmul.f32 %v2338, %v2532
        %v3299 = vmul.f32 %v2339, %v2546
        %v3300 = vmul.f32 %v2340, %v2560
        %v3301 = vmul.f32 %v2341, %v2574
        %v3302 = vmul.f32 %v2342, %v2588
        %v3303 = vmul.f32 %v2343, %v2602
        %v3304 = vmul.f32 %v2344, %v2616
        %v3305 = vmul.f32 %v2345, %v2630
        %v3306 = vmul.f32 %v2346, %v2644
        %v3307 = vmul.f32 %v2347, %v2658
        %v3308 = vmul.f32 %v2348, %v2672
        %v3309 = vmul.f32 %v2349, %v2686
        %v3310 = vmul.f32 %v2350, %v2700
        %v3311 = vmul.f32 %v2351, %v2714
        %v3312 = vmul.f32 %v2352, %v2728
        %v3313 = vmul.f32 %v2353, %v2742
        %v3314 = vmul.f32 %v2354, %v2756
        %v3315 = vmul.f32 %v2355, %v2770
        %v3316 = vmul.f32 %v2356, %v2784
        %v3317 = vmul.f32 %v2357, %v2798
        %v3318 = vmul.f32 %v2358, %v2812
        %v3319 = vmul.f32 %v2359, %v2826
        %v3320 = vmul.f32 %v2360, %v2840
        %v3321 = vmul.f32 %v2361, %v2854
        %v3322 = vmul.f32 %v2362, %v2868
        %v3323 = vmul.f32 %v2363, %v2882
        %v3324 = vmul.f32 %v2364, %v2896
        %v3325 = vmul.f32 %v2365, %v2910
        %v3326 = vmul.f32 %v2366, %v2924
        %v3327 = vmul.f32 %v2367, %v2938
        %v3328 = vmul.f32 %v2368, %v2952
        %v3329 = vmul.f32 %v2369, %v2966
        %v3330 = vmul.f32 %v2370, %v2980
        %v3331 = vmul.f32 %v2371, %v2994
        %v3332 = vmul.f32 %v2372, %v3008
        %v3333 = vmul.f32 %v2373, %v3022
        %v3334 = vmul.f32 %v2374, %v3036
        %v3335 = vmul.f32 %v2375, %v3050
        %v3336 = vmul.f32 %v2376, %v3064
        %v3337 = vmul.f32 %v2377, %v3078
        %v3338 = vmul.f32 %v2378, %v3092
        %v3339 = vmul.f32 %v2379, %v3106
        %v3340 = vmul.f32 %v2380, %v3120
        %v3341 = vmul.f32 %v2381, %v3134
        %v3342 = vmul.f32 %v2382, %v3148
        %v3343 = vmul.f32 %v2383, %v3162
        %v3344 = vmul.f32 %v2384, %v3176
        %v3345 = vmul.f32 %v2385, %v3190
        %v3346 = vmul.f32 %v2386, %v3204
        %v3347 = vmul.f32 %v2387, %v3218
        %v3348 = vmul.f32 %v2388, %v3232
        %v3349 = vmul.f32 %v2389, %v3246
        %v3350 = vmul.f32 %v2390, %v3260
        %v3351 = vmul.f32 %v2391, %v3274
        %v3352 = vmul.f32 %v2392, %v3288
        %v3353 = vsub.f32 %v1786, %v3289
        %v3354 = vsub.f32 %v1788, %v3290
        %v3355 = vsub.f32 %v1791, %v3291
        %v3356 = vsub.f32 %v1793, %v3292
        %v3357 = vsub.f32 %v1796, %v3293
        %v3358 = vsub.f32 %v1798, %v3294
        %v3359 = vsub.f32 %v1801, %v3295
        %v3360 = vsub.f32 %v1803, %v3296
        %v3361 = vsub.f32 %v1806, %v3297
        %v3362 = vsub.f32 %v1808, %v3298
        %v3363 = vsub.f32 %v1811, %v3299
        %v3364 = vsub.f32 %v1813, %v3300
        %v3365 = vsub.f32 %v1816, %v3301
        %v3366 = vsub.f32 %v1818, %v3302
        %v3367 = vsub.f32 %v1821, %v3303
        %v3368 = vsub.f32 %v1823, %v3304
        %v3369 = vsub.f32 %v1826, %v3305
        %v3370 = vsub.f32 %v1828, %v3306
        %v3371 = vsub.f32 %v1831, %v3307
        %v3372 = vsub.f32 %v1833, %v3308
        %v3373 = vsub.f32 %v1836, %v3309
        %v3374 = vsub.f32 %v1838, %v3310
        %v3375 = vsub.f32 %v1841, %v3311
        %v3376 = vsub.f32 %v1843, %v3312
        %v3377 = vsub.f32 %v1846, %v3313
        %v3378 = vsub.f32 %v1848, %v3314
        %v3379 = vsub.f32 %v1851, %v3315
        %v3380 = vsub.f32 %v1853, %v3316
        %v3381 = vsub.f32 %v1856, %v3317
        %v3382 = vsub.f32 %v1858, %v3318
        %v3383 = vsub.f32 %v1861, %v3319
        %v3384 = vsub.f32 %v1863, %v3320
        %v3385 = vsub.f32 %v1866, %v3321
        %v3386 = vsub.f32 %v1868, %v3322
        %v3387 = vsub.f32 %v1871, %v3323
        %v3388 = vsub.f32 %v1873, %v3324
        %v3389 = vsub.f32 %v1876, %v3325
        %v3390 = vsub.f32 %v1878, %v3326
        %v3391 = vsub.f32 %v1881, %v3327
        %v3392 = vsub.f32 %v1883, %v3328
        %v3393 = vsub.f32 %v1886, %v3329
        %v3394 = vsub.f32 %v1888, %v3330
        %v3395 = vsub.f32 %v1891, %v3331
        %v3396 = vsub.f32 %v1893, %v3332
        %v3397 = vsub.f32 %v1896, %v3333
        %v3398 = vsub.f32 %v1898, %v3334
        %v3399 = vsub.f32 %v1901, %v3335
        %v3400 = vsub.f32 %v1903, %v3336
        %v3401 = vsub.f32 %v1906, %v3337
        %v3402 = vsub.f32 %v1908, %v3338
        %v3403 = vsub.f32 %v1911, %v3339
        %v3404 = vsub.f32 %v1913, %v3340
        %v3405 = vsub.f32 %v1916, %v3341
        %v3406 = vsub.f32 %v1918, %v3342
        %v3407 = vsub.f32 %v1921, %v3343
        %v3408 = vsub.f32 %v1923, %v3344
        %v3409 = vsub.f32 %v1926, %v3345
        %v3410 = vsub.f32 %v1928, %v3346
        %v3411 = vsub.f32 %v1931, %v3347
        %v3412 = vsub.f32 %v1933, %v3348
        %v3413 = vsub.f32 %v1936, %v3349
        %v3414 = vsub.f32 %v1938, %v3350
        %v3415 = vsub.f32 %v1941, %v3351
        %v3416 = vsub.f32 %v1943, %v3352
        %3417 = vst [vmem:[%s377] sm:$0xff] %v3353
        %3418 = vst [vmem:[%s377 + $0x10] sm:$0xff] %v3354
        %3419 = vst [vmem:[%s377 + $0x20] sm:$0xff] %v3355
        %3420 = vst [vmem:[%s377 + $0x30] sm:$0xff] %v3356
        %3421 = vst [vmem:[%s377 + $0x40] sm:$0xff] %v3357
        %3422 = vst [vmem:[%s377 + $0x50] sm:$0xff] %v3358
        %3423 = vst [vmem:[%s377 + $0x60] sm:$0xff] %v3359
        %3424 = vst [vmem:[%s377 + $0x70] sm:$0xff] %v3360
        %3425 = vst [vmem:[%s377 + $0x80] sm:$0xff] %v3361
        %3426 = vst [vmem:[%s377 + $0x90] sm:$0xff] %v3362
        %3427 = vst [vmem:[%s377 + $0xa0] sm:$0xff] %v3363
        %3428 = vst [vmem:[%s377 + $0xb0] sm:$0xff] %v3364
        %3429 = vst [vmem:[%s377 + $0xc0] sm:$0xff] %v3365
        %3430 = vst [vmem:[%s377 + $0xd0] sm:$0xff] %v3366
        %3431 = vst [vmem:[%s377 + $0xe0] sm:$0xff] %v3367
        %3432 = vst [vmem:[%s377 + $0xf0] sm:$0xff] %v3368
        %3433 = vst [vmem:[%s377 + $0x100] sm:$0xff] %v3369
        %3434 = vst [vmem:[%s377 + $0x110] sm:$0xff] %v3370
        %3435 = vst [vmem:[%s377 + $0x120] sm:$0xff] %v3371
        %3436 = vst [vmem:[%s377 + $0x130] sm:$0xff] %v3372
        %3437 = vst [vmem:[%s377 + $0x140] sm:$0xff] %v3373
        %3438 = vst [vmem:[%s377 + $0x150] sm:$0xff] %v3374
        %3439 = vst [vmem:[%s377 + $0x160] sm:$0xff] %v3375
        %3440 = vst [vmem:[%s377 + $0x170] sm:$0xff] %v3376
        %3441 = vst [vmem:[%s377 + $0x180] sm:$0xff] %v3377
        %3442 = vst [vmem:[%s377 + $0x190] sm:$0xff] %v3378
        %3443 = vst [vmem:[%s377 + $0x1a0] sm:$0xff] %v3379
        %3444 = vst [vmem:[%s377 + $0x1b0] sm:$0xff] %v3380
        %3445 = vst [vmem:[%s377 + $0x1c0] sm:$0xff] %v3381
        %3446 = vst [vmem:[%s377 + $0x1d0] sm:$0xff] %v3382
        %3447 = vst [vmem:[%s377 + $0x1e0] sm:$0xff] %v3383
        %3448 = vst [vmem:[%s377 + $0x1f0] sm:$0xff] %v3384
        %3449 = vst [vmem:[%s377 + $0x200] sm:$0xff] %v3385
        %3450 = vst [vmem:[%s377 + $0x210] sm:$0xff] %v3386
        %3451 = vst [vmem:[%s377 + $0x220] sm:$0xff] %v3387
        %3452 = vst [vmem:[%s377 + $0x230] sm:$0xff] %v3388
        %3453 = vst [vmem:[%s377 + $0x240] sm:$0xff] %v3389
        %3454 = vst [vmem:[%s377 + $0x250] sm:$0xff] %v3390
        %3455 = vst [vmem:[%s377 + $0x260] sm:$0xff] %v3391
        %3456 = vst [vmem:[%s377 + $0x270] sm:$0xff] %v3392
        %3457 = vst [vmem:[%s377 + $0x280] sm:$0xff] %v3393
        %3458 = vst [vmem:[%s377 + $0x290] sm:$0xff] %v3394
        %3459 = vst [vmem:[%s377 + $0x2a0] sm:$0xff] %v3395
        %3460 = vst [vmem:[%s377 + $0x2b0] sm:$0xff] %v3396
        %3461 = vst [vmem:[%s377 + $0x2c0] sm:$0xff] %v3397
        %3462 = vst [vmem:[%s377 + $0x2d0] sm:$0xff] %v3398
        %3463 = vst [vmem:[%s377 + $0x2e0] sm:$0xff] %v3399
        %3464 = vst [vmem:[%s377 + $0x2f0] sm:$0xff] %v3400
        %3465 = vst [vmem:[%s377 + $0x300] sm:$0xff] %v3401
        %3466 = vst [vmem:[%s377 + $0x310] sm:$0xff] %v3402
        %3467 = vst [vmem:[%s377 + $0x320] sm:$0xff] %v3403
        %3468 = vst [vmem:[%s377 + $0x330] sm:$0xff] %v3404
        %3469 = vst [vmem:[%s377 + $0x340] sm:$0xff] %v3405
        %3470 = vst [vmem:[%s377 + $0x350] sm:$0xff] %v3406
        %3471 = vst [vmem:[%s377 + $0x360] sm:$0xff] %v3407
        %3472 = vst [vmem:[%s377 + $0x370] sm:$0xff] %v3408
        %3473 = vst [vmem:[%s377 + $0x380] sm:$0xff] %v3409
        %3474 = vst [vmem:[%s377 + $0x390] sm:$0xff] %v3410
        %3475 = vst [vmem:[%s377 + $0x3a0] sm:$0xff] %v3411
        %3476 = vst [vmem:[%s377 + $0x3b0] sm:$0xff] %v3412
        %3477 = vst [vmem:[%s377 + $0x3c0] sm:$0xff] %v3413
        %3478 = vst [vmem:[%s377 + $0x3d0] sm:$0xff] %v3414
        %3479 = vst [vmem:[%s377 + $0x3e0] sm:$0xff] %v3415
        %3480 = vst [vmem:[%s377 + $0x3f0] sm:$0xff] %v3416
        %3481 = vst [vmem:[#allocation1] ss:$4 sm:$0xff] %v1187
        %s3482 = scalar_lea.vmem [#allocation1], 1
        %3483 = vst [vmem:[%s3482] ss:$4 sm:$0xff] %v1188
        %s3484 = scalar_lea.vmem [#allocation1], 2
        %3485 = vst [vmem:[%s3484] ss:$4 sm:$0xff] %v1189
        %s3486 = scalar_lea.vmem [#allocation1], 3
        %3487 = vst [vmem:[%s3486] ss:$4 sm:$0xff] %v1190
        %s3488 = scalar_lea.vmem [#allocation1], 32
        %3489 = vst [vmem:[%s3488] ss:$4 sm:$0xff] %v1191
        %s3490 = scalar_lea.vmem [#allocation1], 33
        %3491 = vst [vmem:[%s3490] ss:$4 sm:$0xff] %v1192
        %s3492 = scalar_lea.vmem [#allocation1], 34
        %3493 = vst [vmem:[%s3492] ss:$4 sm:$0xff] %v1193
        %s3494 = scalar_lea.vmem [#allocation1], 35
        %3495 = vst [vmem:[%s3494] ss:$4 sm:$0xff] %v1194
        %v3496 = vld.sshfl [vmem:[#allocation1] sm:$0xff pattern:$0x73625140]
        %v3497 = vld.sshfl [vmem:[#allocation1 + $0x20] sm:$0xff pattern:$0x73625140]
        %3498 = vst [vmem:[#allocation1] ss:$4 sm:$0xff] %v1195
        %3499 = vst [vmem:[%s3482] ss:$4 sm:$0xff] %v1196
        %3500 = vst [vmem:[%s3484] ss:$4 sm:$0xff] %v1197
        %3501 = vst [vmem:[%s3486] ss:$4 sm:$0xff] %v1198
        %3502 = vst [vmem:[%s3488] ss:$4 sm:$0xff] %v1199
        %3503 = vst [vmem:[%s3490] ss:$4 sm:$0xff] %v1200
        %3504 = vst [vmem:[%s3492] ss:$4 sm:$0xff] %v1201
        %3505 = vst [vmem:[%s3494] ss:$4 sm:$0xff] %v1202
        %v3506 = vld.sshfl [vmem:[#allocation1] sm:$0xff pattern:$0x73625140]
        %v3507 = vld.sshfl [vmem:[#allocation1 + $0x20] sm:$0xff pattern:$0x73625140]
        %3508 = vst [vmem:[#allocation1] ss:$4 sm:$0xff] %v1187
        %3509 = vst [vmem:[%s3482] ss:$4 sm:$0xff] %v1188
        %3510 = vst [vmem:[%s3484] ss:$4 sm:$0xff] %v1189
        %3511 = vst [vmem:[%s3486] ss:$4 sm:$0xff] %v1190
        %3512 = vst [vmem:[%s3488] ss:$4 sm:$0xff] %v1191
        %3513 = vst [vmem:[%s3490] ss:$4 sm:$0xff] %v1192
        %3514 = vst [vmem:[%s3492] ss:$4 sm:$0xff] %v1193
        %3515 = vst [vmem:[%s3494] ss:$4 sm:$0xff] %v1194
        %v3516 = vld.sshfl [vmem:[#allocation1] sm:$0xff pattern:$0x73625140]
        %v3517 = vld.sshfl [vmem:[#allocation1 + $0x20] sm:$0xff pattern:$0x73625140]
        %3518 = vst [vmem:[#allocation1] ss:$4 sm:$0xff] %v1195
        %3519 = vst [vmem:[%s3482] ss:$4 sm:$0xff] %v1196
        %3520 = vst [vmem:[%s3484] ss:$4 sm:$0xff] %v1197
        %3521 = vst [vmem:[%s3486] ss:$4 sm:$0xff] %v1198
        %3522 = vst [vmem:[%s3488] ss:$4 sm:$0xff] %v1199
        %3523 = vst [vmem:[%s3490] ss:$4 sm:$0xff] %v1200
        %3524 = vst [vmem:[%s3492] ss:$4 sm:$0xff] %v1201
        %3525 = vst [vmem:[%s3494] ss:$4 sm:$0xff] %v1202
        %v3526 = vld.sshfl [vmem:[#allocation1] sm:$0xff pattern:$0x73625140]
        %v3527 = vld.sshfl [vmem:[#allocation1 + $0x20] sm:$0xff pattern:$0x73625140]
        %3528 = vst [vmem:[#allocation1] ss:$4 sm:$0xff] %v1203
        %3529 = vst [vmem:[%s3482] ss:$4 sm:$0xff] %v1204
        %3530 = vst [vmem:[%s3484] ss:$4 sm:$0xff] %v1205
        %3531 = vst [vmem:[%s3486] ss:$4 sm:$0xff] %v1206
        %3532 = vst [vmem:[%s3488] ss:$4 sm:$0xff] %v1207
        %3533 = vst [vmem:[%s3490] ss:$4 sm:$0xff] %v1208
        %3534 = vst [vmem:[%s3492] ss:$4 sm:$0xff] %v1209
        %3535 = vst [vmem:[%s3494] ss:$4 sm:$0xff] %v1210
        %v3536 = vld.sshfl [vmem:[#allocation1] sm:$0xff pattern:$0x73625140]
        %v3537 = vld.sshfl [vmem:[#allocation1 + $0x20] sm:$0xff pattern:$0x73625140]
        %3538 = vst [vmem:[#allocation1] ss:$4 sm:$0xff] %v1211
        %3539 = vst [vmem:[%s3482] ss:$4 sm:$0xff] %v1212
        %3540 = vst [vmem:[%s3484] ss:$4 sm:$0xff] %v1213
        %3541 = vst [vmem:[%s3486] ss:$4 sm:$0xff] %v1214
        %3542 = vst [vmem:[%s3488] ss:$4 sm:$0xff] %v1215
        %3543 = vst [vmem:[%s3490] ss:$4 sm:$0xff] %v1216
        %3544 = vst [vmem:[%s3492] ss:$4 sm:$0xff] %v1217
        %3545 = vst [vmem:[%s3494] ss:$4 sm:$0xff] %v1218
        %v3546 = vld.sshfl [vmem:[#allocation1] sm:$0xff pattern:$0x73625140]
        %v3547 = vld.sshfl [vmem:[#allocation1 + $0x20] sm:$0xff pattern:$0x73625140]
        %3548 = vst [vmem:[#allocation1] ss:$4 sm:$0xff] %v1203
        %3549 = vst [vmem:[%s3482] ss:$4 sm:$0xff] %v1204
        %3550 = vst [vmem:[%s3484] ss:$4 sm:$0xff] %v1205
        %3551 = vst [vmem:[%s3486] ss:$4 sm:$0xff] %v1206
        %3552 = vst [vmem:[%s3488] ss:$4 sm:$0xff] %v1207
        %3553 = vst [vmem:[%s3490] ss:$4 sm:$0xff] %v1208
        %3554 = vst [vmem:[%s3492] ss:$4 sm:$0xff] %v1209
        %3555 = vst [vmem:[%s3494] ss:$4 sm:$0xff] %v1210
        %v3556 = vld.sshfl [vmem:[#allocation1] sm:$0xff pattern:$0x73625140]
        %v3557 = vld.sshfl [vmem:[#allocation1 + $0x20] sm:$0xff pattern:$0x73625140]
        %3558 = vst [vmem:[#allocation1] ss:$4 sm:$0xff] %v1211
        %3559 = vst [vmem:[%s3482] ss:$4 sm:$0xff] %v1212
        %3560 = vst [vmem:[%s3484] ss:$4 sm:$0xff] %v1213
        %3561 = vst [vmem:[%s3486] ss:$4 sm:$0xff] %v1214
        %3562 = vst [vmem:[%s3488] ss:$4 sm:$0xff] %v1215
        %3563 = vst [vmem:[%s3490] ss:$4 sm:$0xff] %v1216
        %3564 = vst [vmem:[%s3492] ss:$4 sm:$0xff] %v1217
        %3565 = vst [vmem:[%s3494] ss:$4 sm:$0xff] %v1218
        %v3566 = vld.sshfl [vmem:[#allocation1] sm:$0xff pattern:$0x73625140]
        %v3567 = vld.sshfl [vmem:[#allocation1 + $0x20] sm:$0xff pattern:$0x73625140]
        %3568 = vst [vmem:[#allocation1] ss:$4 sm:$0xff] %v1219
        %3569 = vst [vmem:[%s3482] ss:$4 sm:$0xff] %v1220
        %3570 = vst [vmem:[%s3484] ss:$4 sm:$0xff] %v1221
        %3571 = vst [vmem:[%s3486] ss:$4 sm:$0xff] %v1222
        %3572 = vst [vmem:[%s3488] ss:$4 sm:$0xff] %v1223
        %3573 = vst [vmem:[%s3490] ss:$4 sm:$0xff] %v1224
        %3574 = vst [vmem:[%s3492] ss:$4 sm:$0xff] %v1225
        %3575 = vst [vmem:[%s3494] ss:$4 sm:$0xff] %v1226
        %v3576 = vld.sshfl [vmem:[#allocation1] sm:$0xff pattern:$0x73625140]
        %v3577 = vld.sshfl [vmem:[#allocation1 + $0x20] sm:$0xff pattern:$0x73625140]
        %3578 = vst [vmem:[#allocation1] ss:$4 sm:$0xff] %v1227
        %3579 = vst [vmem:[%s3482] ss:$4 sm:$0xff] %v1228
        %3580 = vst [vmem:[%s3484] ss:$4 sm:$0xff] %v1229
        %3581 = vst [vmem:[%s3486] ss:$4 sm:$0xff] %v1230
        %3582 = vst [vmem:[%s3488] ss:$4 sm:$0xff] %v1231
        %3583 = vst [vmem:[%s3490] ss:$4 sm:$0xff] %v1232
        %3584 = vst [vmem:[%s3492] ss:$4 sm:$0xff] %v1233
        %3585 = vst [vmem:[%s3494] ss:$4 sm:$0xff] %v1234
        %v3586 = vld.sshfl [vmem:[#allocation1] sm:$0xff pattern:$0x73625140]
        %v3587 = vld.sshfl [vmem:[#allocation1 + $0x20] sm:$0xff pattern:$0x73625140]
        %3588 = vst [vmem:[#allocation1] ss:$4 sm:$0xff] %v1219
        %3589 = vst [vmem:[%s3482] ss:$4 sm:$0xff] %v1220
        %3590 = vst [vmem:[%s3484] ss:$4 sm:$0xff] %v1221
        %3591 = vst [vmem:[%s3486] ss:$4 sm:$0xff] %v1222
        %3592 = vst [vmem:[%s3488] ss:$4 sm:$0xff] %v1223
        %3593 = vst [vmem:[%s3490] ss:$4 sm:$0xff] %v1224
        %3594 = vst [vmem:[%s3492] ss:$4 sm:$0xff] %v1225
        %3595 = vst [vmem:[%s3494] ss:$4 sm:$0xff] %v1226
        %v3596 = vld.sshfl [vmem:[#allocation1] sm:$0xff pattern:$0x73625140]
        %v3597 = vld.sshfl [vmem:[#allocation1 + $0x20] sm:$0xff pattern:$0x73625140]
        %3598 = vst [vmem:[#allocation1] ss:$4 sm:$0xff] %v1227
        %3599 = vst [vmem:[%s3482] ss:$4 sm:$0xff] %v1228
        %3600 = vst [vmem:[%s3484] ss:$4 sm:$0xff] %v1229
        %3601 = vst [vmem:[%s3486] ss:$4 sm:$0xff] %v1230
        %3602 = vst [vmem:[%s3488] ss:$4 sm:$0xff] %v1231
        %3603 = vst [vmem:[%s3490] ss:$4 sm:$0xff] %v1232
        %3604 = vst [vmem:[%s3492] ss:$4 sm:$0xff] %v1233
        %3605 = vst [vmem:[%s3494] ss:$4 sm:$0xff] %v1234
        %v3606 = vld.sshfl [vmem:[#allocation1] sm:$0xff pattern:$0x73625140]
        %v3607 = vld.sshfl [vmem:[#allocation1 + $0x20] sm:$0xff pattern:$0x73625140]
        %3608 = vst [vmem:[#allocation1] ss:$4 sm:$0xff] %v1235
        %3609 = vst [vmem:[%s3482] ss:$4 sm:$0xff] %v1236
        %3610 = vst [vmem:[%s3484] ss:$4 sm:$0xff] %v1237
        %3611 = vst [vmem:[%s3486] ss:$4 sm:$0xff] %v1238
        %3612 = vst [vmem:[%s3488] ss:$4 sm:$0xff] %v1239
        %3613 = vst [vmem:[%s3490] ss:$4 sm:$0xff] %v1240
        %3614 = vst [vmem:[%s3492] ss:$4 sm:$0xff] %v1241
        %3615 = vst [vmem:[%s3494] ss:$4 sm:$0xff] %v1242
        %v3616 = vld.sshfl [vmem:[#allocation1] sm:$0xff pattern:$0x73625140]
        %v3617 = vld.sshfl [vmem:[#allocation1 + $0x20] sm:$0xff pattern:$0x73625140]
        %3618 = vst [vmem:[#allocation1] ss:$4 sm:$0xff] %v1243
        %3619 = vst [vmem:[%s3482] ss:$4 sm:$0xff] %v1244
        %3620 = vst [vmem:[%s3484] ss:$4 sm:$0xff] %v1245
        %3621 = vst [vmem:[%s3486] ss:$4 sm:$0xff] %v1246
        %3622 = vst [vmem:[%s3488] ss:$4 sm:$0xff] %v1247
        %3623 = vst [vmem:[%s3490] ss:$4 sm:$0xff] %v1248
        %3624 = vst [vmem:[%s3492] ss:$4 sm:$0xff] %v1249
        %3625 = vst [vmem:[%s3494] ss:$4 sm:$0xff] %v1250
        %v3626 = vld.sshfl [vmem:[#allocation1] sm:$0xff pattern:$0x73625140]
        %v3627 = vld.sshfl [vmem:[#allocation1 + $0x20] sm:$0xff pattern:$0x73625140]
        %3628 = vst [vmem:[#allocation1] ss:$4 sm:$0xff] %v1235
        %3629 = vst [vmem:[%s3482] ss:$4 sm:$0xff] %v1236
        %3630 = vst [vmem:[%s3484] ss:$4 sm:$0xff] %v1237
        %3631 = vst [vmem:[%s3486] ss:$4 sm:$0xff] %v1238
        %3632 = vst [vmem:[%s3488] ss:$4 sm:$0xff] %v1239
        %3633 = vst [vmem:[%s3490] ss:$4 sm:$0xff] %v1240
        %3634 = vst [vmem:[%s3492] ss:$4 sm:$0xff] %v1241
        %3635 = vst [vmem:[%s3494] ss:$4 sm:$0xff] %v1242
        %v3636 = vld.sshfl [vmem:[#allocation1] sm:$0xff pattern:$0x73625140]
        %v3637 = vld.sshfl [vmem:[#allocation1 + $0x20] sm:$0xff pattern:$0x73625140]
        %3638 = vst [vmem:[#allocation1] ss:$4 sm:$0xff] %v1243
        %3639 = vst [vmem:[%s3482] ss:$4 sm:$0xff] %v1244
        %3640 = vst [vmem:[%s3484] ss:$4 sm:$0xff] %v1245
        %3641 = vst [vmem:[%s3486] ss:$4 sm:$0xff] %v1246
        %3642 = vst [vmem:[%s3488] ss:$4 sm:$0xff] %v1247
        %3643 = vst [vmem:[%s3490] ss:$4 sm:$0xff] %v1248
        %3644 = vst [vmem:[%s3492] ss:$4 sm:$0xff] %v1249
        %3645 = vst [vmem:[%s3494] ss:$4 sm:$0xff] %v1250
        %v3646 = vld.sshfl [vmem:[#allocation1] sm:$0xff pattern:$0x73625140]
        %v3647 = vld.sshfl [vmem:[#allocation1 + $0x20] sm:$0xff pattern:$0x73625140]
        %3648 = vst [vmem:[#allocation1] ss:$4 sm:$0xff] %v1251
        %3649 = vst [vmem:[%s3482] ss:$4 sm:$0xff] %v1252
        %3650 = vst [vmem:[%s3484] ss:$4 sm:$0xff] %v1253
        %3651 = vst [vmem:[%s3486] ss:$4 sm:$0xff] %v1254
        %3652 = vst [vmem:[%s3488] ss:$4 sm:$0xff] %v1255
        %3653 = vst [vmem:[%s3490] ss:$4 sm:$0xff] %v1256
        %3654 = vst [vmem:[%s3492] ss:$4 sm:$0xff] %v1257
        %3655 = vst [vmem:[%s3494] ss:$4 sm:$0xff] %v1258
        %v3656 = vld.sshfl [vmem:[#allocation1] sm:$0xff pattern:$0x73625140]
        %v3657 = vld.sshfl [vmem:[#allocation1 + $0x20] sm:$0xff pattern:$0x73625140]
        %3658 = vst [vmem:[#allocation1] ss:$4 sm:$0xff] %v1259
        %3659 = vst [vmem:[%s3482] ss:$4 sm:$0xff] %v1260
        %3660 = vst [vmem:[%s3484] ss:$4 sm:$0xff] %v1261
        %3661 = vst [vmem:[%s3486] ss:$4 sm:$0xff] %v1262
        %3662 = vst [vmem:[%s3488] ss:$4 sm:$0xff] %v1263
        %3663 = vst [vmem:[%s3490] ss:$4 sm:$0xff] %v1264
        %3664 = vst [vmem:[%s3492] ss:$4 sm:$0xff] %v1265
        %3665 = vst [vmem:[%s3494] ss:$4 sm:$0xff] %v1266
        %v3666 = vld.sshfl [vmem:[#allocation1] sm:$0xff pattern:$0x73625140]
        %v3667 = vld.sshfl [vmem:[#allocation1 + $0x20] sm:$0xff pattern:$0x73625140]
        %3668 = vst [vmem:[#allocation1] ss:$4 sm:$0xff] %v1251
        %3669 = vst [vmem:[%s3482] ss:$4 sm:$0xff] %v1252
        %3670 = vst [vmem:[%s3484] ss:$4 sm:$0xff] %v1253
        %3671 = vst [vmem:[%s3486] ss:$4 sm:$0xff] %v1254
        %3672 = vst [vmem:[%s3488] ss:$4 sm:$0xff] %v1255
        %3673 = vst [vmem:[%s3490] ss:$4 sm:$0xff] %v1256
        %3674 = vst [vmem:[%s3492] ss:$4 sm:$0xff] %v1257
        %3675 = vst [vmem:[%s3494] ss:$4 sm:$0xff] %v1258
        %v3676 = vld.sshfl [vmem:[#allocation1] sm:$0xff pattern:$0x73625140]
        %v3677 = vld.sshfl [vmem:[#allocation1 + $0x20] sm:$0xff pattern:$0x73625140]
        %3678 = vst [vmem:[#allocation1] ss:$4 sm:$0xff] %v1259
        %3679 = vst [vmem:[%s3482] ss:$4 sm:$0xff] %v1260
        %3680 = vst [vmem:[%s3484] ss:$4 sm:$0xff] %v1261
        %3681 = vst [vmem:[%s3486] ss:$4 sm:$0xff] %v1262
        %3682 = vst [vmem:[%s3488] ss:$4 sm:$0xff] %v1263
        %3683 = vst [vmem:[%s3490] ss:$4 sm:$0xff] %v1264
        %3684 = vst [vmem:[%s3492] ss:$4 sm:$0xff] %v1265
        %3685 = vst [vmem:[%s3494] ss:$4 sm:$0xff] %v1266
        %v3686 = vld.sshfl [vmem:[#allocation1] sm:$0xff pattern:$0x73625140]
        %v3687 = vld.sshfl [vmem:[#allocation1 + $0x20] sm:$0xff pattern:$0x73625140]
        %3688 = vst [vmem:[#allocation1] ss:$4 sm:$0xff] %v1267
        %3689 = vst [vmem:[%s3482] ss:$4 sm:$0xff] %v1268
        %3690 = vst [vmem:[%s3484] ss:$4 sm:$0xff] %v1269
        %3691 = vst [vmem:[%s3486] ss:$4 sm:$0xff] %v1270
        %3692 = vst [vmem:[%s3488] ss:$4 sm:$0xff] %v1271
        %3693 = vst [vmem:[%s3490] ss:$4 sm:$0xff] %v1272
        %3694 = vst [vmem:[%s3492] ss:$4 sm:$0xff] %v1273
        %3695 = vst [vmem:[%s3494] ss:$4 sm:$0xff] %v1274
        %v3696 = vld.sshfl [vmem:[#allocation1] sm:$0xff pattern:$0x73625140]
        %v3697 = vld.sshfl [vmem:[#allocation1 + $0x20] sm:$0xff pattern:$0x73625140]
        %3698 = vst [vmem:[#allocation1] ss:$4 sm:$0xff] %v1275
        %3699 = vst [vmem:[%s3482] ss:$4 sm:$0xff] %v1276
        %3700 = vst [vmem:[%s3484] ss:$4 sm:$0xff] %v1277
        %3701 = vst [vmem:[%s3486] ss:$4 sm:$0xff] %v1278
        %3702 = vst [vmem:[%s3488] ss:$4 sm:$0xff] %v1279
        %3703 = vst [vmem:[%s3490] ss:$4 sm:$0xff] %v1280
        %3704 = vst [vmem:[%s3492] ss:$4 sm:$0xff] %v1281
        %3705 = vst [vmem:[%s3494] ss:$4 sm:$0xff] %v1282
        %v3706 = vld.sshfl [vmem:[#allocation1] sm:$0xff pattern:$0x73625140]
        %v3707 = vld.sshfl [vmem:[#allocation1 + $0x20] sm:$0xff pattern:$0x73625140]
        %3708 = vst [vmem:[#allocation1] ss:$4 sm:$0xff] %v1267
        %3709 = vst [vmem:[%s3482] ss:$4 sm:$0xff] %v1268
        %3710 = vst [vmem:[%s3484] ss:$4 sm:$0xff] %v1269
        %3711 = vst [vmem:[%s3486] ss:$4 sm:$0xff] %v1270
        %3712 = vst [vmem:[%s3488] ss:$4 sm:$0xff] %v1271
        %3713 = vst [vmem:[%s3490] ss:$4 sm:$0xff] %v1272
        %3714 = vst [vmem:[%s3492] ss:$4 sm:$0xff] %v1273
        %3715 = vst [vmem:[%s3494] ss:$4 sm:$0xff] %v1274
        %v3716 = vld.sshfl [vmem:[#allocation1] sm:$0xff pattern:$0x73625140]
        %v3717 = vld.sshfl [vmem:[#allocation1 + $0x20] sm:$0xff pattern:$0x73625140]
        %3718 = vst [vmem:[#allocation1] ss:$4 sm:$0xff] %v1275
        %3719 = vst [vmem:[%s3482] ss:$4 sm:$0xff] %v1276
        %3720 = vst [vmem:[%s3484] ss:$4 sm:$0xff] %v1277
        %3721 = vst [vmem:[%s3486] ss:$4 sm:$0xff] %v1278
        %3722 = vst [vmem:[%s3488] ss:$4 sm:$0xff] %v1279
        %3723 = vst [vmem:[%s3490] ss:$4 sm:$0xff] %v1280
        %3724 = vst [vmem:[%s3492] ss:$4 sm:$0xff] %v1281
        %3725 = vst [vmem:[%s3494] ss:$4 sm:$0xff] %v1282
        %v3726 = vld.sshfl [vmem:[#allocation1] sm:$0xff pattern:$0x73625140]
        %v3727 = vld.sshfl [vmem:[#allocation1 + $0x20] sm:$0xff pattern:$0x73625140]
        %3728 = vst [vmem:[#allocation1] ss:$4 sm:$0xff] %v1283
        %3729 = vst [vmem:[%s3482] ss:$4 sm:$0xff] %v1284
        %3730 = vst [vmem:[%s3484] ss:$4 sm:$0xff] %v1285
        %3731 = vst [vmem:[%s3486] ss:$4 sm:$0xff] %v1286
        %3732 = vst [vmem:[%s3488] ss:$4 sm:$0xff] %v1287
        %3733 = vst [vmem:[%s3490] ss:$4 sm:$0xff] %v1288
        %3734 = vst [vmem:[%s3492] ss:$4 sm:$0xff] %v1289
        %3735 = vst [vmem:[%s3494] ss:$4 sm:$0xff] %v1290
        %v3736 = vld.sshfl [vmem:[#allocation1] sm:$0xff pattern:$0x73625140]
        %v3737 = vld.sshfl [vmem:[#allocation1 + $0x20] sm:$0xff pattern:$0x73625140]
        %3738 = vst [vmem:[#allocation1] ss:$4 sm:$0xff] %v1291
        %3739 = vst [vmem:[%s3482] ss:$4 sm:$0xff] %v1292
        %3740 = vst [vmem:[%s3484] ss:$4 sm:$0xff] %v1293
        %3741 = vst [vmem:[%s3486] ss:$4 sm:$0xff] %v1294
        %3742 = vst [vmem:[%s3488] ss:$4 sm:$0xff] %v1295
        %3743 = vst [vmem:[%s3490] ss:$4 sm:$0xff] %v1296
        %3744 = vst [vmem:[%s3492] ss:$4 sm:$0xff] %v1297
        %3745 = vst [vmem:[%s3494] ss:$4 sm:$0xff] %v1298
        %v3746 = vld.sshfl [vmem:[#allocation1] sm:$0xff pattern:$0x73625140]
        %v3747 = vld.sshfl [vmem:[#allocation1 + $0x20] sm:$0xff pattern:$0x73625140]
        %3748 = vst [vmem:[#allocation1] ss:$4 sm:$0xff] %v1283
        %3749 = vst [vmem:[%s3482] ss:$4 sm:$0xff] %v1284
        %3750 = vst [vmem:[%s3484] ss:$4 sm:$0xff] %v1285
        %3751 = vst [vmem:[%s3486] ss:$4 sm:$0xff] %v1286
        %3752 = vst [vmem:[%s3488] ss:$4 sm:$0xff] %v1287
        %3753 = vst [vmem:[%s3490] ss:$4 sm:$0xff] %v1288
        %3754 = vst [vmem:[%s3492] ss:$4 sm:$0xff] %v1289
        %3755 = vst [vmem:[%s3494] ss:$4 sm:$0xff] %v1290
        %v3756 = vld.sshfl [vmem:[#allocation1] sm:$0xff pattern:$0x73625140]
        %v3757 = vld.sshfl [vmem:[#allocation1 + $0x20] sm:$0xff pattern:$0x73625140]
        %3758 = vst [vmem:[#allocation1] ss:$4 sm:$0xff] %v1291
        %3759 = vst [vmem:[%s3482] ss:$4 sm:$0xff] %v1292
        %3760 = vst [vmem:[%s3484] ss:$4 sm:$0xff] %v1293
        %3761 = vst [vmem:[%s3486] ss:$4 sm:$0xff] %v1294
        %3762 = vst [vmem:[%s3488] ss:$4 sm:$0xff] %v1295
        %3763 = vst [vmem:[%s3490] ss:$4 sm:$0xff] %v1296
        %3764 = vst [vmem:[%s3492] ss:$4 sm:$0xff] %v1297
        %3765 = vst [vmem:[%s3494] ss:$4 sm:$0xff] %v1298
        %v3766 = vld.sshfl [vmem:[#allocation1] sm:$0xff pattern:$0x73625140]
        %v3767 = vld.sshfl [vmem:[#allocation1 + $0x20] sm:$0xff pattern:$0x73625140]
        %3768 = vst [vmem:[#allocation1] ss:$4 sm:$0xff] %v1299
        %3769 = vst [vmem:[%s3482] ss:$4 sm:$0xff] %v1300
        %3770 = vst [vmem:[%s3484] ss:$4 sm:$0xff] %v1301
        %3771 = vst [vmem:[%s3486] ss:$4 sm:$0xff] %v1302
        %3772 = vst [vmem:[%s3488] ss:$4 sm:$0xff] %v1303
        %3773 = vst [vmem:[%s3490] ss:$4 sm:$0xff] %v1304
        %3774 = vst [vmem:[%s3492] ss:$4 sm:$0xff] %v1305
        %3775 = vst [vmem:[%s3494] ss:$4 sm:$0xff] %v1306
        %v3776 = vld.sshfl [vmem:[#allocation1] sm:$0xff pattern:$0x73625140]
        %v3777 = vld.sshfl [vmem:[#allocation1 + $0x20] sm:$0xff pattern:$0x73625140]
        %3778 = vst [vmem:[#allocation1] ss:$4 sm:$0xff] %v1307
        %3779 = vst [vmem:[%s3482] ss:$4 sm:$0xff] %v1308
        %3780 = vst [vmem:[%s3484] ss:$4 sm:$0xff] %v1309
        %3781 = vst [vmem:[%s3486] ss:$4 sm:$0xff] %v1310
        %3782 = vst [vmem:[%s3488] ss:$4 sm:$0xff] %v1311
        %3783 = vst [vmem:[%s3490] ss:$4 sm:$0xff] %v1312
        %3784 = vst [vmem:[%s3492] ss:$4 sm:$0xff] %v1313
        %3785 = vst [vmem:[%s3494] ss:$4 sm:$0xff] %v1314
        %v3786 = vld.sshfl [vmem:[#allocation1] sm:$0xff pattern:$0x73625140]
        %v3787 = vld.sshfl [vmem:[#allocation1 + $0x20] sm:$0xff pattern:$0x73625140]
        %3788 = vst [vmem:[#allocation1] ss:$4 sm:$0xff] %v1299
        %3789 = vst [vmem:[%s3482] ss:$4 sm:$0xff] %v1300
        %3790 = vst [vmem:[%s3484] ss:$4 sm:$0xff] %v1301
        %3791 = vst [vmem:[%s3486] ss:$4 sm:$0xff] %v1302
        %3792 = vst [vmem:[%s3488] ss:$4 sm:$0xff] %v1303
        %3793 = vst [vmem:[%s3490] ss:$4 sm:$0xff] %v1304
        %3794 = vst [vmem:[%s3492] ss:$4 sm:$0xff] %v1305
        %3795 = vst [vmem:[%s3494] ss:$4 sm:$0xff] %v1306
        %v3796 = vld.sshfl [vmem:[#allocation1] sm:$0xff pattern:$0x73625140]
        %v3797 = vld.sshfl [vmem:[#allocation1 + $0x20] sm:$0xff pattern:$0x73625140]
        %3798 = vst [vmem:[#allocation1] ss:$4 sm:$0xff] %v1307
        %3799 = vst [vmem:[%s3482] ss:$4 sm:$0xff] %v1308
        %3800 = vst [vmem:[%s3484] ss:$4 sm:$0xff] %v1309
        %3801 = vst [vmem:[%s3486] ss:$4 sm:$0xff] %v1310
        %3802 = vst [vmem:[%s3488] ss:$4 sm:$0xff] %v1311
        %3803 = vst [vmem:[%s3490] ss:$4 sm:$0xff] %v1312
        %3804 = vst [vmem:[%s3492] ss:$4 sm:$0xff] %v1313
        %3805 = vst [vmem:[%s3494] ss:$4 sm:$0xff] %v1314
        %v3806 = vld.sshfl [vmem:[#allocation1] sm:$0xff pattern:$0x73625140]
        %v3807 = vld.sshfl [vmem:[#allocation1 + $0x20] sm:$0xff pattern:$0x73625140]
        %3872 = vst [vmem:[%s377 + $0x8] sm:$0xff] %v3496
        %3873 = vst [vmem:[%s377 + $0x18] sm:$0xff] %v3497
        %3874 = vst [vmem:[%s377 + $0x28] sm:$0xff] %v3506
        %3875 = vst [vmem:[%s377 + $0x38] sm:$0xff] %v3507
        %3876 = vst [vmem:[%s377 + $0x48] sm:$0xff] %v3516
        %3877 = vst [vmem:[%s377 + $0x58] sm:$0xff] %v3517
        %3878 = vst [vmem:[%s377 + $0x68] sm:$0xff] %v3526
        %3879 = vst [vmem:[%s377 + $0x78] sm:$0xff] %v3527
        %3880 = vst [vmem:[%s377 + $0x88] sm:$0xff] %v3536
        %3881 = vst [vmem:[%s377 + $0x98] sm:$0xff] %v3537
        %3882 = vst [vmem:[%s377 + $0xa8] sm:$0xff] %v3546
        %3883 = vst [vmem:[%s377 + $0xb8] sm:$0xff] %v3547
        %3884 = vst [vmem:[%s377 + $0xc8] sm:$0xff] %v3556
        %3885 = vst [vmem:[%s377 + $0xd8] sm:$0xff] %v3557
        %3886 = vst [vmem:[%s377 + $0xe8] sm:$0xff] %v3566
        %3887 = vst [vmem:[%s377 + $0xf8] sm:$0xff] %v3567
        %3888 = vst [vmem:[%s377 + $0x108] sm:$0xff] %v3576
        %3889 = vst [vmem:[%s377 + $0x118] sm:$0xff] %v3577
        %3890 = vst [vmem:[%s377 + $0x128] sm:$0xff] %v3586
        %3891 = vst [vmem:[%s377 + $0x138] sm:$0xff] %v3587
        %3892 = vst [vmem:[%s377 + $0x148] sm:$0xff] %v3596
        %3893 = vst [vmem:[%s377 + $0x158] sm:$0xff] %v3597
        %3894 = vst [vmem:[%s377 + $0x168] sm:$0xff] %v3606
        %3895 = vst [vmem:[%s377 + $0x178] sm:$0xff] %v3607
        %3896 = vst [vmem:[%s377 + $0x188] sm:$0xff] %v3616
        %3897 = vst [vmem:[%s377 + $0x198] sm:$0xff] %v3617
        %3898 = vst [vmem:[%s377 + $0x1a8] sm:$0xff] %v3626
        %3899 = vst [vmem:[%s377 + $0x1b8] sm:$0xff] %v3627
        %3900 = vst [vmem:[%s377 + $0x1c8] sm:$0xff] %v3636
        %3901 = vst [vmem:[%s377 + $0x1d8] sm:$0xff] %v3637
        %3902 = vst [vmem:[%s377 + $0x1e8] sm:$0xff] %v3646
        %3903 = vst [vmem:[%s377 + $0x1f8] sm:$0xff] %v3647
        %3904 = vst [vmem:[%s377 + $0x208] sm:$0xff] %v3656
        %3905 = vst [vmem:[%s377 + $0x218] sm:$0xff] %v3657
        %3906 = vst [vmem:[%s377 + $0x228] sm:$0xff] %v3666
        %3907 = vst [vmem:[%s377 + $0x238] sm:$0xff] %v3667
        %3908 = vst [vmem:[%s377 + $0x248] sm:$0xff] %v3676
        %3909 = vst [vmem:[%s377 + $0x258] sm:$0xff] %v3677
        %3910 = vst [vmem:[%s377 + $0x268] sm:$0xff] %v3686
        %3911 = vst [vmem:[%s377 + $0x278] sm:$0xff] %v3687
        %3912 = vst [vmem:[%s377 + $0x288] sm:$0xff] %v3696
        %3913 = vst [vmem:[%s377 + $0x298] sm:$0xff] %v3697
        %3914 = vst [vmem:[%s377 + $0x2a8] sm:$0xff] %v3706
        %3915 = vst [vmem:[%s377 + $0x2b8] sm:$0xff] %v3707
        %3916 = vst [vmem:[%s377 + $0x2c8] sm:$0xff] %v3716
        %3917 = vst [vmem:[%s377 + $0x2d8] sm:$0xff] %v3717
        %3918 = vst [vmem:[%s377 + $0x2e8] sm:$0xff] %v3726
        %3919 = vst [vmem:[%s377 + $0x2f8] sm:$0xff] %v3727
        %3920 = vst [vmem:[%s377 + $0x308] sm:$0xff] %v3736
        %3921 = vst [vmem:[%s377 + $0x318] sm:$0xff] %v3737
        %3922 = vst [vmem:[%s377 + $0x328] sm:$0xff] %v3746
        %3923 = vst [vmem:[%s377 + $0x338] sm:$0xff] %v3747
        %3924 = vst [vmem:[%s377 + $0x348] sm:$0xff] %v3756
        %3925 = vst [vmem:[%s377 + $0x358] sm:$0xff] %v3757
        %3926 = vst [vmem:[%s377 + $0x368] sm:$0xff] %v3766
        %3927 = vst [vmem:[%s377 + $0x378] sm:$0xff] %v3767
        %3928 = vst [vmem:[%s377 + $0x388] sm:$0xff] %v3776
        %3929 = vst [vmem:[%s377 + $0x398] sm:$0xff] %v3777
        %3930 = vst [vmem:[%s377 + $0x3a8] sm:$0xff] %v3786
        %3931 = vst [vmem:[%s377 + $0x3b8] sm:$0xff] %v3787
        %3932 = vst [vmem:[%s377 + $0x3c8] sm:$0xff] %v3796
        %3933 = vst [vmem:[%s377 + $0x3d8] sm:$0xff] %v3797
        %3934 = vst [vmem:[%s377 + $0x3e8] sm:$0xff] %v3806
        %3935 = vst [vmem:[%s377 + $0x3f8] sm:$0xff] %v3807
        %s3936 = sand.u32 %s172, 1
        %s3937 = scalar_lea.sflag [#allocation4], %s3936
        %s3938 = sand.u32 %s172, 1
        %s3939 = smul.addr %s3938, 1024
        %s3940 = scalar_lea.vmem [#allocation13], %s3939
        // Predicated region
        $region69: #{fuse_stage_forward.1} parent=43 // pred_check
          %p3941 = pneg %p182
        $region70: #{fuse_stage_forward.1} parent=43 // pred_check_branch
          %3943 = sbr.rel (%p3941) target = $region72
        $region71: #{fuse_stage_forward.1} parent=43 // pred_region
          %s3944 = smul.u32 8, %s28
          %3946 = vsyncadd %s3937, 0
          %s3947 = smul.addr %s3944, 16
          %s3948 = smul.addr %s3947, 8
          %s3949 = scalar_lea.hbm %s6, %s3948
          %s3950 = sshll.u32 %s3940, 4
          %s3951 = int_to_ptr.vmem [resolvable:$true] %s3950
          %s3952 = sshll.u32 %s3949, 4
          %s3953 = int_to_ptr.hbm [resolvable:$true] %s3952
          %3958 = dma.vmem_to_hbm [thread:$0]  %s3951, 16384, %s3953, %s3937, 256, 256, 16
        $region72: #{fuse_stage_forward.1} parent=43 // pred_fallthru
          _
      $region44: #{fuse_stage_forward.1} parent=5 // pred_fallthru
        _
      %p3959 = scmp.le.s32.totalorder 2, %s23
      // Predicated region
      $region73: #{fuse_stage_forward.1} parent=5 // pred_check
        %p3960 = pneg %p3959
      $region74: #{fuse_stage_forward.1} parent=5 // pred_check_branch
        %3962 = sbr.rel (%p3960) target = $region76
      $region75: #{fuse_stage_forward.1} parent=5 // pred_region
        %s3963 = ssub.s32 %s23, 2
        // Predicated region
        $region77: #{fuse_stage_forward.1} parent=75 // pred_check
          %p3964 = pneg %p188
        $region78: #{fuse_stage_forward.1} parent=75 // pred_check_branch
          %3966 = sbr.rel (%p3964) target = $region80
        $region79: #{fuse_stage_forward.1} parent=75 // pred_region
          %s3967 = sand.u32 %s173, 1
          %s3968 = scalar_lea.sflag [#allocation4], %s3967
          %s3969 = sand.u32 %s173, 1
          %s3970 = smul.addr %s3969, 1024
          %s3971 = scalar_lea.vmem [#allocation13], %s3970
          %3973 = dma.done %s3968, 16384
        $region80: #{fuse_stage_forward.1} parent=75 // pred_fallthru
          _
      $region76: #{fuse_stage_forward.1} parent=5 // pred_fallthru
        _
    $region6: #{fuse_stage_forward.1} parent=1 // loop_footer
      %s27 = sadd.s32 1, %s23
    $region7: #{fuse_stage_forward.1} parent=1 // loop_footer_branch
      %22 = sbr.rel target = $region3
    $region8: #{fuse_stage_forward.1} parent=1 // loop_exit
      _
    %3974 = vsyncpa [#allocation3], 1
    %s3975 = scalar_lea.sflag [#allocation3], 1
    %3976 = vsyncpa %s3975, 1
    %3977 = vsyncpa [#allocation6], 1
    %s3978 = scalar_lea.sflag [#allocation6], 1
    %3979 = vsyncpa %s3978, 1
    %3980 = vsyncpa [#allocation9], 1
    %3981 = vsyncpa [#allocation12], 1
    %3982 = vsyncpa [#allocation4], 1
    %s3983 = scalar_lea.sflag [#allocation4], 1
    %3984 = vsyncpa %s3983, 1

</llo_original>
